<compile_context>
chip_gen: v5e
topology: v5e:2x2
jax: 0.10.0
libtpu: 0.0.40
codegen_flags: <defaults>
</compile_context>

<pallas_src>
import jax
import jax.numpy as jnp
from jax.experimental import pallas as pl
from jax.experimental.pallas import tpu as pltpu


# ---------------------------------------------------------------------------
# The single fused kernel (runs once per batch block)
# ---------------------------------------------------------------------------
def _fused_kernel(tok_ids_ref, org_ids_ref, tok_emb_ref, org_emb_ref,
                  conv_w_ref, conv_b_ref, cls_w_ref, cls_b_ref, out_ref):
    # tok_ids_ref : (B_blk*L, 1) i32       org_ids_ref : (B_blk, 1) i32
    # tok_emb_ref : (V_pad, D)  bf16       org_emb_ref : (O_pad, D) bf16
    # conv_w_ref  : (n_base, K*D, D) bf16  conv_b_ref  : (n_base, 1, D) f32
    # cls_w_ref   : ((L+1)*D, C_pad) bf16  cls_b_ref   : (1, C_pad) f32
    # out_ref     : (B_blk, C_pad) f32
    n_base, KD, D = conv_w_ref.shape
    K = KD // D
    B_blk = out_ref.shape[0]
    rows = tok_ids_ref.shape[0]
    L = rows // B_blk
    V_pad = tok_emb_ref.shape[0]
    O_pad = org_emb_ref.shape[0]
    pad_lo = (K - 1) // 2            # PyTorch 'same' left pad
    pad_hi = K - 1 - pad_lo

    # ---- InputEmbedding: lane-dense one-hot (V padded to 128) @ bf16 table.
    # TODO(synk): for a large real vocab replace the one-hot matmul with a
    # scalar-prefetch DMA gather (PrefetchScalarGridSpec + pl.Element).
    tok_cmp = (tok_ids_ref[...] ==
               jax.lax.broadcasted_iota(jnp.int32, (rows, V_pad), 1))
    tok_oh = jnp.where(tok_cmp, 1.0, 0.0).astype(jnp.bfloat16)
    h3 = jnp.dot(tok_oh, tok_emb_ref[...],
                 preferred_element_type=jnp.float32).reshape(B_blk, L, D)

    # ---- ConvolutionalEncoder: n_base x (Conv1d 'same' + ReLU).
    # The K shifted taps are lane-concatenated so each layer is one
    # (B_blk*L, K*D) @ (K*D, D) MXU matmul (contraction K*D instead of D).
    # TODO(synk): for a large n_base switch the static Python unroll to a
    # lax.fori_loop / extra grid axis to bound compile time & vreg pressure.
    for layer in range(n_base):
        parts = []
        if pad_lo:
            parts.append(jnp.zeros((B_blk, pad_lo, D), jnp.float32))
        parts.append(h3)
        if pad_hi:
            parts.append(jnp.zeros((B_blk, pad_hi, D), jnp.float32))
        hp = jnp.concatenate(parts, axis=1) if len(parts) > 1 else h3
        window = jnp.concatenate([hp[:, k:k + L, :] for k in range(K)],
                                 axis=-1)                      # (B_blk, L, K*D)
        window = window.reshape(rows, KD).astype(jnp.bfloat16)
        acc = jnp.dot(window, conv_w_ref[layer],
                      preferred_element_type=jnp.float32)      # (rows, D) f32
        h3 = jnp.maximum(acc.reshape(B_blk, L, D) + conv_b_ref[layer], 0.0)

    # ---- OrganismEmbedding: one-hot gather (bf16 MXU).
    org_cmp = (org_ids_ref[...] ==
               jax.lax.broadcasted_iota(jnp.int32, (B_blk, O_pad), 1))
    org_oh = jnp.where(org_cmp, 1.0, 0.0).astype(jnp.bfloat16)
    org_e = jnp.dot(org_oh, org_emb_ref[...],
                    preferred_element_type=jnp.float32)        # (B_blk, D)

    # ---- cat((conv_out, org), dim=1) + Flatten + Classifier.
    # Build the (B_blk, (L+1)*D) row via lane-concat of per-position chunks
    # (== PyTorch row-major flatten of (B, L+1, D)), then ONE wide matmul.
    # TODO(synk): for the real seq_len (classifier in-dim 120832) replace the
    # static per-position concat with a fori_loop / grid-axis accumulation.
    flat = jnp.concatenate([h3[:, p, :] for p in range(L)] + [org_e],
                           axis=-1).astype(jnp.bfloat16)       # (B_blk,(L+1)*D)
    logits = jnp.dot(flat, cls_w_ref[...],
                     preferred_element_type=jnp.float32)       # (B_blk, C_pad)
    out_ref[...] = logits + cls_b_ref[...]


# ---------------------------------------------------------------------------
# Parameters (created directly in kernel-friendly layout)
# ---------------------------------------------------------------------------
def _round_up(x, m):
    return (x + m - 1) // m * m


def _pick_batch_block(B, L, target_rows=256):
    """Largest batch block that divides B, is a multiple of 8 sublanes (or the
    full batch) and keeps B_blk*L within ~target_rows matmul rows."""
    cands = [b for b in range(1, B + 1)
             if B % b == 0 and (b % 8 == 0 or b == B)]
    fitting = [b for b in cands if b * L <= target_rows]
    return max(fitting) if fitting else min(cands)


def init_params(key, config):
    D = config["d_model"]
    K = config["kernel_size"]
    L = config["seq_len"]
    V = config["vocab_size"]
    n_base = config["n_base"]
    n_orgs = config["num_orgs"]
    C = config["num_class"]
    V_pad = _round_up(V, 128)        # lane-dense one-hot / table rows
    O_pad = _round_up(n_orgs, 128)
    C_pad = _round_up(C, 128)        # lane-dense classifier columns
    ks = jax.random.split(key, 6)

    tok_emb = jnp.zeros((V_pad, D), jnp.float32).at[:V].set(
        jax.random.normal(ks[0], (V, D), jnp.float32) * 0.5)
    org_emb = jnp.zeros((O_pad, D), jnp.float32).at[:n_orgs].set(
        jax.random.normal(ks[1], (n_orgs, D), jnp.float32) * 0.5)
    # (layer, K*in_ch, out_ch): PyTorch Conv1d (out,in,K) -> (K,in,out) ->
    # reshape (K*in, out); tap order matches the kernel's window concat.
    conv_w = jax.random.normal(ks[2], (n_base, K * D, D), jnp.float32) * 0.2
    conv_b = jax.random.normal(ks[3], (n_base, 1, D), jnp.float32) * 0.05
    # ((L+1)*D, C_pad): PyTorch Linear (C, (L+1)*D).T, class axis zero-padded.
    cls_w = jnp.zeros(((L + 1) * D, C_pad), jnp.float32).at[:, :C].set(
        jax.random.normal(ks[4], ((L + 1) * D, C), jnp.float32) * 0.1)
    cls_b = jnp.zeros((1, C_pad), jnp.float32).at[:, :C].set(
        jax.random.normal(ks[5], (1, C), jnp.float32) * 0.05)

    return {"tok_emb": tok_emb.astype(jnp.bfloat16),
            "org_emb": org_emb.astype(jnp.bfloat16),
            "conv_w": conv_w.astype(jnp.bfloat16),
            "conv_b": conv_b,                         # bias stays f32
            "cls_w": cls_w.astype(jnp.bfloat16),
            "cls_b": cls_b}                           # bias stays f32


# ---------------------------------------------------------------------------
# Forward pass: one pallas_call with a parallel batch grid.
# ---------------------------------------------------------------------------
def build_forward(config):
    num_class = config["num_class"]

    @jax.jit
    def forward(params, x_tokens, org_ids):
        B, L = x_tokens.shape
        C_pad = params["cls_w"].shape[-1]
        B_blk = _pick_batch_block(B, L)
        grid = (B // B_blk,)

        out_pad = pl.pallas_call(
            _fused_kernel,
            out_shape=jax.ShapeDtypeStruct((B, C_pad), jnp.float32),
            grid=grid,
            in_specs=[
                # streamed per batch block (double-buffered by Pallas)
                pl.BlockSpec((B_blk * L, 1), lambda i: (i, 0)),
                pl.BlockSpec((B_blk, 1), lambda i: (i, 0)),
                # weight tables: constant index_map -> VMEM-resident, no re-DMA
                pl.BlockSpec(params["tok_emb"].shape, lambda i: (0, 0)),
                pl.BlockSpec(params["org_emb"].shape, lambda i: (0, 0)),
                pl.BlockSpec(params["conv_w"].shape, lambda i: (0, 0, 0)),
                pl.BlockSpec(params["conv_b"].shape, lambda i: (0, 0, 0)),
                pl.BlockSpec(params["cls_w"].shape, lambda i: (0, 0)),
                pl.BlockSpec(params["cls_b"].shape, lambda i: (0, 0)),
            ],
            out_specs=pl.BlockSpec((B_blk, C_pad), lambda i: (i, 0)),
            compiler_params=pltpu.CompilerParams(
                dimension_semantics=("parallel",),      # both TCs on v7x
                vmem_limit_bytes=32 * 1024 * 1024),     # fits v7x's 64 MiB
        )(x_tokens.reshape(B * L, 1).astype(jnp.int32),
          org_ids.reshape(B, 1).astype(jnp.int32),
          params["tok_emb"], params["org_emb"],
          params["conv_w"], params["conv_b"],
          params["cls_w"], params["cls_b"])

        return out_pad[:, :num_class]   # drop the lane padding

    return forward


# Pure-JAX reference mirroring the kernel's bf16-operand / f32-acc numerics.
def forward_reference(params, x_tokens, org_ids, config):
    K = config["kernel_size"]
    C = config["num_class"]
    pad_lo = (K - 1) // 2
    pad_hi = K - 1 - pad_lo
    B, L = x_tokens.shape
    D = params["tok_emb"].shape[1]
    h = jnp.take(params["tok_emb"], x_tokens, axis=0).astype(jnp.float32)
    for i in range(config["n_base"]):
        hp = jnp.pad(h, ((0, 0), (pad_lo, pad_hi), (0, 0)))
        window = jnp.concatenate([hp[:, k:k + L, :] for k in range(K)], axis=-1)
        acc = jnp.dot(window.reshape(B * L, K * D).astype(jnp.bfloat16),
                      params["conv_w"][i],
                      preferred_element_type=jnp.float32).reshape(B, L, D)
        h = jnp.maximum(acc + params["conv_b"][i], 0.0)
    org_e = jnp.take(params["org_emb"], org_ids, axis=0).astype(jnp.float32)
    flat = jnp.concatenate([h.reshape(B, L * D), org_e], axis=-1)
    logits = jnp.dot(flat.astype(jnp.bfloat16), params["cls_w"],
                     preferred_element_type=jnp.float32) + params["cls_b"]
    return logits[:, :C]


if __name__ == "__main__":
    config = {
        "vocab_size": 21,
        "d_model": 32,
        "kernel_size": 3,
        "n_base": 2,
        "num_orgs": 4,     # len(params.ORGANISMS)
        "num_class": 6,    # len(params.SP_LABELS)
        "seq_len": 16,
    }
    key = jax.random.PRNGKey(0)
    k_param, k_x, k_org = jax.random.split(key, 3)

    model_params = init_params(k_param, config)

    B, L = 32, config["seq_len"]     # 32 seqs -> batch grid of 2 blocks of 16
    x_tokens = jax.random.randint(k_x, (B, L), 0, config["vocab_size"],
                                  dtype=jnp.int32)
    org_ids = jax.random.randint(k_org, (B,), 0, config["num_orgs"],
                                 dtype=jnp.int32)

    forward = build_forward(config)
    out = jax.block_until_ready(forward(model_params, x_tokens, org_ids))

    assert out.shape == (B, config["num_class"]), out.shape
    assert bool(jnp.all(jnp.isfinite(out)))
    ref = forward_reference(model_params, x_tokens, org_ids, config)
    assert jnp.allclose(out, ref, rtol=1e-2, atol=1e-2), (out, ref)
    print("KERNEL_OK")
</pallas_src>

<mosaic_0001>
module attributes {stable_mosaic.version = 11 : i64} {
  func.func @_fused_kernel(%arg0: i32, %arg1: memref<256x1xi32, #tpu.memory_space<vmem>>, %arg2: memref<16x1xi32, #tpu.memory_space<vmem>>, %arg3: memref<128x32xbf16, #tpu.memory_space<vmem>>, %arg4: memref<128x32xbf16, #tpu.memory_space<vmem>>, %arg5: memref<2x96x32xbf16, #tpu.memory_space<vmem>>, %arg6: memref<2x1x32xf32, #tpu.memory_space<vmem>>, %arg7: memref<544x128xbf16, #tpu.memory_space<vmem>>, %arg8: memref<1x128xf32, #tpu.memory_space<vmem>>, %arg9: memref<16x128xf32, #tpu.memory_space<vmem>>) attributes {dimension_semantics = [#tpu.dimension_semantics<parallel>], iteration_bounds = array<i64: 2>, scalar_prefetch = 0 : i64, scratch_operands = 0 : i64, tpu.core_type = #tpu.core_type<tc>, window_params = [{transform_indices = @transform_0, window_bounds = array<i64: 256, 1>}, {transform_indices = @transform_1, window_bounds = array<i64: 16, 1>}, {pipeline_mode = #tpu.pipeline_mode<synchronous>, transform_indices = @transform_2, window_bounds = array<i64: 128, 32>}, {pipeline_mode = #tpu.pipeline_mode<synchronous>, transform_indices = @transform_3, window_bounds = array<i64: 128, 32>}, {pipeline_mode = #tpu.pipeline_mode<synchronous>, transform_indices = @transform_4, window_bounds = array<i64: 2, 96, 32>}, {pipeline_mode = #tpu.pipeline_mode<synchronous>, transform_indices = @transform_5, window_bounds = array<i64: 2, 1, 32>}, {pipeline_mode = #tpu.pipeline_mode<synchronous>, transform_indices = @transform_6, window_bounds = array<i64: 544, 128>}, {pipeline_mode = #tpu.pipeline_mode<synchronous>, transform_indices = @transform_7, window_bounds = array<i64: 1, 128>}, {transform_indices = @transform_8, window_bounds = array<i64: 16, 128>}]} {
    %c0 = arith.constant 0 : index
    %c0_0 = arith.constant 0 : index
    %0 = vector.load %arg1[%c0, %c0_0] : memref<256x1xi32, #tpu.memory_space<vmem>>, vector<256x1xi32>
    %1 = tpu.iota {dimensions = array<i32: 1>} : vector<256x128xi32>
    %2 = vector.broadcast %0 : vector<256x1xi32> to vector<256x128xi32>
    %3 = arith.cmpi eq, %2, %1 : vector<256x128xi32>
    %cst = arith.constant 1.000000e+00 : f32
    %cst_1 = arith.constant 0.000000e+00 : f32
    %4 = vector.broadcast %cst : f32 to vector<256x128xf32>
    %5 = vector.broadcast %cst_1 : f32 to vector<256x128xf32>
    %6 = arith.select %3, %4, %5 : vector<256x128xi1>, vector<256x128xf32>
    %7 = arith.truncf %6 : vector<256x128xf32> to vector<256x128xbf16>
    %c0_2 = arith.constant 0 : index
    %c0_3 = arith.constant 0 : index
    %8 = vector.load %arg3[%c0_2, %c0_3] : memref<128x32xbf16, #tpu.memory_space<vmem>>, vector<128x32xbf16>
    %cst_4 = arith.constant dense<0.000000e+00> : vector<256x32xf32>
    %9 = tpu.matmul %7, %8, %cst_4 {dimension_numbers = #tpu.dot_dimension_numbers<[1], [0], [0], [1], [0, 0, 1, 1], [], []>} : vector<256x128xbf16>, vector<128x32xbf16>, vector<256x32xf32> -> vector<256x32xf32>
    %10 = vector.shape_cast %9 : vector<256x32xf32> to vector<16x16x32xf32>
    %cst_5 = arith.constant 0.000000e+00 : f32
    %11 = vector.broadcast %cst_5 : f32 to vector<16x1x32xf32>
    %cst_6 = arith.constant 0.000000e+00 : f32
    %12 = vector.broadcast %cst_6 : f32 to vector<16x1x32xf32>
    %13 = tpu.concatenate %11, %10, %12 in 1 : vector<16x1x32xf32>, vector<16x16x32xf32>, vector<16x1x32xf32> -> vector<16x18x32xf32>
    %14 = vector.extract_strided_slice %13 {offsets = [0, 0, 0], sizes = [16, 16, 32], strides = [1, 1, 1]} : vector<16x18x32xf32> to vector<16x16x32xf32>
    %15 = vector.extract_strided_slice %13 {offsets = [0, 1, 0], sizes = [16, 16, 32], strides = [1, 1, 1]} : vector<16x18x32xf32> to vector<16x16x32xf32>
    %16 = vector.extract_strided_slice %13 {offsets = [0, 2, 0], sizes = [16, 16, 32], strides = [1, 1, 1]} : vector<16x18x32xf32> to vector<16x16x32xf32>
    %17 = tpu.concatenate %14, %15, %16 in 2 : vector<16x16x32xf32>, vector<16x16x32xf32>, vector<16x16x32xf32> -> vector<16x16x96xf32>
    %18 = vector.shape_cast %17 : vector<16x16x96xf32> to vector<256x96xf32>
    %19 = arith.truncf %18 : vector<256x96xf32> to vector<256x96xbf16>
    %c0_7 = arith.constant 0 : index
    %c0_8 = arith.constant 0 : index
    %c0_9 = arith.constant 0 : index
    %20 = vector.load %arg5[%c0_7, %c0_8, %c0_9] : memref<2x96x32xbf16, #tpu.memory_space<vmem>>, vector<1x96x32xbf16>
    %21 = vector.shape_cast %20 : vector<1x96x32xbf16> to vector<96x32xbf16>
    %cst_10 = arith.constant dense<0.000000e+00> : vector<256x32xf32>
    %22 = tpu.matmul %19, %21, %cst_10 {dimension_numbers = #tpu.dot_dimension_numbers<[1], [0], [0], [1], [0, 0, 1, 1], [], []>} : vector<256x96xbf16>, vector<96x32xbf16>, vector<256x32xf32> -> vector<256x32xf32>
    %23 = vector.shape_cast %22 : vector<256x32xf32> to vector<16x16x32xf32>
    %c0_11 = arith.constant 0 : index
    %c0_12 = arith.constant 0 : index
    %c0_13 = arith.constant 0 : index
    %24 = vector.load %arg6[%c0_11, %c0_12, %c0_13] : memref<2x1x32xf32, #tpu.memory_space<vmem>>, vector<1x1x32xf32>
    %25 = vector.shape_cast %24 : vector<1x1x32xf32> to vector<1x32xf32>
    %26 = vector.shape_cast %25 : vector<1x32xf32> to vector<1x1x32xf32>
    %27 = vector.broadcast %26 : vector<1x1x32xf32> to vector<16x16x32xf32>
    %28 = arith.addf %23, %27 : vector<16x16x32xf32>
    %cst_14 = arith.constant 0.000000e+00 : f32
    %29 = vector.broadcast %cst_14 : f32 to vector<16x16x32xf32>
    %30 = arith.maximumf %28, %29 : vector<16x16x32xf32>
    %cst_15 = arith.constant 0.000000e+00 : f32
    %31 = vector.broadcast %cst_15 : f32 to vector<16x1x32xf32>
    %cst_16 = arith.constant 0.000000e+00 : f32
    %32 = vector.broadcast %cst_16 : f32 to vector<16x1x32xf32>
    %33 = tpu.concatenate %31, %30, %32 in 1 : vector<16x1x32xf32>, vector<16x16x32xf32>, vector<16x1x32xf32> -> vector<16x18x32xf32>
    %34 = vector.extract_strided_slice %33 {offsets = [0, 0, 0], sizes = [16, 16, 32], strides = [1, 1, 1]} : vector<16x18x32xf32> to vector<16x16x32xf32>
    %35 = vector.extract_strided_slice %33 {offsets = [0, 1, 0], sizes = [16, 16, 32], strides = [1, 1, 1]} : vector<16x18x32xf32> to vector<16x16x32xf32>
    %36 = vector.extract_strided_slice %33 {offsets = [0, 2, 0], sizes = [16, 16, 32], strides = [1, 1, 1]} : vector<16x18x32xf32> to vector<16x16x32xf32>
    %37 = tpu.concatenate %34, %35, %36 in 2 : vector<16x16x32xf32>, vector<16x16x32xf32>, vector<16x16x32xf32> -> vector<16x16x96xf32>
    %38 = vector.shape_cast %37 : vector<16x16x96xf32> to vector<256x96xf32>
    %39 = arith.truncf %38 : vector<256x96xf32> to vector<256x96xbf16>
    %c1 = arith.constant 1 : index
    %c0_17 = arith.constant 0 : index
    %c0_18 = arith.constant 0 : index
    %40 = vector.load %arg5[%c1, %c0_17, %c0_18] : memref<2x96x32xbf16, #tpu.memory_space<vmem>>, vector<1x96x32xbf16>
    %41 = vector.shape_cast %40 : vector<1x96x32xbf16> to vector<96x32xbf16>
    %cst_19 = arith.constant dense<0.000000e+00> : vector<256x32xf32>
    %42 = tpu.matmul %39, %41, %cst_19 {dimension_numbers = #tpu.dot_dimension_numbers<[1], [0], [0], [1], [0, 0, 1, 1], [], []>} : vector<256x96xbf16>, vector<96x32xbf16>, vector<256x32xf32> -> vector<256x32xf32>
    %43 = vector.shape_cast %42 : vector<256x32xf32> to vector<16x16x32xf32>
    %c1_20 = arith.constant 1 : index
    %c0_21 = arith.constant 0 : index
    %c0_22 = arith.constant 0 : index
    %44 = vector.load %arg6[%c1_20, %c0_21, %c0_22] : memref<2x1x32xf32, #tpu.memory_space<vmem>>, vector<1x1x32xf32>
    %45 = vector.shape_cast %44 : vector<1x1x32xf32> to vector<1x32xf32>
    %46 = vector.shape_cast %45 : vector<1x32xf32> to vector<1x1x32xf32>
    %47 = vector.broadcast %46 : vector<1x1x32xf32> to vector<16x16x32xf32>
    %48 = arith.addf %43, %47 : vector<16x16x32xf32>
    %cst_23 = arith.constant 0.000000e+00 : f32
    %49 = vector.broadcast %cst_23 : f32 to vector<16x16x32xf32>
    %50 = arith.maximumf %48, %49 : vector<16x16x32xf32>
    %c0_24 = arith.constant 0 : index
    %c0_25 = arith.constant 0 : index
    %51 = vector.load %arg2[%c0_24, %c0_25] : memref<16x1xi32, #tpu.memory_space<vmem>>, vector<16x1xi32>
    %52 = tpu.iota {dimensions = array<i32: 1>} : vector<16x128xi32>
    %53 = vector.broadcast %51 : vector<16x1xi32> to vector<16x128xi32>
    %54 = arith.cmpi eq, %53, %52 : vector<16x128xi32>
    %cst_26 = arith.constant 1.000000e+00 : f32
    %cst_27 = arith.constant 0.000000e+00 : f32
    %55 = vector.broadcast %cst_26 : f32 to vector<16x128xf32>
    %56 = vector.broadcast %cst_27 : f32 to vector<16x128xf32>
    %57 = arith.select %54, %55, %56 : vector<16x128xi1>, vector<16x128xf32>
    %58 = arith.truncf %57 : vector<16x128xf32> to vector<16x128xbf16>
    %c0_28 = arith.constant 0 : index
    %c0_29 = arith.constant 0 : index
    %59 = vector.load %arg4[%c0_28, %c0_29] : memref<128x32xbf16, #tpu.memory_space<vmem>>, vector<128x32xbf16>
    %cst_30 = arith.constant dense<0.000000e+00> : vector<16x32xf32>
    %60 = tpu.matmul %58, %59, %cst_30 {dimension_numbers = #tpu.dot_dimension_numbers<[1], [0], [0], [1], [0, 0, 1, 1], [], []>} : vector<16x128xbf16>, vector<128x32xbf16>, vector<16x32xf32> -> vector<16x32xf32>
    %61 = vector.extract_strided_slice %50 {offsets = [0, 0, 0], sizes = [16, 1, 32], strides = [1, 1, 1]} : vector<16x16x32xf32> to vector<16x1x32xf32>
    %62 = vector.shape_cast %61 : vector<16x1x32xf32> to vector<16x32xf32>
    %63 = vector.extract_strided_slice %50 {offsets = [0, 1, 0], sizes = [16, 1, 32], strides = [1, 1, 1]} : vector<16x16x32xf32> to vector<16x1x32xf32>
    %64 = vector.shape_cast %63 : vector<16x1x32xf32> to vector<16x32xf32>
    %65 = vector.extract_strided_slice %50 {offsets = [0, 2, 0], sizes = [16, 1, 32], strides = [1, 1, 1]} : vector<16x16x32xf32> to vector<16x1x32xf32>
    %66 = vector.shape_cast %65 : vector<16x1x32xf32> to vector<16x32xf32>
    %67 = vector.extract_strided_slice %50 {offsets = [0, 3, 0], sizes = [16, 1, 32], strides = [1, 1, 1]} : vector<16x16x32xf32> to vector<16x1x32xf32>
    %68 = vector.shape_cast %67 : vector<16x1x32xf32> to vector<16x32xf32>
    %69 = vector.extract_strided_slice %50 {offsets = [0, 4, 0], sizes = [16, 1, 32], strides = [1, 1, 1]} : vector<16x16x32xf32> to vector<16x1x32xf32>
    %70 = vector.shape_cast %69 : vector<16x1x32xf32> to vector<16x32xf32>
    %71 = vector.extract_strided_slice %50 {offsets = [0, 5, 0], sizes = [16, 1, 32], strides = [1, 1, 1]} : vector<16x16x32xf32> to vector<16x1x32xf32>
    %72 = vector.shape_cast %71 : vector<16x1x32xf32> to vector<16x32xf32>
    %73 = vector.extract_strided_slice %50 {offsets = [0, 6, 0], sizes = [16, 1, 32], strides = [1, 1, 1]} : vector<16x16x32xf32> to vector<16x1x32xf32>
    %74 = vector.shape_cast %73 : vector<16x1x32xf32> to vector<16x32xf32>
    %75 = vector.extract_strided_slice %50 {offsets = [0, 7, 0], sizes = [16, 1, 32], strides = [1, 1, 1]} : vector<16x16x32xf32> to vector<16x1x32xf32>
    %76 = vector.shape_cast %75 : vector<16x1x32xf32> to vector<16x32xf32>
    %77 = vector.extract_strided_slice %50 {offsets = [0, 8, 0], sizes = [16, 1, 32], strides = [1, 1, 1]} : vector<16x16x32xf32> to vector<16x1x32xf32>
    %78 = vector.shape_cast %77 : vector<16x1x32xf32> to vector<16x32xf32>
    %79 = vector.extract_strided_slice %50 {offsets = [0, 9, 0], sizes = [16, 1, 32], strides = [1, 1, 1]} : vector<16x16x32xf32> to vector<16x1x32xf32>
    %80 = vector.shape_cast %79 : vector<16x1x32xf32> to vector<16x32xf32>
    %81 = vector.extract_strided_slice %50 {offsets = [0, 10, 0], sizes = [16, 1, 32], strides = [1, 1, 1]} : vector<16x16x32xf32> to vector<16x1x32xf32>
    %82 = vector.shape_cast %81 : vector<16x1x32xf32> to vector<16x32xf32>
    %83 = vector.extract_strided_slice %50 {offsets = [0, 11, 0], sizes = [16, 1, 32], strides = [1, 1, 1]} : vector<16x16x32xf32> to vector<16x1x32xf32>
    %84 = vector.shape_cast %83 : vector<16x1x32xf32> to vector<16x32xf32>
    %85 = vector.extract_strided_slice %50 {offsets = [0, 12, 0], sizes = [16, 1, 32], strides = [1, 1, 1]} : vector<16x16x32xf32> to vector<16x1x32xf32>
    %86 = vector.shape_cast %85 : vector<16x1x32xf32> to vector<16x32xf32>
    %87 = vector.extract_strided_slice %50 {offsets = [0, 13, 0], sizes = [16, 1, 32], strides = [1, 1, 1]} : vector<16x16x32xf32> to vector<16x1x32xf32>
    %88 = vector.shape_cast %87 : vector<16x1x32xf32> to vector<16x32xf32>
    %89 = vector.extract_strided_slice %50 {offsets = [0, 14, 0], sizes = [16, 1, 32], strides = [1, 1, 1]} : vector<16x16x32xf32> to vector<16x1x32xf32>
    %90 = vector.shape_cast %89 : vector<16x1x32xf32> to vector<16x32xf32>
    %91 = vector.extract_strided_slice %50 {offsets = [0, 15, 0], sizes = [16, 1, 32], strides = [1, 1, 1]} : vector<16x16x32xf32> to vector<16x1x32xf32>
    %92 = vector.shape_cast %91 : vector<16x1x32xf32> to vector<16x32xf32>
    %93 = tpu.concatenate %62, %64, %66, %68, %70, %72, %74, %76, %78, %80, %82, %84, %86, %88, %90, %92 in 1 : vector<16x32xf32>, vector<16x32xf32>, vector<16x32xf32>, vector<16x32xf32>, vector<16x32xf32>, vector<16x32xf32>, vector<16x32xf32>, vector<16x32xf32>, vector<16x32xf32>, vector<16x32xf32>, vector<16x32xf32>, vector<16x32xf32>, vector<16x32xf32>, vector<16x32xf32>, vector<16x32xf32>, vector<16x32xf32> -> vector<16x512xf32>
    %94 = tpu.concatenate %93, %60 in 1 : vector<16x512xf32>, vector<16x32xf32> -> vector<16x544xf32>
    %95 = arith.truncf %94 : vector<16x544xf32> to vector<16x544xbf16>
    %c0_31 = arith.constant 0 : index
    %c0_32 = arith.constant 0 : index
    %96 = vector.load %arg7[%c0_31, %c0_32] : memref<544x128xbf16, #tpu.memory_space<vmem>>, vector<544x128xbf16>
    %cst_33 = arith.constant dense<0.000000e+00> : vector<16x128xf32>
    %97 = tpu.matmul %95, %96, %cst_33 {dimension_numbers = #tpu.dot_dimension_numbers<[1], [0], [0], [1], [0, 0, 1, 1], [], []>} : vector<16x544xbf16>, vector<544x128xbf16>, vector<16x128xf32> -> vector<16x128xf32>
    %c0_34 = arith.constant 0 : index
    %c0_35 = arith.constant 0 : index
    %98 = vector.load %arg8[%c0_34, %c0_35] : memref<1x128xf32, #tpu.memory_space<vmem>>, vector<1x128xf32>
    %99 = vector.broadcast %98 : vector<1x128xf32> to vector<16x128xf32>
    %100 = arith.addf %97, %99 : vector<16x128xf32>
    %c0_36 = arith.constant 0 : index
    %c0_37 = arith.constant 0 : index
    %101 = vector.load %arg9[%c0_36, %c0_37] : memref<16x128xf32, #tpu.memory_space<vmem>>, vector<16x128xf32>
    tpu.vector_store %arg9[%c0_36, %c0_37], %100 {strides = array<i32>} : memref<16x128xf32, #tpu.memory_space<vmem>>, vector<16x128xf32>,
    return
  }
  func.func @transform_0(%arg0: i32) -> (i32, i32) {
    %c0_i32 = arith.constant 0 : i32
    %c0_i32_0 = arith.constant 0 : i32
    return %arg0, %c0_i32 : i32, i32
  }
  func.func @transform_1(%arg0: i32) -> (i32, i32) {
    %c0_i32 = arith.constant 0 : i32
    %c0_i32_0 = arith.constant 0 : i32
    return %arg0, %c0_i32 : i32, i32
  }
  func.func @transform_2(%arg0: i32) -> (i32, i32) {
    %c0_i32 = arith.constant 0 : i32
    %c0_i32_0 = arith.constant 0 : i32
    %c0_i32_1 = arith.constant 0 : i32
    return %c0_i32, %c0_i32_0 : i32, i32
  }
  func.func @transform_3(%arg0: i32) -> (i32, i32) {
    %c0_i32 = arith.constant 0 : i32
    %c0_i32_0 = arith.constant 0 : i32
    %c0_i32_1 = arith.constant 0 : i32
    return %c0_i32, %c0_i32_0 : i32, i32
  }
  func.func @transform_4(%arg0: i32) -> (i32, i32, i32) {
    %c0_i32 = arith.constant 0 : i32
    %c0_i32_0 = arith.constant 0 : i32
    %c0_i32_1 = arith.constant 0 : i32
    %c0_i32_2 = arith.constant 0 : i32
    return %c0_i32, %c0_i32_0, %c0_i32_1 : i32, i32, i32
  }
  func.func @transform_5(%arg0: i32) -> (i32, i32, i32) {
    %c0_i32 = arith.constant 0 : i32
    %c0_i32_0 = arith.constant 0 : i32
    %c0_i32_1 = arith.constant 0 : i32
    %c0_i32_2 = arith.constant 0 : i32
    return %c0_i32, %c0_i32_0, %c0_i32_1 : i32, i32, i32
  }
  func.func @transform_6(%arg0: i32) -> (i32, i32) {
    %c0_i32 = arith.constant 0 : i32
    %c0_i32_0 = arith.constant 0 : i32
    %c0_i32_1 = arith.constant 0 : i32
    return %c0_i32, %c0_i32_0 : i32, i32
  }
  func.func @transform_7(%arg0: i32) -> (i32, i32) {
    %c0_i32 = arith.constant 0 : i32
    %c0_i32_0 = arith.constant 0 : i32
    %c0_i32_1 = arith.constant 0 : i32
    return %c0_i32, %c0_i32_0 : i32, i32
  }
  func.func @transform_8(%arg0: i32) -> (i32, i32) {
    %c0_i32 = arith.constant 0 : i32
    %c0_i32_0 = arith.constant 0 : i32
    return %arg0, %c0_i32 : i32, i32
  }
}

</mosaic_0001>

<llo_original>
// kernel: forward.1
$region0: #{forward.1}
  #allocation0 [shape = 'u32[]', space=smem, size = 0x4, offset = 0x4, fixed_abs, tag = 'smem constant byte address 0x4 - core index']
  #allocation1 [shape = 'u32[72,128]{1,0:T(1,128)}', space=vmem, size = 0x9000, scoped, tag = 'internal scratch']
  %s0 = inlined_call_operand.vmem [shape: s32[512,1], index: 0, kind: input, shape index: {}]
  %s1 = inlined_call_operand.vmem [shape: s32[32,1], index: 1, kind: input, shape index: {}]
  %s2 = inlined_call_operand.vmem [shape: bf16[128,32], index: 2, kind: input, shape index: {}]
  %s3 = inlined_call_operand.vmem [shape: bf16[128,32], index: 3, kind: input, shape index: {}]
  %s4 = inlined_call_operand.vmem [shape: bf16[2,96,32], index: 4, kind: input, shape index: {}]
  %s5 = inlined_call_operand.vmem [shape: f32[2,1,32], index: 5, kind: input, shape index: {}]
  %s6 = inlined_call_operand.vmem [shape: bf16[544,128], index: 6, kind: input, shape index: {}]
  %s7 = inlined_call_operand.vmem [shape: f32[1,128], index: 7, kind: input, shape index: {}]
  %s8 = inlined_call_operand.vmem [shape: f32[32,128], index: 8, kind: output, shape index: {}]
  %s9 = sld [smem:[#allocation0]]
  $region65: #{forward.1} parent=0
    _
  %s11 = ssub.s32 1, %s9
  %s12 = scalar_select 0, %s11, %s9
  loop: start=0, step=1, limit=4
  $region2: #{forward.1} parent=0 // loop_pre_header
    _
  $region3: #{forward.1} parent=0 // loop_header
    %s14 = sphi 0, %s18
    %p15 = scmp.ge.s32.totalorder %s14, 4
    %s24 = sphi 0, %s26
    %s27 = sphi 0, %s24
    %s28 = sphi 0, %s27
    %s44 = sphi 0, %s28
    %s50 = sphi 0, %s52
    %s53 = sphi 0, %s50
    %s54 = sphi 0, %s53
    %s70 = sphi 0, %s54
    %s74 = sphi 0, %s74
    %s76 = sphi 0, %s74
    %s77 = sphi 0, %s76
    %s91 = sphi 0, %s77
    %s95 = sphi 0, %s95
    %s97 = sphi 0, %s95
    %s98 = sphi 0, %s97
    %s112 = sphi 0, %s98
    %s116 = sphi 0, %s116
    %s118 = sphi 0, %s116
    %s119 = sphi 0, %s118
    %s133 = sphi 0, %s119
    %s137 = sphi 0, %s137
    %s139 = sphi 0, %s137
    %s140 = sphi 0, %s139
    %s154 = sphi 0, %s140
    %s158 = sphi 0, %s158
    %s160 = sphi 0, %s158
    %s161 = sphi 0, %s160
    %s175 = sphi 0, %s161
    %s179 = sphi 0, %s179
    %s181 = sphi 0, %s179
    %s182 = sphi 0, %s181
    %s196 = sphi 0, %s182
    %s202 = sphi 0, %s204
    %s205 = sphi 0, %s202
    %s206 = sphi 0, %s205
    %s222 = sphi 0, %s206
  $region4: #{forward.1} parent=0 // loop_header_branch
    %17 = sbr.rel (%p15) target = $region8
  $region5: #{forward.1} parent=0 // loop_body
    %s19 = ssub.s32 %s14, 1
    %s20 = ssub.s32 %s14, 2
    %s21 = sadd.s32 %s14, 1
    %s22 = ssub.s32 %s14, %s21
    %p23 = scmp.eq.s32.totalorder %s22, 0
    %s25 = sadd.s32 %s24, 1
    %s26 = scalar_select %p23, %s24, %s25
    %p29 = pneg %p23
    %p30 = scmp.eq.s32.totalorder %s14, 1
    %p31 = por %p29, %p30
    %p32 = scmp.ne.s32.totalorder %s24, %s27
    %p33 = scmp.eq.s32.totalorder %s14, 0
    %p34 = por %p32, %p33
    %p35 = scmp.ne.s32.totalorder %s24, %s27
    %p36 = scmp.eq.s32.totalorder %s19, 1
    %p37 = por %p35, %p36
    %p38 = scmp.ne.s32.totalorder %s27, %s28
    %p39 = scmp.eq.s32.totalorder %s19, 0
    %p40 = por %p38, %p39
    %p41 = scmp.ne.s32.totalorder %s27, %s28
    %p42 = scmp.eq.s32.totalorder %s20, 1
    %p43 = por %p41, %p42
    %p45 = scmp.ne.s32.totalorder %s28, %s44
    %p46 = scmp.eq.s32.totalorder %s20, 0
    %p47 = por %p45, %p46
    %s48 = ssub.s32 %s14, %s21
    %p49 = scmp.eq.s32.totalorder %s48, 0
    %s51 = sadd.s32 %s50, 1
    %s52 = scalar_select %p49, %s50, %s51
    %p55 = pneg %p49
    %p56 = scmp.eq.s32.totalorder %s14, 1
    %p57 = por %p55, %p56
    %p58 = scmp.ne.s32.totalorder %s50, %s53
    %p59 = scmp.eq.s32.totalorder %s14, 0
    %p60 = por %p58, %p59
    %p61 = scmp.ne.s32.totalorder %s50, %s53
    %p62 = scmp.eq.s32.totalorder %s19, 1
    %p63 = por %p61, %p62
    %p64 = scmp.ne.s32.totalorder %s53, %s54
    %p65 = scmp.eq.s32.totalorder %s19, 0
    %p66 = por %p64, %p65
    %p67 = scmp.ne.s32.totalorder %s53, %s54
    %p68 = scmp.eq.s32.totalorder %s20, 1
    %p69 = por %p67, %p68
    %p71 = scmp.ne.s32.totalorder %s54, %s70
    %p72 = scmp.eq.s32.totalorder %s20, 0
    %p73 = por %p71, %p72
    %s75 = sadd.s32 %s74, 1
    %p78 = scmp.eq.s32.totalorder %s14, 1
    %p79 = scmp.ne.s32.totalorder %s74, %s76
    %p80 = scmp.eq.s32.totalorder %s14, 0
    %p81 = por %p79, %p80
    %p82 = scmp.ne.s32.totalorder %s74, %s76
    %p83 = scmp.eq.s32.totalorder %s19, 1
    %p84 = por %p82, %p83
    %p85 = scmp.ne.s32.totalorder %s76, %s77
    %p86 = scmp.eq.s32.totalorder %s19, 0
    %p87 = por %p85, %p86
    %p88 = scmp.ne.s32.totalorder %s76, %s77
    %p89 = scmp.eq.s32.totalorder %s20, 1
    %p90 = por %p88, %p89
    %p92 = scmp.ne.s32.totalorder %s77, %s91
    %p93 = scmp.eq.s32.totalorder %s20, 0
    %p94 = por %p92, %p93
    %s96 = sadd.s32 %s95, 1
    %p99 = scmp.eq.s32.totalorder %s14, 1
    %p100 = scmp.ne.s32.totalorder %s95, %s97
    %p101 = scmp.eq.s32.totalorder %s14, 0
    %p102 = por %p100, %p101
    %p103 = scmp.ne.s32.totalorder %s95, %s97
    %p104 = scmp.eq.s32.totalorder %s19, 1
    %p105 = por %p103, %p104
    %p106 = scmp.ne.s32.totalorder %s97, %s98
    %p107 = scmp.eq.s32.totalorder %s19, 0
    %p108 = por %p106, %p107
    %p109 = scmp.ne.s32.totalorder %s97, %s98
    %p110 = scmp.eq.s32.totalorder %s20, 1
    %p111 = por %p109, %p110
    %p113 = scmp.ne.s32.totalorder %s98, %s112
    %p114 = scmp.eq.s32.totalorder %s20, 0
    %p115 = por %p113, %p114
    %s117 = sadd.s32 %s116, 1
    %p120 = scmp.eq.s32.totalorder %s14, 1
    %p121 = scmp.ne.s32.totalorder %s116, %s118
    %p122 = scmp.eq.s32.totalorder %s14, 0
    %p123 = por %p121, %p122
    %p124 = scmp.ne.s32.totalorder %s116, %s118
    %p125 = scmp.eq.s32.totalorder %s19, 1
    %p126 = por %p124, %p125
    %p127 = scmp.ne.s32.totalorder %s118, %s119
    %p128 = scmp.eq.s32.totalorder %s19, 0
    %p129 = por %p127, %p128
    %p130 = scmp.ne.s32.totalorder %s118, %s119
    %p131 = scmp.eq.s32.totalorder %s20, 1
    %p132 = por %p130, %p131
    %p134 = scmp.ne.s32.totalorder %s119, %s133
    %p135 = scmp.eq.s32.totalorder %s20, 0
    %p136 = por %p134, %p135
    %s138 = sadd.s32 %s137, 1
    %p141 = scmp.eq.s32.totalorder %s14, 1
    %p142 = scmp.ne.s32.totalorder %s137, %s139
    %p143 = scmp.eq.s32.totalorder %s14, 0
    %p144 = por %p142, %p143
    %p145 = scmp.ne.s32.totalorder %s137, %s139
    %p146 = scmp.eq.s32.totalorder %s19, 1
    %p147 = por %p145, %p146
    %p148 = scmp.ne.s32.totalorder %s139, %s140
    %p149 = scmp.eq.s32.totalorder %s19, 0
    %p150 = por %p148, %p149
    %p151 = scmp.ne.s32.totalorder %s139, %s140
    %p152 = scmp.eq.s32.totalorder %s20, 1
    %p153 = por %p151, %p152
    %p155 = scmp.ne.s32.totalorder %s140, %s154
    %p156 = scmp.eq.s32.totalorder %s20, 0
    %p157 = por %p155, %p156
    %s159 = sadd.s32 %s158, 1
    %p162 = scmp.eq.s32.totalorder %s14, 1
    %p163 = scmp.ne.s32.totalorder %s158, %s160
    %p164 = scmp.eq.s32.totalorder %s14, 0
    %p165 = por %p163, %p164
    %p166 = scmp.ne.s32.totalorder %s158, %s160
    %p167 = scmp.eq.s32.totalorder %s19, 1
    %p168 = por %p166, %p167
    %p169 = scmp.ne.s32.totalorder %s160, %s161
    %p170 = scmp.eq.s32.totalorder %s19, 0
    %p171 = por %p169, %p170
    %p172 = scmp.ne.s32.totalorder %s160, %s161
    %p173 = scmp.eq.s32.totalorder %s20, 1
    %p174 = por %p172, %p173
    %p176 = scmp.ne.s32.totalorder %s161, %s175
    %p177 = scmp.eq.s32.totalorder %s20, 0
    %p178 = por %p176, %p177
    %s180 = sadd.s32 %s179, 1
    %p183 = scmp.eq.s32.totalorder %s14, 1
    %p184 = scmp.ne.s32.totalorder %s179, %s181
    %p185 = scmp.eq.s32.totalorder %s14, 0
    %p186 = por %p184, %p185
    %p187 = scmp.ne.s32.totalorder %s179, %s181
    %p188 = scmp.eq.s32.totalorder %s19, 1
    %p189 = por %p187, %p188
    %p190 = scmp.ne.s32.totalorder %s181, %s182
    %p191 = scmp.eq.s32.totalorder %s19, 0
    %p192 = por %p190, %p191
    %p193 = scmp.ne.s32.totalorder %s181, %s182
    %p194 = scmp.eq.s32.totalorder %s20, 1
    %p195 = por %p193, %p194
    %p197 = scmp.ne.s32.totalorder %s182, %s196
    %p198 = scmp.eq.s32.totalorder %s20, 0
    %p199 = por %p197, %p198
    %s200 = ssub.s32 %s14, %s21
    %p201 = scmp.eq.s32.totalorder %s200, 0
    %s203 = sadd.s32 %s202, 1
    %s204 = scalar_select %p201, %s202, %s203
    %p207 = pneg %p201
    %p208 = scmp.eq.s32.totalorder %s14, 1
    %p209 = por %p207, %p208
    %p210 = scmp.ne.s32.totalorder %s202, %s205
    %p211 = scmp.eq.s32.totalorder %s14, 0
    %p212 = por %p210, %p211
    %p213 = scmp.ne.s32.totalorder %s202, %s205
    %p214 = scmp.eq.s32.totalorder %s19, 1
    %p215 = por %p213, %p214
    %p216 = scmp.ne.s32.totalorder %s205, %s206
    %p217 = scmp.eq.s32.totalorder %s19, 0
    %p218 = por %p216, %p217
    %p219 = scmp.ne.s32.totalorder %s205, %s206
    %p220 = scmp.eq.s32.totalorder %s20, 1
    %p221 = por %p219, %p220
    %p223 = scmp.ne.s32.totalorder %s206, %s222
    %p224 = scmp.eq.s32.totalorder %s20, 0
    %p225 = por %p223, %p224
    %p226 = scmp.le.s32.totalorder 1, %s14
    %p227 = scmp.lt.s32.totalorder %s14, 3
    %p228 = pnand %p226, %p227
    %p229 = pneg %p228
    // Predicated region
    $region9: #{forward.1} parent=5 // pred_check
      _
    $region10: #{forward.1} parent=5 // pred_check_branch
      %231 = sbr.rel (%p228) target = $region12
    $region11: #{forward.1} parent=5 // pred_region
      %s232 = ssub.s32 %s14, 1
      // Predicated region
      $region13: #{forward.1} parent=11 // pred_check
        %p233 = pneg %p87
      $region14: #{forward.1} parent=11 // pred_check_branch
        %235 = sbr.rel (%p233) target = $region16
      $region15: #{forward.1} parent=11 // pred_region
        _
      $region16: #{forward.1} parent=11 // pred_fallthru
        _
      // Predicated region
      $region17: #{forward.1} parent=11 // pred_check
        %p236 = pneg %p108
      $region18: #{forward.1} parent=11 // pred_check_branch
        %238 = sbr.rel (%p236) target = $region20
      $region19: #{forward.1} parent=11 // pred_region
        _
      $region20: #{forward.1} parent=11 // pred_fallthru
        _
      // Predicated region
      $region21: #{forward.1} parent=11 // pred_check
        %p239 = pneg %p129
      $region22: #{forward.1} parent=11 // pred_check_branch
        %241 = sbr.rel (%p239) target = $region24
      $region23: #{forward.1} parent=11 // pred_region
        _
      $region24: #{forward.1} parent=11 // pred_fallthru
        _
      // Predicated region
      $region25: #{forward.1} parent=11 // pred_check
        %p242 = pneg %p150
      $region26: #{forward.1} parent=11 // pred_check_branch
        %244 = sbr.rel (%p242) target = $region28
      $region27: #{forward.1} parent=11 // pred_region
        _
      $region28: #{forward.1} parent=11 // pred_fallthru
        _
      // Predicated region
      $region29: #{forward.1} parent=11 // pred_check
        %p245 = pneg %p171
      $region30: #{forward.1} parent=11 // pred_check_branch
        %247 = sbr.rel (%p245) target = $region32
      $region31: #{forward.1} parent=11 // pred_region
        _
      $region32: #{forward.1} parent=11 // pred_fallthru
        _
      // Predicated region
      $region33: #{forward.1} parent=11 // pred_check
        %p248 = pneg %p192
      $region34: #{forward.1} parent=11 // pred_check_branch
        %250 = sbr.rel (%p248) target = $region36
      $region35: #{forward.1} parent=11 // pred_region
        _
      $region36: #{forward.1} parent=11 // pred_fallthru
        _
    $region12: #{forward.1} parent=5 // pred_fallthru
      _
    %p251 = scmp.lt.s32.totalorder %s14, 2
    // Predicated region
    $region37: #{forward.1} parent=5 // pred_check
      %p252 = pneg %p251
    $region38: #{forward.1} parent=5 // pred_check_branch
      %254 = sbr.rel (%p252) target = $region40
    $region39: #{forward.1} parent=5 // pred_region
      // Predicated region
      $region41: #{forward.1} parent=39 // pred_check
        %p255 = pneg %p34
      $region42: #{forward.1} parent=39 // pred_check_branch
        %257 = sbr.rel (%p255) target = $region44
      $region43: #{forward.1} parent=39 // pred_region
        %s258 = smul.u32 32, %s14
        %p259 = scmp.lt.s32.totalorder %s258, 63
        %s260 = scalar_select %p259, %s258, 63
        %s261 = smul.addr %s260, 8
        %s262 = scalar_lea.vmem %s0, %s261
        %s263 = smul.u32 32, %s14
      $region44: #{forward.1} parent=39 // pred_fallthru
        _
      // Predicated region
      $region45: #{forward.1} parent=39 // pred_check
        %p264 = pneg %p60
      $region46: #{forward.1} parent=39 // pred_check_branch
        %266 = sbr.rel (%p264) target = $region48
      $region47: #{forward.1} parent=39 // pred_region
        %s267 = smul.u32 2, %s14
        %p268 = scmp.lt.s32.totalorder %s267, 3
        %s269 = scalar_select %p268, %s267, 3
        %s270 = smul.addr %s269, 8
        %s271 = scalar_lea.vmem %s1, %s270
        %s272 = smul.u32 2, %s14
      $region48: #{forward.1} parent=39 // pred_fallthru
        _
    $region40: #{forward.1} parent=5 // pred_fallthru
      _
    %p273 = scmp.le.s32.totalorder 1, %s14
    %p274 = scmp.lt.s32.totalorder %s14, 3
    %p275 = pnand %p273, %p274
    %p276 = pneg %p275
    // Predicated region
    $region49: #{forward.1} parent=5 // pred_check
      _
    $region50: #{forward.1} parent=5 // pred_check_branch
      %278 = sbr.rel (%p275) target = $region52
    $region51: #{forward.1} parent=5 // pred_region
      %s279 = ssub.s32 %s14, 1
      %s280 = smul.u32 32, %s19
      %p281 = scmp.lt.s32.totalorder %s280, 63
      %s282 = scalar_select %p281, %s280, 63
      %s283 = smul.addr %s282, 8
      %s284 = scalar_lea.vmem %s0, %s283
      %p285 = pneg %p40
      %p286 = pneg %p37
      %s287 = smul.u32 2, %s19
      %p288 = scmp.lt.s32.totalorder %s287, 3
      %s289 = scalar_select %p288, %s287, 3
      %s290 = smul.addr %s289, 8
      %s291 = scalar_lea.vmem %s1, %s290
      %p292 = pneg %p66
      %p293 = pneg %p63
      %p294 = pneg %p87
      %p295 = pneg %p84
      %p296 = pneg %p108
      %p297 = pneg %p105
      %p298 = pneg %p129
      %p299 = pneg %p126
      %p300 = pneg %p150
      %p301 = pneg %p147
      %p302 = pneg %p171
      %p303 = pneg %p168
      %p304 = pneg %p192
      %p305 = pneg %p189
      %p306 = pneg %p218
      %p307 = pneg %p215
      %s308 = smul.u32 2, %s19
      %p309 = scmp.lt.s32.totalorder %s308, 3
      %s310 = scalar_select %p309, %s308, 3
      %s311 = smul.addr %s310, 8
      %s312 = scalar_lea.vmem %s8, %s311
      %s313 = smul.u32 32, %s19
      %p314 = scmp.lt.s32.totalorder %s313, 63
      %s315 = scalar_select %p314, %s313, 63
      %s316 = smul.addr %s315, 8
      %s317 = scalar_lea.vmem %s0, %s316
      %s318 = smul.u32 32, %s19
      %s319 = smul.u32 2, %s19
      %p320 = scmp.lt.s32.totalorder %s319, 3
      %s321 = scalar_select %p320, %s319, 3
      %s322 = smul.addr %s321, 8
      %s323 = scalar_lea.vmem %s1, %s322
      %s324 = smul.u32 2, %s19
      %s325 = smul.u32 2, %s19
      %p326 = scmp.lt.s32.totalorder %s325, 3
      %s327 = scalar_select %p326, %s325, 3
      %s328 = smul.addr %s327, 8
      %s329 = scalar_lea.vmem %s8, %s328
      %s330 = smul.u32 2, %s19
      %v332 = vld [vmem:[%s317] sm:$0xff]
      %v333 = vld [vmem:[%s317 + $0x8] sm:$0xff]
      %v334 = vld [vmem:[%s317 + $0x10] sm:$0xff]
      %v335 = vld [vmem:[%s317 + $0x18] sm:$0xff]
      %v336 = vld [vmem:[%s317 + $0x20] sm:$0xff]
      %v337 = vld [vmem:[%s317 + $0x28] sm:$0xff]
      %v338 = vld [vmem:[%s317 + $0x30] sm:$0xff]
      %v339 = vld [vmem:[%s317 + $0x38] sm:$0xff]
      %v340 = vld [vmem:[%s317 + $0x40] sm:$0xff]
      %v341 = vld [vmem:[%s317 + $0x48] sm:$0xff]
      %v342 = vld [vmem:[%s317 + $0x50] sm:$0xff]
      %v343 = vld [vmem:[%s317 + $0x58] sm:$0xff]
      %v344 = vld [vmem:[%s317 + $0x60] sm:$0xff]
      %v345 = vld [vmem:[%s317 + $0x68] sm:$0xff]
      %v346 = vld [vmem:[%s317 + $0x70] sm:$0xff]
      %v347 = vld [vmem:[%s317 + $0x78] sm:$0xff]
      %v348 = vld [vmem:[%s317 + $0x80] sm:$0xff]
      %v349 = vld [vmem:[%s317 + $0x88] sm:$0xff]
      %v350 = vld [vmem:[%s317 + $0x90] sm:$0xff]
      %v351 = vld [vmem:[%s317 + $0x98] sm:$0xff]
      %v352 = vld [vmem:[%s317 + $0xa0] sm:$0xff]
      %v353 = vld [vmem:[%s317 + $0xa8] sm:$0xff]
      %v354 = vld [vmem:[%s317 + $0xb0] sm:$0xff]
      %v355 = vld [vmem:[%s317 + $0xb8] sm:$0xff]
      %v356 = vld [vmem:[%s317 + $0xc0] sm:$0xff]
      %v357 = vld [vmem:[%s317 + $0xc8] sm:$0xff]
      %v358 = vld [vmem:[%s317 + $0xd0] sm:$0xff]
      %v359 = vld [vmem:[%s317 + $0xd8] sm:$0xff]
      %v360 = vld [vmem:[%s317 + $0xe0] sm:$0xff]
      %v361 = vld [vmem:[%s317 + $0xe8] sm:$0xff]
      %v362 = vld [vmem:[%s317 + $0xf0] sm:$0xff]
      %v363 = vld [vmem:[%s317 + $0xf8] sm:$0xff]
      %v364 = vlaneseq
      %v365 = vand.u32 %v364, 127
      %366 = vset.pattern.permute.xlu0 0
      %367 = vperm.xlu0 %366, %v332
      %v368 = vpop.permute.xlu0 %367
      %369 = vset.pattern.permute.xlu0 0
      %370 = vperm.xlu0 %369, %v333
      %v371 = vpop.permute.xlu0 %370
      %372 = vset.pattern.permute.xlu0 0
      %373 = vperm.xlu0 %372, %v334
      %v374 = vpop.permute.xlu0 %373
      %375 = vset.pattern.permute.xlu0 0
      %376 = vperm.xlu0 %375, %v335
      %v377 = vpop.permute.xlu0 %376
      %378 = vset.pattern.permute.xlu0 0
      %379 = vperm.xlu0 %378, %v336
      %v380 = vpop.permute.xlu0 %379
      %381 = vset.pattern.permute.xlu0 0
      %382 = vperm.xlu0 %381, %v337
      %v383 = vpop.permute.xlu0 %382
      %384 = vset.pattern.permute.xlu0 0
      %385 = vperm.xlu0 %384, %v338
      %v386 = vpop.permute.xlu0 %385
      %387 = vset.pattern.permute.xlu0 0
      %388 = vperm.xlu0 %387, %v339
      %v389 = vpop.permute.xlu0 %388
      %390 = vset.pattern.permute.xlu0 0
      %391 = vperm.xlu0 %390, %v340
      %v392 = vpop.permute.xlu0 %391
      %393 = vset.pattern.permute.xlu0 0
      %394 = vperm.xlu0 %393, %v341
      %v395 = vpop.permute.xlu0 %394
      %396 = vset.pattern.permute.xlu0 0
      %397 = vperm.xlu0 %396, %v342
      %v398 = vpop.permute.xlu0 %397
      %399 = vset.pattern.permute.xlu0 0
      %400 = vperm.xlu0 %399, %v343
      %v401 = vpop.permute.xlu0 %400
      %402 = vset.pattern.permute.xlu0 0
      %403 = vperm.xlu0 %402, %v344
      %v404 = vpop.permute.xlu0 %403
      %405 = vset.pattern.permute.xlu0 0
      %406 = vperm.xlu0 %405, %v345
      %v407 = vpop.permute.xlu0 %406
      %408 = vset.pattern.permute.xlu0 0
      %409 = vperm.xlu0 %408, %v346
      %v410 = vpop.permute.xlu0 %409
      %411 = vset.pattern.permute.xlu0 0
      %412 = vperm.xlu0 %411, %v347
      %v413 = vpop.permute.xlu0 %412
      %414 = vset.pattern.permute.xlu0 0
      %415 = vperm.xlu0 %414, %v348
      %v416 = vpop.permute.xlu0 %415
      %417 = vset.pattern.permute.xlu0 0
      %418 = vperm.xlu0 %417, %v349
      %v419 = vpop.permute.xlu0 %418
      %420 = vset.pattern.permute.xlu0 0
      %421 = vperm.xlu0 %420, %v350
      %v422 = vpop.permute.xlu0 %421
      %423 = vset.pattern.permute.xlu0 0
      %424 = vperm.xlu0 %423, %v351
      %v425 = vpop.permute.xlu0 %424
      %426 = vset.pattern.permute.xlu0 0
      %427 = vperm.xlu0 %426, %v352
      %v428 = vpop.permute.xlu0 %427
      %429 = vset.pattern.permute.xlu0 0
      %430 = vperm.xlu0 %429, %v353
      %v431 = vpop.permute.xlu0 %430
      %432 = vset.pattern.permute.xlu0 0
      %433 = vperm.xlu0 %432, %v354
      %v434 = vpop.permute.xlu0 %433
      %435 = vset.pattern.permute.xlu0 0
      %436 = vperm.xlu0 %435, %v355
      %v437 = vpop.permute.xlu0 %436
      %438 = vset.pattern.permute.xlu0 0
      %439 = vperm.xlu0 %438, %v356
      %v440 = vpop.permute.xlu0 %439
      %441 = vset.pattern.permute.xlu0 0
      %442 = vperm.xlu0 %441, %v357
      %v443 = vpop.permute.xlu0 %442
      %444 = vset.pattern.permute.xlu0 0
      %445 = vperm.xlu0 %444, %v358
      %v446 = vpop.permute.xlu0 %445
      %447 = vset.pattern.permute.xlu0 0
      %448 = vperm.xlu0 %447, %v359
      %v449 = vpop.permute.xlu0 %448
      %450 = vset.pattern.permute.xlu0 0
      %451 = vperm.xlu0 %450, %v360
      %v452 = vpop.permute.xlu0 %451
      %453 = vset.pattern.permute.xlu0 0
      %454 = vperm.xlu0 %453, %v361
      %v455 = vpop.permute.xlu0 %454
      %456 = vset.pattern.permute.xlu0 0
      %457 = vperm.xlu0 %456, %v362
      %v458 = vpop.permute.xlu0 %457
      %459 = vset.pattern.permute.xlu0 0
      %460 = vperm.xlu0 %459, %v363
      %v461 = vpop.permute.xlu0 %460
      %vm462 = vcmp.eq.s32.totalorder %v368, %v365
      %vm463 = vcmp.eq.s32.totalorder %v371, %v365
      %vm464 = vcmp.eq.s32.totalorder %v374, %v365
      %vm465 = vcmp.eq.s32.totalorder %v377, %v365
      %vm466 = vcmp.eq.s32.totalorder %v380, %v365
      %vm467 = vcmp.eq.s32.totalorder %v383, %v365
      %vm468 = vcmp.eq.s32.totalorder %v386, %v365
      %vm469 = vcmp.eq.s32.totalorder %v389, %v365
      %vm470 = vcmp.eq.s32.totalorder %v392, %v365
      %vm471 = vcmp.eq.s32.totalorder %v395, %v365
      %vm472 = vcmp.eq.s32.totalorder %v398, %v365
      %vm473 = vcmp.eq.s32.totalorder %v401, %v365
      %vm474 = vcmp.eq.s32.totalorder %v404, %v365
      %vm475 = vcmp.eq.s32.totalorder %v407, %v365
      %vm476 = vcmp.eq.s32.totalorder %v410, %v365
      %vm477 = vcmp.eq.s32.totalorder %v413, %v365
      %vm478 = vcmp.eq.s32.totalorder %v416, %v365
      %vm479 = vcmp.eq.s32.totalorder %v419, %v365
      %vm480 = vcmp.eq.s32.totalorder %v422, %v365
      %vm481 = vcmp.eq.s32.totalorder %v425, %v365
      %vm482 = vcmp.eq.s32.totalorder %v428, %v365
      %vm483 = vcmp.eq.s32.totalorder %v431, %v365
      %vm484 = vcmp.eq.s32.totalorder %v434, %v365
      %vm485 = vcmp.eq.s32.totalorder %v437, %v365
      %vm486 = vcmp.eq.s32.totalorder %v440, %v365
      %vm487 = vcmp.eq.s32.totalorder %v443, %v365
      %vm488 = vcmp.eq.s32.totalorder %v446, %v365
      %vm489 = vcmp.eq.s32.totalorder %v449, %v365
      %vm490 = vcmp.eq.s32.totalorder %v452, %v365
      %vm491 = vcmp.eq.s32.totalorder %v455, %v365
      %vm492 = vcmp.eq.s32.totalorder %v458, %v365
      %vm493 = vcmp.eq.s32.totalorder %v461, %v365
      %v494 = vsel %vm462, 1.0, 0.0
      %v495 = vsel %vm463, 1.0, 0.0
      %v496 = vsel %vm464, 1.0, 0.0
      %v497 = vsel %vm465, 1.0, 0.0
      %v498 = vsel %vm466, 1.0, 0.0
      %v499 = vsel %vm467, 1.0, 0.0
      %v500 = vsel %vm468, 1.0, 0.0
      %v501 = vsel %vm469, 1.0, 0.0
      %v502 = vsel %vm470, 1.0, 0.0
      %v503 = vsel %vm471, 1.0, 0.0
      %v504 = vsel %vm472, 1.0, 0.0
      %v505 = vsel %vm473, 1.0, 0.0
      %v506 = vsel %vm474, 1.0, 0.0
      %v507 = vsel %vm475, 1.0, 0.0
      %v508 = vsel %vm476, 1.0, 0.0
      %v509 = vsel %vm477, 1.0, 0.0
      %v510 = vsel %vm478, 1.0, 0.0
      %v511 = vsel %vm479, 1.0, 0.0
      %v512 = vsel %vm480, 1.0, 0.0
      %v513 = vsel %vm481, 1.0, 0.0
      %v514 = vsel %vm482, 1.0, 0.0
      %v515 = vsel %vm483, 1.0, 0.0
      %v516 = vsel %vm484, 1.0, 0.0
      %v517 = vsel %vm485, 1.0, 0.0
      %v518 = vsel %vm486, 1.0, 0.0
      %v519 = vsel %vm487, 1.0, 0.0
      %v520 = vsel %vm488, 1.0, 0.0
      %v521 = vsel %vm489, 1.0, 0.0
      %v522 = vsel %vm490, 1.0, 0.0
      %v523 = vsel %vm491, 1.0, 0.0
      %v524 = vsel %vm492, 1.0, 0.0
      %v525 = vsel %vm493, 1.0, 0.0
      %v526 = vpack.c.bf16 %v495, %v494
      %v527 = vpack.c.bf16 %v497, %v496
      %v528 = vpack.c.bf16 %v499, %v498
      %v529 = vpack.c.bf16 %v501, %v500
      %v530 = vpack.c.bf16 %v503, %v502
      %v531 = vpack.c.bf16 %v505, %v504
      %v532 = vpack.c.bf16 %v507, %v506
      %v533 = vpack.c.bf16 %v509, %v508
      %v534 = vpack.c.bf16 %v511, %v510
      %v535 = vpack.c.bf16 %v513, %v512
      %v536 = vpack.c.bf16 %v515, %v514
      %v537 = vpack.c.bf16 %v517, %v516
      %v538 = vpack.c.bf16 %v519, %v518
      %v539 = vpack.c.bf16 %v521, %v520
      %v540 = vpack.c.bf16 %v523, %v522
      %v541 = vpack.c.bf16 %v525, %v524
      %v542 = vld [vmem:[%s2] sm:$0xf]
      %v543 = vld [vmem:[%s2 + $0x4] sm:$0xf]
      %v544 = vld [vmem:[%s2 + $0x8] sm:$0xf]
      %v545 = vld [vmem:[%s2 + $0xc] sm:$0xf]
      %v546 = vld [vmem:[%s2 + $0x10] sm:$0xf]
      %v547 = vld [vmem:[%s2 + $0x14] sm:$0xf]
      %v548 = vld [vmem:[%s2 + $0x18] sm:$0xf]
      %v549 = vld [vmem:[%s2 + $0x1c] sm:$0xf]
      %v550 = vld [vmem:[%s2 + $0x20] sm:$0xf]
      %v551 = vld [vmem:[%s2 + $0x24] sm:$0xf]
      %v552 = vld [vmem:[%s2 + $0x28] sm:$0xf]
      %v553 = vld [vmem:[%s2 + $0x2c] sm:$0xf]
      %v554 = vld [vmem:[%s2 + $0x30] sm:$0xf]
      %v555 = vld [vmem:[%s2 + $0x34] sm:$0xf]
      %v556 = vld [vmem:[%s2 + $0x38] sm:$0xf]
      %v557 = vld [vmem:[%s2 + $0x3c] sm:$0xf]
      %v574 = vunpack.c.l.b16 %v542
      %v575 = vunpack.c.l.b16 %v543
      %v576 = vunpack.c.l.b16 %v544
      %v577 = vunpack.c.l.b16 %v545
      %v578 = vunpack.c.l.b16 %v546
      %v579 = vunpack.c.l.b16 %v547
      %v580 = vunpack.c.l.b16 %v548
      %v581 = vunpack.c.l.b16 %v549
      %v582 = vunpack.c.l.b16 %v550
      %v583 = vunpack.c.l.b16 %v551
      %v584 = vunpack.c.l.b16 %v552
      %v585 = vunpack.c.l.b16 %v553
      %v586 = vunpack.c.l.b16 %v554
      %v587 = vunpack.c.l.b16 %v555
      %v588 = vunpack.c.l.b16 %v556
      %v589 = vunpack.c.l.b16 %v557
      %v590 = vpack.c.b16 %v575, %v574
      %v591 = vpack.c.b16 %v577, %v576
      %v592 = vpack.c.b16 %v579, %v578
      %v593 = vpack.c.b16 %v581, %v580
      %v594 = vpack.c.b16 %v583, %v582
      %v595 = vpack.c.b16 %v585, %v584
      %v596 = vpack.c.b16 %v587, %v586
      %v597 = vpack.c.b16 %v589, %v588
      %606 = vmatpush.bf16.msra.mxu0 %v597
      %607 = vmatpush.bf16.msra.mxu0 %v596
      %608 = vmatpush.bf16.msra.mxu0 %v595
      %609 = vmatpush.bf16.msra.mxu0 %v594
      %610 = vmatpush.bf16.msra.mxu0 %v593
      %611 = vmatpush.bf16.msra.mxu0 %v592
      %612 = vmatpush.bf16.msra.mxu0 %v591
      %613 = vmatpush.bf16.msra.mxu0 %v590
      %614 = vmatmul.bf16.gmra.mxu0 %v526
      %v615 = vpop.f32.mrf.mxu0
      %v616 = vadd.f32 0.0, %v615
      %v617 = vpop.f32.mrf.mxu0
      %v618 = vadd.f32 0.0, %v617
      %619 = vmatmul.bf16.gmra.mxu0 %v527
      %v620 = vpop.f32.mrf.mxu0
      %v621 = vadd.f32 0.0, %v620
      %v622 = vpop.f32.mrf.mxu0
      %v623 = vadd.f32 0.0, %v622
      %624 = vmatmul.bf16.gmra.mxu0 %v528
      %v625 = vpop.f32.mrf.mxu0
      %v626 = vadd.f32 0.0, %v625
      %v627 = vpop.f32.mrf.mxu0
      %v628 = vadd.f32 0.0, %v627
      %629 = vmatmul.bf16.gmra.mxu0 %v529
      %v630 = vpop.f32.mrf.mxu0
      %v631 = vadd.f32 0.0, %v630
      %v632 = vpop.f32.mrf.mxu0
      %v633 = vadd.f32 0.0, %v632
      %634 = vmatmul.bf16.gmra.mxu0 %v530
      %v635 = vpop.f32.mrf.mxu0
      %v636 = vadd.f32 0.0, %v635
      %v637 = vpop.f32.mrf.mxu0
      %v638 = vadd.f32 0.0, %v637
      %639 = vmatmul.bf16.gmra.mxu0 %v531
      %v640 = vpop.f32.mrf.mxu0
      %v641 = vadd.f32 0.0, %v640
      %v642 = vpop.f32.mrf.mxu0
      %v643 = vadd.f32 0.0, %v642
      %644 = vmatmul.bf16.gmra.mxu0 %v532
      %v645 = vpop.f32.mrf.mxu0
      %v646 = vadd.f32 0.0, %v645
      %v647 = vpop.f32.mrf.mxu0
      %v648 = vadd.f32 0.0, %v647
      %649 = vmatmul.bf16.gmra.mxu0 %v533
      %v650 = vpop.f32.mrf.mxu0
      %v651 = vadd.f32 0.0, %v650
      %v652 = vpop.f32.mrf.mxu0
      %v653 = vadd.f32 0.0, %v652
      %654 = vmatmul.bf16.gmra.mxu0 %v534
      %v655 = vpop.f32.mrf.mxu0
      %v656 = vadd.f32 0.0, %v655
      %v657 = vpop.f32.mrf.mxu0
      %v658 = vadd.f32 0.0, %v657
      %659 = vmatmul.bf16.gmra.mxu0 %v535
      %v660 = vpop.f32.mrf.mxu0
      %v661 = vadd.f32 0.0, %v660
      %v662 = vpop.f32.mrf.mxu0
      %v663 = vadd.f32 0.0, %v662
      %664 = vmatmul.bf16.gmra.mxu0 %v536
      %v665 = vpop.f32.mrf.mxu0
      %v666 = vadd.f32 0.0, %v665
      %v667 = vpop.f32.mrf.mxu0
      %v668 = vadd.f32 0.0, %v667
      %669 = vmatmul.bf16.gmra.mxu0 %v537
      %v670 = vpop.f32.mrf.mxu0
      %v671 = vadd.f32 0.0, %v670
      %v672 = vpop.f32.mrf.mxu0
      %v673 = vadd.f32 0.0, %v672
      %674 = vmatmul.bf16.gmra.mxu0 %v538
      %v675 = vpop.f32.mrf.mxu0
      %v676 = vadd.f32 0.0, %v675
      %v677 = vpop.f32.mrf.mxu0
      %v678 = vadd.f32 0.0, %v677
      %679 = vmatmul.bf16.gmra.mxu0 %v539
      %v680 = vpop.f32.mrf.mxu0
      %v681 = vadd.f32 0.0, %v680
      %v682 = vpop.f32.mrf.mxu0
      %v683 = vadd.f32 0.0, %v682
      %684 = vmatmul.bf16.gmra.mxu0 %v540
      %v685 = vpop.f32.mrf.mxu0
      %v686 = vadd.f32 0.0, %v685
      %v687 = vpop.f32.mrf.mxu0
      %v688 = vadd.f32 0.0, %v687
      %689 = vmatmul.bf16.gmra.mxu0 %v541
      %v690 = vpop.f32.mrf.mxu0
      %v691 = vadd.f32 0.0, %v690
      %v692 = vpop.f32.mrf.mxu0
      %v693 = vadd.f32 0.0, %v692
      %694 = vdwg.mxu0
      %vm727 = vcmask 1040384
      %v728 = vrot.slane %v616, 7
      %v729 = vrot.slane %v618, 7
      %v730 = vsel %vm727, %v728, %v729
      %v731 = vrot.slane %v621, 7
      %v732 = vrot.slane %v623, 7
      %v733 = vsel %vm727, %v731, %v732
      %v734 = vrot.slane %v626, 7
      %v735 = vrot.slane %v628, 7
      %v736 = vsel %vm727, %v734, %v735
      %v737 = vrot.slane %v631, 7
      %v738 = vrot.slane %v633, 7
      %v739 = vsel %vm727, %v737, %v738
      %v740 = vrot.slane %v636, 7
      %v741 = vrot.slane %v638, 7
      %v742 = vsel %vm727, %v740, %v741
      %v743 = vrot.slane %v641, 7
      %v744 = vrot.slane %v643, 7
      %v745 = vsel %vm727, %v743, %v744
      %v746 = vrot.slane %v646, 7
      %v747 = vrot.slane %v648, 7
      %v748 = vsel %vm727, %v746, %v747
      %v749 = vrot.slane %v651, 7
      %v750 = vrot.slane %v653, 7
      %v751 = vsel %vm727, %v749, %v750
      %v752 = vrot.slane %v656, 7
      %v753 = vrot.slane %v658, 7
      %v754 = vsel %vm727, %v752, %v753
      %v755 = vrot.slane %v661, 7
      %v756 = vrot.slane %v663, 7
      %v757 = vsel %vm727, %v755, %v756
      %v758 = vrot.slane %v666, 7
      %v759 = vrot.slane %v668, 7
      %v760 = vsel %vm727, %v758, %v759
      %v761 = vrot.slane %v671, 7
      %v762 = vrot.slane %v673, 7
      %v763 = vsel %vm727, %v761, %v762
      %v764 = vrot.slane %v676, 7
      %v765 = vrot.slane %v678, 7
      %v766 = vsel %vm727, %v764, %v765
      %v767 = vrot.slane %v681, 7
      %v768 = vrot.slane %v683, 7
      %v769 = vsel %vm727, %v767, %v768
      %v770 = vrot.slane %v686, 7
      %v771 = vrot.slane %v688, 7
      %v772 = vsel %vm727, %v770, %v771
      %v773 = vrot.slane %v691, 7
      %v774 = vrot.slane %v693, 7
      %v775 = vsel %vm727, %v773, %v774
      %v824 = vsel %vm727, 0.0, %v728
      %v825 = vsel %vm727, 0.0, %v731
      %v826 = vsel %vm727, 0.0, %v734
      %v827 = vsel %vm727, 0.0, %v737
      %v828 = vsel %vm727, 0.0, %v740
      %v829 = vsel %vm727, 0.0, %v743
      %v830 = vsel %vm727, 0.0, %v746
      %v831 = vsel %vm727, 0.0, %v749
      %v832 = vsel %vm727, 0.0, %v752
      %v833 = vsel %vm727, 0.0, %v755
      %v834 = vsel %vm727, 0.0, %v758
      %v835 = vsel %vm727, 0.0, %v761
      %v836 = vsel %vm727, 0.0, %v764
      %v837 = vsel %vm727, 0.0, %v767
      %v838 = vsel %vm727, 0.0, %v770
      %v839 = vsel %vm727, 0.0, %v773
      %v840 = vsel %vm727, %v729, 0.0
      %v841 = vsel %vm727, %v732, 0.0
      %v842 = vsel %vm727, %v735, 0.0
      %v843 = vsel %vm727, %v738, 0.0
      %v844 = vsel %vm727, %v741, 0.0
      %v845 = vsel %vm727, %v744, 0.0
      %v846 = vsel %vm727, %v747, 0.0
      %v847 = vsel %vm727, %v750, 0.0
      %v848 = vsel %vm727, %v753, 0.0
      %v849 = vsel %vm727, %v756, 0.0
      %v850 = vsel %vm727, %v759, 0.0
      %v851 = vsel %vm727, %v762, 0.0
      %v852 = vsel %vm727, %v765, 0.0
      %v853 = vsel %vm727, %v768, 0.0
      %v854 = vsel %vm727, %v771, 0.0
      %v855 = vsel %vm727, %v774, 0.0
      %vm888 = vcmask 1046528
      %v889 = vrot.slane %v824, 1
      %v890 = vrot.slane %v730, 1
      %v891 = vsel %vm888, %v889, %v890
      %v892 = vrot.slane %v840, 1
      %v893 = vsel %vm888, %v890, %v892
      %v894 = vrot.slane %v825, 1
      %v895 = vrot.slane %v733, 1
      %v896 = vsel %vm888, %v894, %v895
      %v897 = vrot.slane %v841, 1
      %v898 = vsel %vm888, %v895, %v897
      %v899 = vrot.slane %v826, 1
      %v900 = vrot.slane %v736, 1
      %v901 = vsel %vm888, %v899, %v900
      %v902 = vrot.slane %v842, 1
      %v903 = vsel %vm888, %v900, %v902
      %v904 = vrot.slane %v827, 1
      %v905 = vrot.slane %v739, 1
      %v906 = vsel %vm888, %v904, %v905
      %v907 = vrot.slane %v843, 1
      %v908 = vsel %vm888, %v905, %v907
      %v909 = vrot.slane %v828, 1
      %v910 = vrot.slane %v742, 1
      %v911 = vsel %vm888, %v909, %v910
      %v912 = vrot.slane %v844, 1
      %v913 = vsel %vm888, %v910, %v912
      %v914 = vrot.slane %v829, 1
      %v915 = vrot.slane %v745, 1
      %v916 = vsel %vm888, %v914, %v915
      %v917 = vrot.slane %v845, 1
      %v918 = vsel %vm888, %v915, %v917
      %v919 = vrot.slane %v830, 1
      %v920 = vrot.slane %v748, 1
      %v921 = vsel %vm888, %v919, %v920
      %v922 = vrot.slane %v846, 1
      %v923 = vsel %vm888, %v920, %v922
      %v924 = vrot.slane %v831, 1
      %v925 = vrot.slane %v751, 1
      %v926 = vsel %vm888, %v924, %v925
      %v927 = vrot.slane %v847, 1
      %v928 = vsel %vm888, %v925, %v927
      %v929 = vrot.slane %v832, 1
      %v930 = vrot.slane %v754, 1
      %v931 = vsel %vm888, %v929, %v930
      %v932 = vrot.slane %v848, 1
      %v933 = vsel %vm888, %v930, %v932
      %v934 = vrot.slane %v833, 1
      %v935 = vrot.slane %v757, 1
      %v936 = vsel %vm888, %v934, %v935
      %v937 = vrot.slane %v849, 1
      %v938 = vsel %vm888, %v935, %v937
      %v939 = vrot.slane %v834, 1
      %v940 = vrot.slane %v760, 1
      %v941 = vsel %vm888, %v939, %v940
      %v942 = vrot.slane %v850, 1
      %v943 = vsel %vm888, %v940, %v942
      %v944 = vrot.slane %v835, 1
      %v945 = vrot.slane %v763, 1
      %v946 = vsel %vm888, %v944, %v945
      %v947 = vrot.slane %v851, 1
      %v948 = vsel %vm888, %v945, %v947
      %v949 = vrot.slane %v836, 1
      %v950 = vrot.slane %v766, 1
      %v951 = vsel %vm888, %v949, %v950
      %v952 = vrot.slane %v852, 1
      %v953 = vsel %vm888, %v950, %v952
      %v954 = vrot.slane %v837, 1
      %v955 = vrot.slane %v769, 1
      %v956 = vsel %vm888, %v954, %v955
      %v957 = vrot.slane %v853, 1
      %v958 = vsel %vm888, %v955, %v957
      %v959 = vrot.slane %v838, 1
      %v960 = vrot.slane %v772, 1
      %v961 = vsel %vm888, %v959, %v960
      %v962 = vrot.slane %v854, 1
      %v963 = vsel %vm888, %v960, %v962
      %v964 = vrot.slane %v839, 1
      %v965 = vrot.slane %v775, 1
      %v966 = vsel %vm888, %v964, %v965
      %v967 = vrot.slane %v855, 1
      %v968 = vsel %vm888, %v965, %v967
      %969 = vrot.lane.b32.xlu0 %v891, 32
      %v970 = vpop.permute.xlu0 %969
      %971 = vrot.lane.b32.xlu0 %v893, 32
      %v972 = vpop.permute.xlu0 %971
      %973 = vrot.lane.b32.xlu0 %v896, 32
      %v974 = vpop.permute.xlu0 %973
      %975 = vrot.lane.b32.xlu0 %v898, 32
      %v976 = vpop.permute.xlu0 %975
      %977 = vrot.lane.b32.xlu0 %v901, 32
      %v978 = vpop.permute.xlu0 %977
      %979 = vrot.lane.b32.xlu0 %v903, 32
      %v980 = vpop.permute.xlu0 %979
      %981 = vrot.lane.b32.xlu0 %v906, 32
      %v982 = vpop.permute.xlu0 %981
      %983 = vrot.lane.b32.xlu0 %v908, 32
      %v984 = vpop.permute.xlu0 %983
      %985 = vrot.lane.b32.xlu0 %v911, 32
      %v986 = vpop.permute.xlu0 %985
      %987 = vrot.lane.b32.xlu0 %v913, 32
      %v988 = vpop.permute.xlu0 %987
      %989 = vrot.lane.b32.xlu0 %v916, 32
      %v990 = vpop.permute.xlu0 %989
      %991 = vrot.lane.b32.xlu0 %v918, 32
      %v992 = vpop.permute.xlu0 %991
      %993 = vrot.lane.b32.xlu0 %v921, 32
      %v994 = vpop.permute.xlu0 %993
      %995 = vrot.lane.b32.xlu0 %v923, 32
      %v996 = vpop.permute.xlu0 %995
      %997 = vrot.lane.b32.xlu0 %v926, 32
      %v998 = vpop.permute.xlu0 %997
      %999 = vrot.lane.b32.xlu0 %v928, 32
      %v1000 = vpop.permute.xlu0 %999
      %1001 = vrot.lane.b32.xlu0 %v931, 32
      %v1002 = vpop.permute.xlu0 %1001
      %1003 = vrot.lane.b32.xlu0 %v933, 32
      %v1004 = vpop.permute.xlu0 %1003
      %1005 = vrot.lane.b32.xlu0 %v936, 32
      %v1006 = vpop.permute.xlu0 %1005
      %1007 = vrot.lane.b32.xlu0 %v938, 32
      %v1008 = vpop.permute.xlu0 %1007
      %1009 = vrot.lane.b32.xlu0 %v941, 32
      %v1010 = vpop.permute.xlu0 %1009
      %1011 = vrot.lane.b32.xlu0 %v943, 32
      %v1012 = vpop.permute.xlu0 %1011
      %1013 = vrot.lane.b32.xlu0 %v946, 32
      %v1014 = vpop.permute.xlu0 %1013
      %1015 = vrot.lane.b32.xlu0 %v948, 32
      %v1016 = vpop.permute.xlu0 %1015
      %1017 = vrot.lane.b32.xlu0 %v951, 32
      %v1018 = vpop.permute.xlu0 %1017
      %1019 = vrot.lane.b32.xlu0 %v953, 32
      %v1020 = vpop.permute.xlu0 %1019
      %1021 = vrot.lane.b32.xlu0 %v956, 32
      %v1022 = vpop.permute.xlu0 %1021
      %1023 = vrot.lane.b32.xlu0 %v958, 32
      %v1024 = vpop.permute.xlu0 %1023
      %1025 = vrot.lane.b32.xlu0 %v961, 32
      %v1026 = vpop.permute.xlu0 %1025
      %1027 = vrot.lane.b32.xlu0 %v963, 32
      %v1028 = vpop.permute.xlu0 %1027
      %1029 = vrot.lane.b32.xlu0 %v966, 32
      %v1030 = vpop.permute.xlu0 %1029
      %1031 = vrot.lane.b32.xlu0 %v968, 32
      %v1032 = vpop.permute.xlu0 %1031
      %vm1065 = vcmask 1045504
      %v1066 = vrot.slane %v824, 2
      %v1067 = vrot.slane %v730, 2
      %v1068 = vsel %vm1065, %v1066, %v1067
      %v1069 = vrot.slane %v840, 2
      %v1070 = vsel %vm1065, %v1067, %v1069
      %v1071 = vrot.slane %v825, 2
      %v1072 = vrot.slane %v733, 2
      %v1073 = vsel %vm1065, %v1071, %v1072
      %v1074 = vrot.slane %v841, 2
      %v1075 = vsel %vm1065, %v1072, %v1074
      %v1076 = vrot.slane %v826, 2
      %v1077 = vrot.slane %v736, 2
      %v1078 = vsel %vm1065, %v1076, %v1077
      %v1079 = vrot.slane %v842, 2
      %v1080 = vsel %vm1065, %v1077, %v1079
      %v1081 = vrot.slane %v827, 2
      %v1082 = vrot.slane %v739, 2
      %v1083 = vsel %vm1065, %v1081, %v1082
      %v1084 = vrot.slane %v843, 2
      %v1085 = vsel %vm1065, %v1082, %v1084
      %v1086 = vrot.slane %v828, 2
      %v1087 = vrot.slane %v742, 2
      %v1088 = vsel %vm1065, %v1086, %v1087
      %v1089 = vrot.slane %v844, 2
      %v1090 = vsel %vm1065, %v1087, %v1089
      %v1091 = vrot.slane %v829, 2
      %v1092 = vrot.slane %v745, 2
      %v1093 = vsel %vm1065, %v1091, %v1092
      %v1094 = vrot.slane %v845, 2
      %v1095 = vsel %vm1065, %v1092, %v1094
      %v1096 = vrot.slane %v830, 2
      %v1097 = vrot.slane %v748, 2
      %v1098 = vsel %vm1065, %v1096, %v1097
      %v1099 = vrot.slane %v846, 2
      %v1100 = vsel %vm1065, %v1097, %v1099
      %v1101 = vrot.slane %v831, 2
      %v1102 = vrot.slane %v751, 2
      %v1103 = vsel %vm1065, %v1101, %v1102
      %v1104 = vrot.slane %v847, 2
      %v1105 = vsel %vm1065, %v1102, %v1104
      %v1106 = vrot.slane %v832, 2
      %v1107 = vrot.slane %v754, 2
      %v1108 = vsel %vm1065, %v1106, %v1107
      %v1109 = vrot.slane %v848, 2
      %v1110 = vsel %vm1065, %v1107, %v1109
      %v1111 = vrot.slane %v833, 2
      %v1112 = vrot.slane %v757, 2
      %v1113 = vsel %vm1065, %v1111, %v1112
      %v1114 = vrot.slane %v849, 2
      %v1115 = vsel %vm1065, %v1112, %v1114
      %v1116 = vrot.slane %v834, 2
      %v1117 = vrot.slane %v760, 2
      %v1118 = vsel %vm1065, %v1116, %v1117
      %v1119 = vrot.slane %v850, 2
      %v1120 = vsel %vm1065, %v1117, %v1119
      %v1121 = vrot.slane %v835, 2
      %v1122 = vrot.slane %v763, 2
      %v1123 = vsel %vm1065, %v1121, %v1122
      %v1124 = vrot.slane %v851, 2
      %v1125 = vsel %vm1065, %v1122, %v1124
      %v1126 = vrot.slane %v836, 2
      %v1127 = vrot.slane %v766, 2
      %v1128 = vsel %vm1065, %v1126, %v1127
      %v1129 = vrot.slane %v852, 2
      %v1130 = vsel %vm1065, %v1127, %v1129
      %v1131 = vrot.slane %v837, 2
      %v1132 = vrot.slane %v769, 2
      %v1133 = vsel %vm1065, %v1131, %v1132
      %v1134 = vrot.slane %v853, 2
      %v1135 = vsel %vm1065, %v1132, %v1134
      %v1136 = vrot.slane %v838, 2
      %v1137 = vrot.slane %v772, 2
      %v1138 = vsel %vm1065, %v1136, %v1137
      %v1139 = vrot.slane %v854, 2
      %v1140 = vsel %vm1065, %v1137, %v1139
      %v1141 = vrot.slane %v839, 2
      %v1142 = vrot.slane %v775, 2
      %v1143 = vsel %vm1065, %v1141, %v1142
      %v1144 = vrot.slane %v855, 2
      %v1145 = vsel %vm1065, %v1142, %v1144
      %1146 = vrot.lane.b32.xlu0 %v1068, 64
      %v1147 = vpop.permute.xlu0 %1146
      %1148 = vrot.lane.b32.xlu0 %v1070, 64
      %v1149 = vpop.permute.xlu0 %1148
      %1150 = vrot.lane.b32.xlu0 %v1073, 64
      %v1151 = vpop.permute.xlu0 %1150
      %1152 = vrot.lane.b32.xlu0 %v1075, 64
      %v1153 = vpop.permute.xlu0 %1152
      %1154 = vrot.lane.b32.xlu0 %v1078, 64
      %v1155 = vpop.permute.xlu0 %1154
      %1156 = vrot.lane.b32.xlu0 %v1080, 64
      %v1157 = vpop.permute.xlu0 %1156
      %1158 = vrot.lane.b32.xlu0 %v1083, 64
      %v1159 = vpop.permute.xlu0 %1158
      %1160 = vrot.lane.b32.xlu0 %v1085, 64
      %v1161 = vpop.permute.xlu0 %1160
      %1162 = vrot.lane.b32.xlu0 %v1088, 64
      %v1163 = vpop.permute.xlu0 %1162
      %1164 = vrot.lane.b32.xlu0 %v1090, 64
      %v1165 = vpop.permute.xlu0 %1164
      %1166 = vrot.lane.b32.xlu0 %v1093, 64
      %v1167 = vpop.permute.xlu0 %1166
      %1168 = vrot.lane.b32.xlu0 %v1095, 64
      %v1169 = vpop.permute.xlu0 %1168
      %1170 = vrot.lane.b32.xlu0 %v1098, 64
      %v1171 = vpop.permute.xlu0 %1170
      %1172 = vrot.lane.b32.xlu0 %v1100, 64
      %v1173 = vpop.permute.xlu0 %1172
      %1174 = vrot.lane.b32.xlu0 %v1103, 64
      %v1175 = vpop.permute.xlu0 %1174
      %1176 = vrot.lane.b32.xlu0 %v1105, 64
      %v1177 = vpop.permute.xlu0 %1176
      %1178 = vrot.lane.b32.xlu0 %v1108, 64
      %v1179 = vpop.permute.xlu0 %1178
      %1180 = vrot.lane.b32.xlu0 %v1110, 64
      %v1181 = vpop.permute.xlu0 %1180
      %1182 = vrot.lane.b32.xlu0 %v1113, 64
      %v1183 = vpop.permute.xlu0 %1182
      %1184 = vrot.lane.b32.xlu0 %v1115, 64
      %v1185 = vpop.permute.xlu0 %1184
      %1186 = vrot.lane.b32.xlu0 %v1118, 64
      %v1187 = vpop.permute.xlu0 %1186
      %1188 = vrot.lane.b32.xlu0 %v1120, 64
      %v1189 = vpop.permute.xlu0 %1188
      %1190 = vrot.lane.b32.xlu0 %v1123, 64
      %v1191 = vpop.permute.xlu0 %1190
      %1192 = vrot.lane.b32.xlu0 %v1125, 64
      %v1193 = vpop.permute.xlu0 %1192
      %1194 = vrot.lane.b32.xlu0 %v1128, 64
      %v1195 = vpop.permute.xlu0 %1194
      %1196 = vrot.lane.b32.xlu0 %v1130, 64
      %v1197 = vpop.permute.xlu0 %1196
      %1198 = vrot.lane.b32.xlu0 %v1133, 64
      %v1199 = vpop.permute.xlu0 %1198
      %1200 = vrot.lane.b32.xlu0 %v1135, 64
      %v1201 = vpop.permute.xlu0 %1200
      %1202 = vrot.lane.b32.xlu0 %v1138, 64
      %v1203 = vpop.permute.xlu0 %1202
      %1204 = vrot.lane.b32.xlu0 %v1140, 64
      %v1205 = vpop.permute.xlu0 %1204
      %1206 = vrot.lane.b32.xlu0 %v1143, 64
      %v1207 = vpop.permute.xlu0 %1206
      %1208 = vrot.lane.b32.xlu0 %v1145, 64
      %v1209 = vpop.permute.xlu0 %1208
      %vm1242 = vcmask 261120
      %v1243 = vsel %vm1242, %v824, %v970
      %v1244 = vsel %vm1242, %v730, %v972
      %v1245 = vsel %vm1242, %v825, %v974
      %v1246 = vsel %vm1242, %v733, %v976
      %v1247 = vsel %vm1242, %v826, %v978
      %v1248 = vsel %vm1242, %v736, %v980
      %v1249 = vsel %vm1242, %v827, %v982
      %v1250 = vsel %vm1242, %v739, %v984
      %v1251 = vsel %vm1242, %v828, %v986
      %v1252 = vsel %vm1242, %v742, %v988
      %v1253 = vsel %vm1242, %v829, %v990
      %v1254 = vsel %vm1242, %v745, %v992
      %v1255 = vsel %vm1242, %v830, %v994
      %v1256 = vsel %vm1242, %v748, %v996
      %v1257 = vsel %vm1242, %v831, %v998
      %v1258 = vsel %vm1242, %v751, %v1000
      %v1259 = vsel %vm1242, %v832, %v1002
      %v1260 = vsel %vm1242, %v754, %v1004
      %v1261 = vsel %vm1242, %v833, %v1006
      %v1262 = vsel %vm1242, %v757, %v1008
      %v1263 = vsel %vm1242, %v834, %v1010
      %v1264 = vsel %vm1242, %v760, %v1012
      %v1265 = vsel %vm1242, %v835, %v1014
      %v1266 = vsel %vm1242, %v763, %v1016
      %v1267 = vsel %vm1242, %v836, %v1018
      %v1268 = vsel %vm1242, %v766, %v1020
      %v1269 = vsel %vm1242, %v837, %v1022
      %v1270 = vsel %vm1242, %v769, %v1024
      %v1271 = vsel %vm1242, %v838, %v1026
      %v1272 = vsel %vm1242, %v772, %v1028
      %v1273 = vsel %vm1242, %v839, %v1030
      %v1274 = vsel %vm1242, %v775, %v1032
      %vm1275 = vcmask 523264
      %v1276 = vsel %vm1275, %v1243, %v1147
      %v1277 = vsel %vm1275, %v1244, %v1149
      %v1278 = vsel %vm1275, %v1245, %v1151
      %v1279 = vsel %vm1275, %v1246, %v1153
      %v1280 = vsel %vm1275, %v1247, %v1155
      %v1281 = vsel %vm1275, %v1248, %v1157
      %v1282 = vsel %vm1275, %v1249, %v1159
      %v1283 = vsel %vm1275, %v1250, %v1161
      %v1284 = vsel %vm1275, %v1251, %v1163
      %v1285 = vsel %vm1275, %v1252, %v1165
      %v1286 = vsel %vm1275, %v1253, %v1167
      %v1287 = vsel %vm1275, %v1254, %v1169
      %v1288 = vsel %vm1275, %v1255, %v1171
      %v1289 = vsel %vm1275, %v1256, %v1173
      %v1290 = vsel %vm1275, %v1257, %v1175
      %v1291 = vsel %vm1275, %v1258, %v1177
      %v1292 = vsel %vm1275, %v1259, %v1179
      %v1293 = vsel %vm1275, %v1260, %v1181
      %v1294 = vsel %vm1275, %v1261, %v1183
      %v1295 = vsel %vm1275, %v1262, %v1185
      %v1296 = vsel %vm1275, %v1263, %v1187
      %v1297 = vsel %vm1275, %v1264, %v1189
      %v1298 = vsel %vm1275, %v1265, %v1191
      %v1299 = vsel %vm1275, %v1266, %v1193
      %v1300 = vsel %vm1275, %v1267, %v1195
      %v1301 = vsel %vm1275, %v1268, %v1197
      %v1302 = vsel %vm1275, %v1269, %v1199
      %v1303 = vsel %vm1275, %v1270, %v1201
      %v1304 = vsel %vm1275, %v1271, %v1203
      %v1305 = vsel %vm1275, %v1272, %v1205
      %v1306 = vsel %vm1275, %v1273, %v1207
      %v1307 = vsel %vm1275, %v1274, %v1209
      %v1308 = vpack.c.bf16 %v1277, %v1276
      %v1309 = vpack.c.bf16 %v1279, %v1278
      %v1310 = vpack.c.bf16 %v1281, %v1280
      %v1311 = vpack.c.bf16 %v1283, %v1282
      %v1312 = vpack.c.bf16 %v1285, %v1284
      %v1313 = vpack.c.bf16 %v1287, %v1286
      %v1314 = vpack.c.bf16 %v1289, %v1288
      %v1315 = vpack.c.bf16 %v1291, %v1290
      %v1316 = vpack.c.bf16 %v1293, %v1292
      %v1317 = vpack.c.bf16 %v1295, %v1294
      %v1318 = vpack.c.bf16 %v1297, %v1296
      %v1319 = vpack.c.bf16 %v1299, %v1298
      %v1320 = vpack.c.bf16 %v1301, %v1300
      %v1321 = vpack.c.bf16 %v1303, %v1302
      %v1322 = vpack.c.bf16 %v1305, %v1304
      %v1323 = vpack.c.bf16 %v1307, %v1306
      %v1324 = vld [vmem:[%s4] sm:$0xf]
      %v1325 = vld [vmem:[%s4 + $0x4] sm:$0xf]
      %v1326 = vld [vmem:[%s4 + $0x8] sm:$0xf]
      %v1327 = vld [vmem:[%s4 + $0xc] sm:$0xf]
      %v1328 = vld [vmem:[%s4 + $0x10] sm:$0xf]
      %v1329 = vld [vmem:[%s4 + $0x14] sm:$0xf]
      %v1330 = vld [vmem:[%s4 + $0x18] sm:$0xf]
      %v1331 = vld [vmem:[%s4 + $0x1c] sm:$0xf]
      %v1332 = vld [vmem:[%s4 + $0x20] sm:$0xf]
      %v1333 = vld [vmem:[%s4 + $0x24] sm:$0xf]
      %v1334 = vld [vmem:[%s4 + $0x28] sm:$0xf]
      %v1335 = vld [vmem:[%s4 + $0x2c] sm:$0xf]
      %v1348 = vunpack.c.l.b16 %v1324
      %v1349 = vunpack.c.l.b16 %v1325
      %v1350 = vunpack.c.l.b16 %v1326
      %v1351 = vunpack.c.l.b16 %v1327
      %v1352 = vunpack.c.l.b16 %v1328
      %v1353 = vunpack.c.l.b16 %v1329
      %v1354 = vunpack.c.l.b16 %v1330
      %v1355 = vunpack.c.l.b16 %v1331
      %v1356 = vunpack.c.l.b16 %v1332
      %v1357 = vunpack.c.l.b16 %v1333
      %v1358 = vunpack.c.l.b16 %v1334
      %v1359 = vunpack.c.l.b16 %v1335
      %v1360 = vpack.c.b16 %v1349, %v1348
      %v1361 = vpack.c.b16 %v1351, %v1350
      %v1362 = vpack.c.b16 %v1353, %v1352
      %v1363 = vpack.c.b16 %v1355, %v1354
      %v1364 = vpack.c.b16 %v1357, %v1356
      %v1365 = vpack.c.b16 %v1359, %v1358
      %vm1372 = vcmask 785408
      %v1374 = vsel %vm1372, %v1308, 0
      %v1377 = vsel %vm1372, %v1309, 0
      %v1380 = vsel %vm1372, %v1310, 0
      %v1383 = vsel %vm1372, %v1311, 0
      %v1386 = vsel %vm1372, %v1312, 0
      %v1389 = vsel %vm1372, %v1313, 0
      %v1392 = vsel %vm1372, %v1314, 0
      %v1395 = vsel %vm1372, %v1315, 0
      %v1398 = vsel %vm1372, %v1316, 0
      %v1401 = vsel %vm1372, %v1317, 0
      %v1404 = vsel %vm1372, %v1318, 0
      %v1407 = vsel %vm1372, %v1319, 0
      %v1410 = vsel %vm1372, %v1320, 0
      %v1413 = vsel %vm1372, %v1321, 0
      %v1416 = vsel %vm1372, %v1322, 0
      %v1419 = vsel %vm1372, %v1323, 0
      %1421 = vmatpush.bf16.msra.mxu0 0
      %1422 = vmatpush.bf16.msra.mxu0 0
      %1423 = vmatpush.bf16.msra.mxu0 %v1365
      %1424 = vmatpush.bf16.msra.mxu0 %v1364
      %1425 = vmatpush.bf16.msra.mxu0 %v1363
      %1426 = vmatpush.bf16.msra.mxu0 %v1362
      %1427 = vmatpush.bf16.msra.mxu0 %v1361
      %1428 = vmatpush.bf16.msra.mxu0 %v1360
      %1429 = vmatmul.bf16.gmra.mxu0 %v1374
      %v1430 = vpop.f32.mrf.mxu0
      %v1431 = vadd.f32 0.0, %v1430
      %v1432 = vpop.f32.mrf.mxu0
      %v1433 = vadd.f32 0.0, %v1432
      %1434 = vmatmul.bf16.gmra.mxu0 %v1377
      %v1435 = vpop.f32.mrf.mxu0
      %v1436 = vadd.f32 0.0, %v1435
      %v1437 = vpop.f32.mrf.mxu0
      %v1438 = vadd.f32 0.0, %v1437
      %1439 = vmatmul.bf16.gmra.mxu0 %v1380
      %v1440 = vpop.f32.mrf.mxu0
      %v1441 = vadd.f32 0.0, %v1440
      %v1442 = vpop.f32.mrf.mxu0
      %v1443 = vadd.f32 0.0, %v1442
      %1444 = vmatmul.bf16.gmra.mxu0 %v1383
      %v1445 = vpop.f32.mrf.mxu0
      %v1446 = vadd.f32 0.0, %v1445
      %v1447 = vpop.f32.mrf.mxu0
      %v1448 = vadd.f32 0.0, %v1447
      %1449 = vmatmul.bf16.gmra.mxu0 %v1386
      %v1450 = vpop.f32.mrf.mxu0
      %v1451 = vadd.f32 0.0, %v1450
      %v1452 = vpop.f32.mrf.mxu0
      %v1453 = vadd.f32 0.0, %v1452
      %1454 = vmatmul.bf16.gmra.mxu0 %v1389
      %v1455 = vpop.f32.mrf.mxu0
      %v1456 = vadd.f32 0.0, %v1455
      %v1457 = vpop.f32.mrf.mxu0
      %v1458 = vadd.f32 0.0, %v1457
      %1459 = vmatmul.bf16.gmra.mxu0 %v1392
      %v1460 = vpop.f32.mrf.mxu0
      %v1461 = vadd.f32 0.0, %v1460
      %v1462 = vpop.f32.mrf.mxu0
      %v1463 = vadd.f32 0.0, %v1462
      %1464 = vmatmul.bf16.gmra.mxu0 %v1395
      %v1465 = vpop.f32.mrf.mxu0
      %v1466 = vadd.f32 0.0, %v1465
      %v1467 = vpop.f32.mrf.mxu0
      %v1468 = vadd.f32 0.0, %v1467
      %1469 = vmatmul.bf16.gmra.mxu0 %v1398
      %v1470 = vpop.f32.mrf.mxu0
      %v1471 = vadd.f32 0.0, %v1470
      %v1472 = vpop.f32.mrf.mxu0
      %v1473 = vadd.f32 0.0, %v1472
      %1474 = vmatmul.bf16.gmra.mxu0 %v1401
      %v1475 = vpop.f32.mrf.mxu0
      %v1476 = vadd.f32 0.0, %v1475
      %v1477 = vpop.f32.mrf.mxu0
      %v1478 = vadd.f32 0.0, %v1477
      %1479 = vmatmul.bf16.gmra.mxu0 %v1404
      %v1480 = vpop.f32.mrf.mxu0
      %v1481 = vadd.f32 0.0, %v1480
      %v1482 = vpop.f32.mrf.mxu0
      %v1483 = vadd.f32 0.0, %v1482
      %1484 = vmatmul.bf16.gmra.mxu0 %v1407
      %v1485 = vpop.f32.mrf.mxu0
      %v1486 = vadd.f32 0.0, %v1485
      %v1487 = vpop.f32.mrf.mxu0
      %v1488 = vadd.f32 0.0, %v1487
      %1489 = vmatmul.bf16.gmra.mxu0 %v1410
      %v1490 = vpop.f32.mrf.mxu0
      %v1491 = vadd.f32 0.0, %v1490
      %v1492 = vpop.f32.mrf.mxu0
      %v1493 = vadd.f32 0.0, %v1492
      %1494 = vmatmul.bf16.gmra.mxu0 %v1413
      %v1495 = vpop.f32.mrf.mxu0
      %v1496 = vadd.f32 0.0, %v1495
      %v1497 = vpop.f32.mrf.mxu0
      %v1498 = vadd.f32 0.0, %v1497
      %1499 = vmatmul.bf16.gmra.mxu0 %v1416
      %v1500 = vpop.f32.mrf.mxu0
      %v1501 = vadd.f32 0.0, %v1500
      %v1502 = vpop.f32.mrf.mxu0
      %v1503 = vadd.f32 0.0, %v1502
      %1504 = vmatmul.bf16.gmra.mxu0 %v1419
      %v1505 = vpop.f32.mrf.mxu0
      %v1506 = vadd.f32 0.0, %v1505
      %v1507 = vpop.f32.mrf.mxu0
      %v1508 = vadd.f32 0.0, %v1507
      %1509 = vdwg.mxu0
      %v1510 = vld [vmem:[%s5] sm:$0x1]
      %v1512 = vperm.slane %v1510, 0
      %v1514 = vadd.f32 %v1431, %v1512
      %v1515 = vadd.f32 %v1433, %v1512
      %v1516 = vadd.f32 %v1436, %v1512
      %v1517 = vadd.f32 %v1438, %v1512
      %v1518 = vadd.f32 %v1441, %v1512
      %v1519 = vadd.f32 %v1443, %v1512
      %v1520 = vadd.f32 %v1446, %v1512
      %v1521 = vadd.f32 %v1448, %v1512
      %v1522 = vadd.f32 %v1451, %v1512
      %v1523 = vadd.f32 %v1453, %v1512
      %v1524 = vadd.f32 %v1456, %v1512
      %v1525 = vadd.f32 %v1458, %v1512
      %v1526 = vadd.f32 %v1461, %v1512
      %v1527 = vadd.f32 %v1463, %v1512
      %v1528 = vadd.f32 %v1466, %v1512
      %v1529 = vadd.f32 %v1468, %v1512
      %v1530 = vadd.f32 %v1471, %v1512
      %v1531 = vadd.f32 %v1473, %v1512
      %v1532 = vadd.f32 %v1476, %v1512
      %v1533 = vadd.f32 %v1478, %v1512
      %v1534 = vadd.f32 %v1481, %v1512
      %v1535 = vadd.f32 %v1483, %v1512
      %v1536 = vadd.f32 %v1486, %v1512
      %v1537 = vadd.f32 %v1488, %v1512
      %v1538 = vadd.f32 %v1491, %v1512
      %v1539 = vadd.f32 %v1493, %v1512
      %v1540 = vadd.f32 %v1496, %v1512
      %v1541 = vadd.f32 %v1498, %v1512
      %v1542 = vadd.f32 %v1501, %v1512
      %v1543 = vadd.f32 %v1503, %v1512
      %v1544 = vadd.f32 %v1506, %v1512
      %v1545 = vadd.f32 %v1508, %v1512
      %v1546 = vmax.f32 %v1514, 0.0
      %v1547 = vmax.f32 %v1515, 0.0
      %v1548 = vmax.f32 %v1516, 0.0
      %v1549 = vmax.f32 %v1517, 0.0
      %v1550 = vmax.f32 %v1518, 0.0
      %v1551 = vmax.f32 %v1519, 0.0
      %v1552 = vmax.f32 %v1520, 0.0
      %v1553 = vmax.f32 %v1521, 0.0
      %v1554 = vmax.f32 %v1522, 0.0
      %v1555 = vmax.f32 %v1523, 0.0
      %v1556 = vmax.f32 %v1524, 0.0
      %v1557 = vmax.f32 %v1525, 0.0
      %v1558 = vmax.f32 %v1526, 0.0
      %v1559 = vmax.f32 %v1527, 0.0
      %v1560 = vmax.f32 %v1528, 0.0
      %v1561 = vmax.f32 %v1529, 0.0
      %v1562 = vmax.f32 %v1530, 0.0
      %v1563 = vmax.f32 %v1531, 0.0
      %v1564 = vmax.f32 %v1532, 0.0
      %v1565 = vmax.f32 %v1533, 0.0
      %v1566 = vmax.f32 %v1534, 0.0
      %v1567 = vmax.f32 %v1535, 0.0
      %v1568 = vmax.f32 %v1536, 0.0
      %v1569 = vmax.f32 %v1537, 0.0
      %v1570 = vmax.f32 %v1538, 0.0
      %v1571 = vmax.f32 %v1539, 0.0
      %v1572 = vmax.f32 %v1540, 0.0
      %v1573 = vmax.f32 %v1541, 0.0
      %v1574 = vmax.f32 %v1542, 0.0
      %v1575 = vmax.f32 %v1543, 0.0
      %v1576 = vmax.f32 %v1544, 0.0
      %v1577 = vmax.f32 %v1545, 0.0
      %v1610 = vrot.slane %v1546, 7
      %v1611 = vrot.slane %v1547, 7
      %v1612 = vsel %vm727, %v1610, %v1611
      %v1613 = vrot.slane %v1548, 7
      %v1614 = vrot.slane %v1549, 7
      %v1615 = vsel %vm727, %v1613, %v1614
      %v1616 = vrot.slane %v1550, 7
      %v1617 = vrot.slane %v1551, 7
      %v1618 = vsel %vm727, %v1616, %v1617
      %v1619 = vrot.slane %v1552, 7
      %v1620 = vrot.slane %v1553, 7
      %v1621 = vsel %vm727, %v1619, %v1620
      %v1622 = vrot.slane %v1554, 7
      %v1623 = vrot.slane %v1555, 7
      %v1624 = vsel %vm727, %v1622, %v1623
      %v1625 = vrot.slane %v1556, 7
      %v1626 = vrot.slane %v1557, 7
      %v1627 = vsel %vm727, %v1625, %v1626
      %v1628 = vrot.slane %v1558, 7
      %v1629 = vrot.slane %v1559, 7
      %v1630 = vsel %vm727, %v1628, %v1629
      %v1631 = vrot.slane %v1560, 7
      %v1632 = vrot.slane %v1561, 7
      %v1633 = vsel %vm727, %v1631, %v1632
      %v1634 = vrot.slane %v1562, 7
      %v1635 = vrot.slane %v1563, 7
      %v1636 = vsel %vm727, %v1634, %v1635
      %v1637 = vrot.slane %v1564, 7
      %v1638 = vrot.slane %v1565, 7
      %v1639 = vsel %vm727, %v1637, %v1638
      %v1640 = vrot.slane %v1566, 7
      %v1641 = vrot.slane %v1567, 7
      %v1642 = vsel %vm727, %v1640, %v1641
      %v1643 = vrot.slane %v1568, 7
      %v1644 = vrot.slane %v1569, 7
      %v1645 = vsel %vm727, %v1643, %v1644
      %v1646 = vrot.slane %v1570, 7
      %v1647 = vrot.slane %v1571, 7
      %v1648 = vsel %vm727, %v1646, %v1647
      %v1649 = vrot.slane %v1572, 7
      %v1650 = vrot.slane %v1573, 7
      %v1651 = vsel %vm727, %v1649, %v1650
      %v1652 = vrot.slane %v1574, 7
      %v1653 = vrot.slane %v1575, 7
      %v1654 = vsel %vm727, %v1652, %v1653
      %v1655 = vrot.slane %v1576, 7
      %v1656 = vrot.slane %v1577, 7
      %v1657 = vsel %vm727, %v1655, %v1656
      %v1706 = vsel %vm727, 0.0, %v1610
      %v1707 = vsel %vm727, 0.0, %v1613
      %v1708 = vsel %vm727, 0.0, %v1616
      %v1709 = vsel %vm727, 0.0, %v1619
      %v1710 = vsel %vm727, 0.0, %v1622
      %v1711 = vsel %vm727, 0.0, %v1625
      %v1712 = vsel %vm727, 0.0, %v1628
      %v1713 = vsel %vm727, 0.0, %v1631
      %v1714 = vsel %vm727, 0.0, %v1634
      %v1715 = vsel %vm727, 0.0, %v1637
      %v1716 = vsel %vm727, 0.0, %v1640
      %v1717 = vsel %vm727, 0.0, %v1643
      %v1718 = vsel %vm727, 0.0, %v1646
      %v1719 = vsel %vm727, 0.0, %v1649
      %v1720 = vsel %vm727, 0.0, %v1652
      %v1721 = vsel %vm727, 0.0, %v1655
      %v1722 = vsel %vm727, %v1611, 0.0
      %v1723 = vsel %vm727, %v1614, 0.0
      %v1724 = vsel %vm727, %v1617, 0.0
      %v1725 = vsel %vm727, %v1620, 0.0
      %v1726 = vsel %vm727, %v1623, 0.0
      %v1727 = vsel %vm727, %v1626, 0.0
      %v1728 = vsel %vm727, %v1629, 0.0
      %v1729 = vsel %vm727, %v1632, 0.0
      %v1730 = vsel %vm727, %v1635, 0.0
      %v1731 = vsel %vm727, %v1638, 0.0
      %v1732 = vsel %vm727, %v1641, 0.0
      %v1733 = vsel %vm727, %v1644, 0.0
      %v1734 = vsel %vm727, %v1647, 0.0
      %v1735 = vsel %vm727, %v1650, 0.0
      %v1736 = vsel %vm727, %v1653, 0.0
      %v1737 = vsel %vm727, %v1656, 0.0
      %v1770 = vrot.slane %v1706, 1
      %v1771 = vrot.slane %v1612, 1
      %v1772 = vsel %vm888, %v1770, %v1771
      %v1773 = vrot.slane %v1722, 1
      %v1774 = vsel %vm888, %v1771, %v1773
      %v1775 = vrot.slane %v1707, 1
      %v1776 = vrot.slane %v1615, 1
      %v1777 = vsel %vm888, %v1775, %v1776
      %v1778 = vrot.slane %v1723, 1
      %v1779 = vsel %vm888, %v1776, %v1778
      %v1780 = vrot.slane %v1708, 1
      %v1781 = vrot.slane %v1618, 1
      %v1782 = vsel %vm888, %v1780, %v1781
      %v1783 = vrot.slane %v1724, 1
      %v1784 = vsel %vm888, %v1781, %v1783
      %v1785 = vrot.slane %v1709, 1
      %v1786 = vrot.slane %v1621, 1
      %v1787 = vsel %vm888, %v1785, %v1786
      %v1788 = vrot.slane %v1725, 1
      %v1789 = vsel %vm888, %v1786, %v1788
      %v1790 = vrot.slane %v1710, 1
      %v1791 = vrot.slane %v1624, 1
      %v1792 = vsel %vm888, %v1790, %v1791
      %v1793 = vrot.slane %v1726, 1
      %v1794 = vsel %vm888, %v1791, %v1793
      %v1795 = vrot.slane %v1711, 1
      %v1796 = vrot.slane %v1627, 1
      %v1797 = vsel %vm888, %v1795, %v1796
      %v1798 = vrot.slane %v1727, 1
      %v1799 = vsel %vm888, %v1796, %v1798
      %v1800 = vrot.slane %v1712, 1
      %v1801 = vrot.slane %v1630, 1
      %v1802 = vsel %vm888, %v1800, %v1801
      %v1803 = vrot.slane %v1728, 1
      %v1804 = vsel %vm888, %v1801, %v1803
      %v1805 = vrot.slane %v1713, 1
      %v1806 = vrot.slane %v1633, 1
      %v1807 = vsel %vm888, %v1805, %v1806
      %v1808 = vrot.slane %v1729, 1
      %v1809 = vsel %vm888, %v1806, %v1808
      %v1810 = vrot.slane %v1714, 1
      %v1811 = vrot.slane %v1636, 1
      %v1812 = vsel %vm888, %v1810, %v1811
      %v1813 = vrot.slane %v1730, 1
      %v1814 = vsel %vm888, %v1811, %v1813
      %v1815 = vrot.slane %v1715, 1
      %v1816 = vrot.slane %v1639, 1
      %v1817 = vsel %vm888, %v1815, %v1816
      %v1818 = vrot.slane %v1731, 1
      %v1819 = vsel %vm888, %v1816, %v1818
      %v1820 = vrot.slane %v1716, 1
      %v1821 = vrot.slane %v1642, 1
      %v1822 = vsel %vm888, %v1820, %v1821
      %v1823 = vrot.slane %v1732, 1
      %v1824 = vsel %vm888, %v1821, %v1823
      %v1825 = vrot.slane %v1717, 1
      %v1826 = vrot.slane %v1645, 1
      %v1827 = vsel %vm888, %v1825, %v1826
      %v1828 = vrot.slane %v1733, 1
      %v1829 = vsel %vm888, %v1826, %v1828
      %v1830 = vrot.slane %v1718, 1
      %v1831 = vrot.slane %v1648, 1
      %v1832 = vsel %vm888, %v1830, %v1831
      %v1833 = vrot.slane %v1734, 1
      %v1834 = vsel %vm888, %v1831, %v1833
      %v1835 = vrot.slane %v1719, 1
      %v1836 = vrot.slane %v1651, 1
      %v1837 = vsel %vm888, %v1835, %v1836
      %v1838 = vrot.slane %v1735, 1
      %v1839 = vsel %vm888, %v1836, %v1838
      %v1840 = vrot.slane %v1720, 1
      %v1841 = vrot.slane %v1654, 1
      %v1842 = vsel %vm888, %v1840, %v1841
      %v1843 = vrot.slane %v1736, 1
      %v1844 = vsel %vm888, %v1841, %v1843
      %v1845 = vrot.slane %v1721, 1
      %v1846 = vrot.slane %v1657, 1
      %v1847 = vsel %vm888, %v1845, %v1846
      %v1848 = vrot.slane %v1737, 1
      %v1849 = vsel %vm888, %v1846, %v1848
      %1850 = vrot.lane.b32.xlu0 %v1772, 32
      %v1851 = vpop.permute.xlu0 %1850
      %1852 = vrot.lane.b32.xlu0 %v1774, 32
      %v1853 = vpop.permute.xlu0 %1852
      %1854 = vrot.lane.b32.xlu0 %v1777, 32
      %v1855 = vpop.permute.xlu0 %1854
      %1856 = vrot.lane.b32.xlu0 %v1779, 32
      %v1857 = vpop.permute.xlu0 %1856
      %1858 = vrot.lane.b32.xlu0 %v1782, 32
      %v1859 = vpop.permute.xlu0 %1858
      %1860 = vrot.lane.b32.xlu0 %v1784, 32
      %v1861 = vpop.permute.xlu0 %1860
      %1862 = vrot.lane.b32.xlu0 %v1787, 32
      %v1863 = vpop.permute.xlu0 %1862
      %1864 = vrot.lane.b32.xlu0 %v1789, 32
      %v1865 = vpop.permute.xlu0 %1864
      %1866 = vrot.lane.b32.xlu0 %v1792, 32
      %v1867 = vpop.permute.xlu0 %1866
      %1868 = vrot.lane.b32.xlu0 %v1794, 32
      %v1869 = vpop.permute.xlu0 %1868
      %1870 = vrot.lane.b32.xlu0 %v1797, 32
      %v1871 = vpop.permute.xlu0 %1870
      %1872 = vrot.lane.b32.xlu0 %v1799, 32
      %v1873 = vpop.permute.xlu0 %1872
      %1874 = vrot.lane.b32.xlu0 %v1802, 32
      %v1875 = vpop.permute.xlu0 %1874
      %1876 = vrot.lane.b32.xlu0 %v1804, 32
      %v1877 = vpop.permute.xlu0 %1876
      %1878 = vrot.lane.b32.xlu0 %v1807, 32
      %v1879 = vpop.permute.xlu0 %1878
      %1880 = vrot.lane.b32.xlu0 %v1809, 32
      %v1881 = vpop.permute.xlu0 %1880
      %1882 = vrot.lane.b32.xlu0 %v1812, 32
      %v1883 = vpop.permute.xlu0 %1882
      %1884 = vrot.lane.b32.xlu0 %v1814, 32
      %v1885 = vpop.permute.xlu0 %1884
      %1886 = vrot.lane.b32.xlu0 %v1817, 32
      %v1887 = vpop.permute.xlu0 %1886
      %1888 = vrot.lane.b32.xlu0 %v1819, 32
      %v1889 = vpop.permute.xlu0 %1888
      %1890 = vrot.lane.b32.xlu0 %v1822, 32
      %v1891 = vpop.permute.xlu0 %1890
      %1892 = vrot.lane.b32.xlu0 %v1824, 32
      %v1893 = vpop.permute.xlu0 %1892
      %1894 = vrot.lane.b32.xlu0 %v1827, 32
      %v1895 = vpop.permute.xlu0 %1894
      %1896 = vrot.lane.b32.xlu0 %v1829, 32
      %v1897 = vpop.permute.xlu0 %1896
      %1898 = vrot.lane.b32.xlu0 %v1832, 32
      %v1899 = vpop.permute.xlu0 %1898
      %1900 = vrot.lane.b32.xlu0 %v1834, 32
      %v1901 = vpop.permute.xlu0 %1900
      %1902 = vrot.lane.b32.xlu0 %v1837, 32
      %v1903 = vpop.permute.xlu0 %1902
      %1904 = vrot.lane.b32.xlu0 %v1839, 32
      %v1905 = vpop.permute.xlu0 %1904
      %1906 = vrot.lane.b32.xlu0 %v1842, 32
      %v1907 = vpop.permute.xlu0 %1906
      %1908 = vrot.lane.b32.xlu0 %v1844, 32
      %v1909 = vpop.permute.xlu0 %1908
      %1910 = vrot.lane.b32.xlu0 %v1847, 32
      %v1911 = vpop.permute.xlu0 %1910
      %1912 = vrot.lane.b32.xlu0 %v1849, 32
      %v1913 = vpop.permute.xlu0 %1912
      %v1946 = vrot.slane %v1706, 2
      %v1947 = vrot.slane %v1612, 2
      %v1948 = vsel %vm1065, %v1946, %v1947
      %v1949 = vrot.slane %v1722, 2
      %v1950 = vsel %vm1065, %v1947, %v1949
      %v1951 = vrot.slane %v1707, 2
      %v1952 = vrot.slane %v1615, 2
      %v1953 = vsel %vm1065, %v1951, %v1952
      %v1954 = vrot.slane %v1723, 2
      %v1955 = vsel %vm1065, %v1952, %v1954
      %v1956 = vrot.slane %v1708, 2
      %v1957 = vrot.slane %v1618, 2
      %v1958 = vsel %vm1065, %v1956, %v1957
      %v1959 = vrot.slane %v1724, 2
      %v1960 = vsel %vm1065, %v1957, %v1959
      %v1961 = vrot.slane %v1709, 2
      %v1962 = vrot.slane %v1621, 2
      %v1963 = vsel %vm1065, %v1961, %v1962
      %v1964 = vrot.slane %v1725, 2
      %v1965 = vsel %vm1065, %v1962, %v1964
      %v1966 = vrot.slane %v1710, 2
      %v1967 = vrot.slane %v1624, 2
      %v1968 = vsel %vm1065, %v1966, %v1967
      %v1969 = vrot.slane %v1726, 2
      %v1970 = vsel %vm1065, %v1967, %v1969
      %v1971 = vrot.slane %v1711, 2
      %v1972 = vrot.slane %v1627, 2
      %v1973 = vsel %vm1065, %v1971, %v1972
      %v1974 = vrot.slane %v1727, 2
      %v1975 = vsel %vm1065, %v1972, %v1974
      %v1976 = vrot.slane %v1712, 2
      %v1977 = vrot.slane %v1630, 2
      %v1978 = vsel %vm1065, %v1976, %v1977
      %v1979 = vrot.slane %v1728, 2
      %v1980 = vsel %vm1065, %v1977, %v1979
      %v1981 = vrot.slane %v1713, 2
      %v1982 = vrot.slane %v1633, 2
      %v1983 = vsel %vm1065, %v1981, %v1982
      %v1984 = vrot.slane %v1729, 2
      %v1985 = vsel %vm1065, %v1982, %v1984
      %v1986 = vrot.slane %v1714, 2
      %v1987 = vrot.slane %v1636, 2
      %v1988 = vsel %vm1065, %v1986, %v1987
      %v1989 = vrot.slane %v1730, 2
      %v1990 = vsel %vm1065, %v1987, %v1989
      %v1991 = vrot.slane %v1715, 2
      %v1992 = vrot.slane %v1639, 2
      %v1993 = vsel %vm1065, %v1991, %v1992
      %v1994 = vrot.slane %v1731, 2
      %v1995 = vsel %vm1065, %v1992, %v1994
      %v1996 = vrot.slane %v1716, 2
      %v1997 = vrot.slane %v1642, 2
      %v1998 = vsel %vm1065, %v1996, %v1997
      %v1999 = vrot.slane %v1732, 2
      %v2000 = vsel %vm1065, %v1997, %v1999
      %v2001 = vrot.slane %v1717, 2
      %v2002 = vrot.slane %v1645, 2
      %v2003 = vsel %vm1065, %v2001, %v2002
      %v2004 = vrot.slane %v1733, 2
      %v2005 = vsel %vm1065, %v2002, %v2004
      %v2006 = vrot.slane %v1718, 2
      %v2007 = vrot.slane %v1648, 2
      %v2008 = vsel %vm1065, %v2006, %v2007
      %v2009 = vrot.slane %v1734, 2
      %v2010 = vsel %vm1065, %v2007, %v2009
      %v2011 = vrot.slane %v1719, 2
      %v2012 = vrot.slane %v1651, 2
      %v2013 = vsel %vm1065, %v2011, %v2012
      %v2014 = vrot.slane %v1735, 2
      %v2015 = vsel %vm1065, %v2012, %v2014
      %v2016 = vrot.slane %v1720, 2
      %v2017 = vrot.slane %v1654, 2
      %v2018 = vsel %vm1065, %v2016, %v2017
      %v2019 = vrot.slane %v1736, 2
      %v2020 = vsel %vm1065, %v2017, %v2019
      %v2021 = vrot.slane %v1721, 2
      %v2022 = vrot.slane %v1657, 2
      %v2023 = vsel %vm1065, %v2021, %v2022
      %v2024 = vrot.slane %v1737, 2
      %v2025 = vsel %vm1065, %v2022, %v2024
      %2026 = vrot.lane.b32.xlu0 %v1948, 64
      %v2027 = vpop.permute.xlu0 %2026
      %2028 = vrot.lane.b32.xlu0 %v1950, 64
      %v2029 = vpop.permute.xlu0 %2028
      %2030 = vrot.lane.b32.xlu0 %v1953, 64
      %v2031 = vpop.permute.xlu0 %2030
      %2032 = vrot.lane.b32.xlu0 %v1955, 64
      %v2033 = vpop.permute.xlu0 %2032
      %2034 = vrot.lane.b32.xlu0 %v1958, 64
      %v2035 = vpop.permute.xlu0 %2034
      %2036 = vrot.lane.b32.xlu0 %v1960, 64
      %v2037 = vpop.permute.xlu0 %2036
      %2038 = vrot.lane.b32.xlu0 %v1963, 64
      %v2039 = vpop.permute.xlu0 %2038
      %2040 = vrot.lane.b32.xlu0 %v1965, 64
      %v2041 = vpop.permute.xlu0 %2040
      %2042 = vrot.lane.b32.xlu0 %v1968, 64
      %v2043 = vpop.permute.xlu0 %2042
      %2044 = vrot.lane.b32.xlu0 %v1970, 64
      %v2045 = vpop.permute.xlu0 %2044
      %2046 = vrot.lane.b32.xlu0 %v1973, 64
      %v2047 = vpop.permute.xlu0 %2046
      %2048 = vrot.lane.b32.xlu0 %v1975, 64
      %v2049 = vpop.permute.xlu0 %2048
      %2050 = vrot.lane.b32.xlu0 %v1978, 64
      %v2051 = vpop.permute.xlu0 %2050
      %2052 = vrot.lane.b32.xlu0 %v1980, 64
      %v2053 = vpop.permute.xlu0 %2052
      %2054 = vrot.lane.b32.xlu0 %v1983, 64
      %v2055 = vpop.permute.xlu0 %2054
      %2056 = vrot.lane.b32.xlu0 %v1985, 64
      %v2057 = vpop.permute.xlu0 %2056
      %2058 = vrot.lane.b32.xlu0 %v1988, 64
      %v2059 = vpop.permute.xlu0 %2058
      %2060 = vrot.lane.b32.xlu0 %v1990, 64
      %v2061 = vpop.permute.xlu0 %2060
      %2062 = vrot.lane.b32.xlu0 %v1993, 64
      %v2063 = vpop.permute.xlu0 %2062
      %2064 = vrot.lane.b32.xlu0 %v1995, 64
      %v2065 = vpop.permute.xlu0 %2064
      %2066 = vrot.lane.b32.xlu0 %v1998, 64
      %v2067 = vpop.permute.xlu0 %2066
      %2068 = vrot.lane.b32.xlu0 %v2000, 64
      %v2069 = vpop.permute.xlu0 %2068
      %2070 = vrot.lane.b32.xlu0 %v2003, 64
      %v2071 = vpop.permute.xlu0 %2070
      %2072 = vrot.lane.b32.xlu0 %v2005, 64
      %v2073 = vpop.permute.xlu0 %2072
      %2074 = vrot.lane.b32.xlu0 %v2008, 64
      %v2075 = vpop.permute.xlu0 %2074
      %2076 = vrot.lane.b32.xlu0 %v2010, 64
      %v2077 = vpop.permute.xlu0 %2076
      %2078 = vrot.lane.b32.xlu0 %v2013, 64
      %v2079 = vpop.permute.xlu0 %2078
      %2080 = vrot.lane.b32.xlu0 %v2015, 64
      %v2081 = vpop.permute.xlu0 %2080
      %2082 = vrot.lane.b32.xlu0 %v2018, 64
      %v2083 = vpop.permute.xlu0 %2082
      %2084 = vrot.lane.b32.xlu0 %v2020, 64
      %v2085 = vpop.permute.xlu0 %2084
      %2086 = vrot.lane.b32.xlu0 %v2023, 64
      %v2087 = vpop.permute.xlu0 %2086
      %2088 = vrot.lane.b32.xlu0 %v2025, 64
      %v2089 = vpop.permute.xlu0 %2088
      %v2122 = vsel %vm1242, %v1706, %v1851
      %v2123 = vsel %vm1242, %v1612, %v1853
      %v2124 = vsel %vm1242, %v1707, %v1855
      %v2125 = vsel %vm1242, %v1615, %v1857
      %v2126 = vsel %vm1242, %v1708, %v1859
      %v2127 = vsel %vm1242, %v1618, %v1861
      %v2128 = vsel %vm1242, %v1709, %v1863
      %v2129 = vsel %vm1242, %v1621, %v1865
      %v2130 = vsel %vm1242, %v1710, %v1867
      %v2131 = vsel %vm1242, %v1624, %v1869
      %v2132 = vsel %vm1242, %v1711, %v1871
      %v2133 = vsel %vm1242, %v1627, %v1873
      %v2134 = vsel %vm1242, %v1712, %v1875
      %v2135 = vsel %vm1242, %v1630, %v1877
      %v2136 = vsel %vm1242, %v1713, %v1879
      %v2137 = vsel %vm1242, %v1633, %v1881
      %v2138 = vsel %vm1242, %v1714, %v1883
      %v2139 = vsel %vm1242, %v1636, %v1885
      %v2140 = vsel %vm1242, %v1715, %v1887
      %v2141 = vsel %vm1242, %v1639, %v1889
      %v2142 = vsel %vm1242, %v1716, %v1891
      %v2143 = vsel %vm1242, %v1642, %v1893
      %v2144 = vsel %vm1242, %v1717, %v1895
      %v2145 = vsel %vm1242, %v1645, %v1897
      %v2146 = vsel %vm1242, %v1718, %v1899
      %v2147 = vsel %vm1242, %v1648, %v1901
      %v2148 = vsel %vm1242, %v1719, %v1903
      %v2149 = vsel %vm1242, %v1651, %v1905
      %v2150 = vsel %vm1242, %v1720, %v1907
      %v2151 = vsel %vm1242, %v1654, %v1909
      %v2152 = vsel %vm1242, %v1721, %v1911
      %v2153 = vsel %vm1242, %v1657, %v1913
      %v2154 = vsel %vm1275, %v2122, %v2027
      %v2155 = vsel %vm1275, %v2123, %v2029
      %v2156 = vsel %vm1275, %v2124, %v2031
      %v2157 = vsel %vm1275, %v2125, %v2033
      %v2158 = vsel %vm1275, %v2126, %v2035
      %v2159 = vsel %vm1275, %v2127, %v2037
      %v2160 = vsel %vm1275, %v2128, %v2039
      %v2161 = vsel %vm1275, %v2129, %v2041
      %v2162 = vsel %vm1275, %v2130, %v2043
      %v2163 = vsel %vm1275, %v2131, %v2045
      %v2164 = vsel %vm1275, %v2132, %v2047
      %v2165 = vsel %vm1275, %v2133, %v2049
      %v2166 = vsel %vm1275, %v2134, %v2051
      %v2167 = vsel %vm1275, %v2135, %v2053
      %v2168 = vsel %vm1275, %v2136, %v2055
      %v2169 = vsel %vm1275, %v2137, %v2057
      %v2170 = vsel %vm1275, %v2138, %v2059
      %v2171 = vsel %vm1275, %v2139, %v2061
      %v2172 = vsel %vm1275, %v2140, %v2063
      %v2173 = vsel %vm1275, %v2141, %v2065
      %v2174 = vsel %vm1275, %v2142, %v2067
      %v2175 = vsel %vm1275, %v2143, %v2069
      %v2176 = vsel %vm1275, %v2144, %v2071
      %v2177 = vsel %vm1275, %v2145, %v2073
      %v2178 = vsel %vm1275, %v2146, %v2075
      %v2179 = vsel %vm1275, %v2147, %v2077
      %v2180 = vsel %vm1275, %v2148, %v2079
      %v2181 = vsel %vm1275, %v2149, %v2081
      %v2182 = vsel %vm1275, %v2150, %v2083
      %v2183 = vsel %vm1275, %v2151, %v2085
      %v2184 = vsel %vm1275, %v2152, %v2087
      %v2185 = vsel %vm1275, %v2153, %v2089
      %v2186 = vpack.c.bf16 %v2155, %v2154
      %v2187 = vpack.c.bf16 %v2157, %v2156
      %v2188 = vpack.c.bf16 %v2159, %v2158
      %v2189 = vpack.c.bf16 %v2161, %v2160
      %v2190 = vpack.c.bf16 %v2163, %v2162
      %v2191 = vpack.c.bf16 %v2165, %v2164
      %v2192 = vpack.c.bf16 %v2167, %v2166
      %v2193 = vpack.c.bf16 %v2169, %v2168
      %v2194 = vpack.c.bf16 %v2171, %v2170
      %v2195 = vpack.c.bf16 %v2173, %v2172
      %v2196 = vpack.c.bf16 %v2175, %v2174
      %v2197 = vpack.c.bf16 %v2177, %v2176
      %v2198 = vpack.c.bf16 %v2179, %v2178
      %v2199 = vpack.c.bf16 %v2181, %v2180
      %v2200 = vpack.c.bf16 %v2183, %v2182
      %v2201 = vpack.c.bf16 %v2185, %v2184
      %s2202 = scalar_lea.vmem %s4, 48
      %v2203 = vld [vmem:[%s2202] sm:$0xf]
      %v2204 = vld [vmem:[%s2202 + $0x4] sm:$0xf]
      %v2205 = vld [vmem:[%s2202 + $0x8] sm:$0xf]
      %v2206 = vld [vmem:[%s2202 + $0xc] sm:$0xf]
      %v2207 = vld [vmem:[%s2202 + $0x10] sm:$0xf]
      %v2208 = vld [vmem:[%s2202 + $0x14] sm:$0xf]
      %v2209 = vld [vmem:[%s2202 + $0x18] sm:$0xf]
      %v2210 = vld [vmem:[%s2202 + $0x1c] sm:$0xf]
      %v2211 = vld [vmem:[%s2202 + $0x20] sm:$0xf]
      %v2212 = vld [vmem:[%s2202 + $0x24] sm:$0xf]
      %v2213 = vld [vmem:[%s2202 + $0x28] sm:$0xf]
      %v2214 = vld [vmem:[%s2202 + $0x2c] sm:$0xf]
      %v2227 = vunpack.c.l.b16 %v2203
      %v2228 = vunpack.c.l.b16 %v2204
      %v2229 = vunpack.c.l.b16 %v2205
      %v2230 = vunpack.c.l.b16 %v2206
      %v2231 = vunpack.c.l.b16 %v2207
      %v2232 = vunpack.c.l.b16 %v2208
      %v2233 = vunpack.c.l.b16 %v2209
      %v2234 = vunpack.c.l.b16 %v2210
      %v2235 = vunpack.c.l.b16 %v2211
      %v2236 = vunpack.c.l.b16 %v2212
      %v2237 = vunpack.c.l.b16 %v2213
      %v2238 = vunpack.c.l.b16 %v2214
      %v2239 = vpack.c.b16 %v2228, %v2227
      %v2240 = vpack.c.b16 %v2230, %v2229
      %v2241 = vpack.c.b16 %v2232, %v2231
      %v2242 = vpack.c.b16 %v2234, %v2233
      %v2243 = vpack.c.b16 %v2236, %v2235
      %v2244 = vpack.c.b16 %v2238, %v2237
      %v2252 = vsel %vm1372, %v2186, 0
      %v2255 = vsel %vm1372, %v2187, 0
      %v2258 = vsel %vm1372, %v2188, 0
      %v2261 = vsel %vm1372, %v2189, 0
      %v2264 = vsel %vm1372, %v2190, 0
      %v2267 = vsel %vm1372, %v2191, 0
      %v2270 = vsel %vm1372, %v2192, 0
      %v2273 = vsel %vm1372, %v2193, 0
      %v2276 = vsel %vm1372, %v2194, 0
      %v2279 = vsel %vm1372, %v2195, 0
      %v2282 = vsel %vm1372, %v2196, 0
      %v2285 = vsel %vm1372, %v2197, 0
      %v2288 = vsel %vm1372, %v2198, 0
      %v2291 = vsel %vm1372, %v2199, 0
      %v2294 = vsel %vm1372, %v2200, 0
      %v2297 = vsel %vm1372, %v2201, 0
      %2299 = vmatpush.bf16.msra.mxu0 0
      %2300 = vmatpush.bf16.msra.mxu0 0
      %2301 = vmatpush.bf16.msra.mxu0 %v2244
      %2302 = vmatpush.bf16.msra.mxu0 %v2243
      %2303 = vmatpush.bf16.msra.mxu0 %v2242
      %2304 = vmatpush.bf16.msra.mxu0 %v2241
      %2305 = vmatpush.bf16.msra.mxu0 %v2240
      %2306 = vmatpush.bf16.msra.mxu0 %v2239
      %2307 = vmatmul.bf16.gmra.mxu0 %v2252
      %v2308 = vpop.f32.mrf.mxu0
      %v2309 = vadd.f32 0.0, %v2308
      %v2310 = vpop.f32.mrf.mxu0
      %v2311 = vadd.f32 0.0, %v2310
      %2312 = vmatmul.bf16.gmra.mxu0 %v2255
      %v2313 = vpop.f32.mrf.mxu0
      %v2314 = vadd.f32 0.0, %v2313
      %v2315 = vpop.f32.mrf.mxu0
      %v2316 = vadd.f32 0.0, %v2315
      %2317 = vmatmul.bf16.gmra.mxu0 %v2258
      %v2318 = vpop.f32.mrf.mxu0
      %v2319 = vadd.f32 0.0, %v2318
      %v2320 = vpop.f32.mrf.mxu0
      %v2321 = vadd.f32 0.0, %v2320
      %2322 = vmatmul.bf16.gmra.mxu0 %v2261
      %v2323 = vpop.f32.mrf.mxu0
      %v2324 = vadd.f32 0.0, %v2323
      %v2325 = vpop.f32.mrf.mxu0
      %v2326 = vadd.f32 0.0, %v2325
      %2327 = vmatmul.bf16.gmra.mxu0 %v2264
      %v2328 = vpop.f32.mrf.mxu0
      %v2329 = vadd.f32 0.0, %v2328
      %v2330 = vpop.f32.mrf.mxu0
      %v2331 = vadd.f32 0.0, %v2330
      %2332 = vmatmul.bf16.gmra.mxu0 %v2267
      %v2333 = vpop.f32.mrf.mxu0
      %v2334 = vadd.f32 0.0, %v2333
      %v2335 = vpop.f32.mrf.mxu0
      %v2336 = vadd.f32 0.0, %v2335
      %2337 = vmatmul.bf16.gmra.mxu0 %v2270
      %v2338 = vpop.f32.mrf.mxu0
      %v2339 = vadd.f32 0.0, %v2338
      %v2340 = vpop.f32.mrf.mxu0
      %v2341 = vadd.f32 0.0, %v2340
      %2342 = vmatmul.bf16.gmra.mxu0 %v2273
      %v2343 = vpop.f32.mrf.mxu0
      %v2344 = vadd.f32 0.0, %v2343
      %v2345 = vpop.f32.mrf.mxu0
      %v2346 = vadd.f32 0.0, %v2345
      %2347 = vmatmul.bf16.gmra.mxu0 %v2276
      %v2348 = vpop.f32.mrf.mxu0
      %v2349 = vadd.f32 0.0, %v2348
      %v2350 = vpop.f32.mrf.mxu0
      %v2351 = vadd.f32 0.0, %v2350
      %2352 = vmatmul.bf16.gmra.mxu0 %v2279
      %v2353 = vpop.f32.mrf.mxu0
      %v2354 = vadd.f32 0.0, %v2353
      %v2355 = vpop.f32.mrf.mxu0
      %v2356 = vadd.f32 0.0, %v2355
      %2357 = vmatmul.bf16.gmra.mxu0 %v2282
      %v2358 = vpop.f32.mrf.mxu0
      %v2359 = vadd.f32 0.0, %v2358
      %v2360 = vpop.f32.mrf.mxu0
      %v2361 = vadd.f32 0.0, %v2360
      %2362 = vmatmul.bf16.gmra.mxu0 %v2285
      %v2363 = vpop.f32.mrf.mxu0
      %v2364 = vadd.f32 0.0, %v2363
      %v2365 = vpop.f32.mrf.mxu0
      %v2366 = vadd.f32 0.0, %v2365
      %2367 = vmatmul.bf16.gmra.mxu0 %v2288
      %v2368 = vpop.f32.mrf.mxu0
      %v2369 = vadd.f32 0.0, %v2368
      %v2370 = vpop.f32.mrf.mxu0
      %v2371 = vadd.f32 0.0, %v2370
      %2372 = vmatmul.bf16.gmra.mxu0 %v2291
      %v2373 = vpop.f32.mrf.mxu0
      %v2374 = vadd.f32 0.0, %v2373
      %v2375 = vpop.f32.mrf.mxu0
      %v2376 = vadd.f32 0.0, %v2375
      %2377 = vmatmul.bf16.gmra.mxu0 %v2294
      %v2378 = vpop.f32.mrf.mxu0
      %v2379 = vadd.f32 0.0, %v2378
      %v2380 = vpop.f32.mrf.mxu0
      %v2381 = vadd.f32 0.0, %v2380
      %2382 = vmatmul.bf16.gmra.mxu0 %v2297
      %v2383 = vpop.f32.mrf.mxu0
      %v2384 = vadd.f32 0.0, %v2383
      %v2385 = vpop.f32.mrf.mxu0
      %v2386 = vadd.f32 0.0, %v2385
      %2387 = vdwg.mxu0
      %s2388 = scalar_lea.vmem %s5, 1
      %v2389 = vld [vmem:[%s2388] sm:$0x1]
      %v2391 = vperm.slane %v2389, 0
      %v2393 = vadd.f32 %v2309, %v2391
      %v2394 = vadd.f32 %v2311, %v2391
      %v2395 = vadd.f32 %v2314, %v2391
      %v2396 = vadd.f32 %v2316, %v2391
      %v2397 = vadd.f32 %v2319, %v2391
      %v2398 = vadd.f32 %v2321, %v2391
      %v2399 = vadd.f32 %v2324, %v2391
      %v2400 = vadd.f32 %v2326, %v2391
      %v2401 = vadd.f32 %v2329, %v2391
      %v2402 = vadd.f32 %v2331, %v2391
      %v2403 = vadd.f32 %v2334, %v2391
      %v2404 = vadd.f32 %v2336, %v2391
      %v2405 = vadd.f32 %v2339, %v2391
      %v2406 = vadd.f32 %v2341, %v2391
      %v2407 = vadd.f32 %v2344, %v2391
      %v2408 = vadd.f32 %v2346, %v2391
      %v2409 = vadd.f32 %v2349, %v2391
      %v2410 = vadd.f32 %v2351, %v2391
      %v2411 = vadd.f32 %v2354, %v2391
      %v2412 = vadd.f32 %v2356, %v2391
      %v2413 = vadd.f32 %v2359, %v2391
      %v2414 = vadd.f32 %v2361, %v2391
      %v2415 = vadd.f32 %v2364, %v2391
      %v2416 = vadd.f32 %v2366, %v2391
      %v2417 = vadd.f32 %v2369, %v2391
      %v2418 = vadd.f32 %v2371, %v2391
      %v2419 = vadd.f32 %v2374, %v2391
      %v2420 = vadd.f32 %v2376, %v2391
      %v2421 = vadd.f32 %v2379, %v2391
      %v2422 = vadd.f32 %v2381, %v2391
      %v2423 = vadd.f32 %v2384, %v2391
      %v2424 = vadd.f32 %v2386, %v2391
      %v2425 = vmax.f32 %v2393, 0.0
      %v2426 = vmax.f32 %v2394, 0.0
      %v2427 = vmax.f32 %v2395, 0.0
      %v2428 = vmax.f32 %v2396, 0.0
      %v2429 = vmax.f32 %v2397, 0.0
      %v2430 = vmax.f32 %v2398, 0.0
      %v2431 = vmax.f32 %v2399, 0.0
      %v2432 = vmax.f32 %v2400, 0.0
      %v2433 = vmax.f32 %v2401, 0.0
      %v2434 = vmax.f32 %v2402, 0.0
      %v2435 = vmax.f32 %v2403, 0.0
      %v2436 = vmax.f32 %v2404, 0.0
      %v2437 = vmax.f32 %v2405, 0.0
      %v2438 = vmax.f32 %v2406, 0.0
      %v2439 = vmax.f32 %v2407, 0.0
      %v2440 = vmax.f32 %v2408, 0.0
      %v2441 = vmax.f32 %v2409, 0.0
      %v2442 = vmax.f32 %v2410, 0.0
      %v2443 = vmax.f32 %v2411, 0.0
      %v2444 = vmax.f32 %v2412, 0.0
      %v2445 = vmax.f32 %v2413, 0.0
      %v2446 = vmax.f32 %v2414, 0.0
      %v2447 = vmax.f32 %v2415, 0.0
      %v2448 = vmax.f32 %v2416, 0.0
      %v2449 = vmax.f32 %v2417, 0.0
      %v2450 = vmax.f32 %v2418, 0.0
      %v2451 = vmax.f32 %v2419, 0.0
      %v2452 = vmax.f32 %v2420, 0.0
      %v2453 = vmax.f32 %v2421, 0.0
      %v2454 = vmax.f32 %v2422, 0.0
      %v2455 = vmax.f32 %v2423, 0.0
      %v2456 = vmax.f32 %v2424, 0.0
      %v2457 = vld [vmem:[%s323] sm:$0xff]
      %v2458 = vld [vmem:[%s323 + $0x8] sm:$0xff]
      %2459 = vset.pattern.permute.xlu0 0
      %2460 = vperm.xlu0 %2459, %v2457
      %v2461 = vpop.permute.xlu0 %2460
      %2462 = vset.pattern.permute.xlu0 0
      %2463 = vperm.xlu0 %2462, %v2458
      %v2464 = vpop.permute.xlu0 %2463
      %vm2465 = vcmp.eq.s32.totalorder %v2461, %v365
      %vm2466 = vcmp.eq.s32.totalorder %v2464, %v365
      %v2467 = vsel %vm2465, 1.0, 0.0
      %v2468 = vsel %vm2466, 1.0, 0.0
      %v2469 = vpack.c.bf16 %v2468, %v2467
      %v2470 = vld [vmem:[%s3] sm:$0xf]
      %v2471 = vld [vmem:[%s3 + $0x4] sm:$0xf]
      %v2472 = vld [vmem:[%s3 + $0x8] sm:$0xf]
      %v2473 = vld [vmem:[%s3 + $0xc] sm:$0xf]
      %v2474 = vld [vmem:[%s3 + $0x10] sm:$0xf]
      %v2475 = vld [vmem:[%s3 + $0x14] sm:$0xf]
      %v2476 = vld [vmem:[%s3 + $0x18] sm:$0xf]
      %v2477 = vld [vmem:[%s3 + $0x1c] sm:$0xf]
      %v2478 = vld [vmem:[%s3 + $0x20] sm:$0xf]
      %v2479 = vld [vmem:[%s3 + $0x24] sm:$0xf]
      %v2480 = vld [vmem:[%s3 + $0x28] sm:$0xf]
      %v2481 = vld [vmem:[%s3 + $0x2c] sm:$0xf]
      %v2482 = vld [vmem:[%s3 + $0x30] sm:$0xf]
      %v2483 = vld [vmem:[%s3 + $0x34] sm:$0xf]
      %v2484 = vld [vmem:[%s3 + $0x38] sm:$0xf]
      %v2485 = vld [vmem:[%s3 + $0x3c] sm:$0xf]
      %v2502 = vunpack.c.l.b16 %v2470
      %v2503 = vunpack.c.l.b16 %v2471
      %v2504 = vunpack.c.l.b16 %v2472
      %v2505 = vunpack.c.l.b16 %v2473
      %v2506 = vunpack.c.l.b16 %v2474
      %v2507 = vunpack.c.l.b16 %v2475
      %v2508 = vunpack.c.l.b16 %v2476
      %v2509 = vunpack.c.l.b16 %v2477
      %v2510 = vunpack.c.l.b16 %v2478
      %v2511 = vunpack.c.l.b16 %v2479
      %v2512 = vunpack.c.l.b16 %v2480
      %v2513 = vunpack.c.l.b16 %v2481
      %v2514 = vunpack.c.l.b16 %v2482
      %v2515 = vunpack.c.l.b16 %v2483
      %v2516 = vunpack.c.l.b16 %v2484
      %v2517 = vunpack.c.l.b16 %v2485
      %v2518 = vpack.c.b16 %v2503, %v2502
      %v2519 = vpack.c.b16 %v2505, %v2504
      %v2520 = vpack.c.b16 %v2507, %v2506
      %v2521 = vpack.c.b16 %v2509, %v2508
      %v2522 = vpack.c.b16 %v2511, %v2510
      %v2523 = vpack.c.b16 %v2513, %v2512
      %v2524 = vpack.c.b16 %v2515, %v2514
      %v2525 = vpack.c.b16 %v2517, %v2516
      %2534 = vmatpush.bf16.msra.mxu0 %v2525
      %2535 = vmatpush.bf16.msra.mxu0 %v2524
      %2536 = vmatpush.bf16.msra.mxu0 %v2523
      %2537 = vmatpush.bf16.msra.mxu0 %v2522
      %2538 = vmatpush.bf16.msra.mxu0 %v2521
      %2539 = vmatpush.bf16.msra.mxu0 %v2520
      %2540 = vmatpush.bf16.msra.mxu0 %v2519
      %2541 = vmatpush.bf16.msra.mxu0 %v2518
      %2542 = vmatmul.bf16.gmra.mxu0 %v2469
      %v2543 = vpop.f32.mrf.mxu0
      %v2544 = vadd.f32 0.0, %v2543
      %v2545 = vpop.f32.mrf.mxu0
      %v2546 = vadd.f32 0.0, %v2545
      %2547 = vdwg.mxu0
      %v2564 = vrot.slane %v2427, 7
      %vm2565 = vcmask 1041409
      %v2566 = vsel %vm2565, %v2564, %v2425
      %v2567 = vrot.slane %v2429, 6
      %vm2568 = vcmask 1042434
      %v2569 = vsel %vm2568, %v2567, %v2566
      %v2570 = vrot.slane %v2431, 5
      %vm2571 = vcmask 1043459
      %v2572 = vsel %vm2571, %v2570, %v2569
      %v2573 = vrot.slane %v2433, 4
      %vm2574 = vcmask 1044484
      %v2575 = vsel %vm2574, %v2573, %v2572
      %v2576 = vrot.slane %v2435, 3
      %vm2577 = vcmask 1045509
      %v2578 = vsel %vm2577, %v2576, %v2575
      %v2579 = vrot.slane %v2437, 2
      %vm2580 = vcmask 1046534
      %v2581 = vsel %vm2580, %v2579, %v2578
      %v2582 = vrot.slane %v2439, 1
      %vm2583 = vcmask 1047559
      %v2584 = vsel %vm2583, %v2582, %v2581
      %v2585 = vrot.slane %v2443, 7
      %v2586 = vsel %vm2565, %v2585, %v2441
      %v2587 = vrot.slane %v2445, 6
      %v2588 = vsel %vm2568, %v2587, %v2586
      %v2589 = vrot.slane %v2447, 5
      %v2590 = vsel %vm2571, %v2589, %v2588
      %v2591 = vrot.slane %v2449, 4
      %v2592 = vsel %vm2574, %v2591, %v2590
      %v2593 = vrot.slane %v2451, 3
      %v2594 = vsel %vm2577, %v2593, %v2592
      %v2595 = vrot.slane %v2453, 2
      %v2596 = vsel %vm2580, %v2595, %v2594
      %v2597 = vrot.slane %v2455, 1
      %v2598 = vsel %vm2583, %v2597, %v2596
      %v2601 = vrot.slane %v2425, 1
      %v2602 = vsel %vm2565, %v2427, %v2601
      %v2603 = vrot.slane %v2429, 7
      %v2604 = vsel %vm2568, %v2603, %v2602
      %v2605 = vrot.slane %v2431, 6
      %v2606 = vsel %vm2571, %v2605, %v2604
      %v2607 = vrot.slane %v2433, 5
      %v2608 = vsel %vm2574, %v2607, %v2606
      %v2609 = vrot.slane %v2435, 4
      %v2610 = vsel %vm2577, %v2609, %v2608
      %v2611 = vrot.slane %v2437, 3
      %v2612 = vsel %vm2580, %v2611, %v2610
      %v2613 = vrot.slane %v2439, 2
      %v2614 = vsel %vm2583, %v2613, %v2612
      %v2615 = vrot.slane %v2441, 1
      %v2616 = vsel %vm2565, %v2443, %v2615
      %v2617 = vrot.slane %v2445, 7
      %v2618 = vsel %vm2568, %v2617, %v2616
      %v2619 = vrot.slane %v2447, 6
      %v2620 = vsel %vm2571, %v2619, %v2618
      %v2621 = vrot.slane %v2449, 5
      %v2622 = vsel %vm2574, %v2621, %v2620
      %v2623 = vrot.slane %v2451, 4
      %v2624 = vsel %vm2577, %v2623, %v2622
      %v2625 = vrot.slane %v2453, 3
      %v2626 = vsel %vm2580, %v2625, %v2624
      %v2627 = vrot.slane %v2455, 2
      %v2628 = vsel %vm2583, %v2627, %v2626
      %2629 = vrot.lane.b32.xlu0 %v2614, 32
      %v2630 = vpop.permute.xlu0 %2629
      %2631 = vrot.lane.b32.xlu0 %v2628, 32
      %v2632 = vpop.permute.xlu0 %2631
      %v2635 = vrot.slane %v2425, 2
      %v2636 = vrot.slane %v2427, 1
      %v2637 = vsel %vm2565, %v2636, %v2635
      %v2638 = vsel %vm2568, %v2429, %v2637
      %v2639 = vrot.slane %v2431, 7
      %v2640 = vsel %vm2571, %v2639, %v2638
      %v2641 = vrot.slane %v2433, 6
      %v2642 = vsel %vm2574, %v2641, %v2640
      %v2643 = vrot.slane %v2435, 5
      %v2644 = vsel %vm2577, %v2643, %v2642
      %v2645 = vrot.slane %v2437, 4
      %v2646 = vsel %vm2580, %v2645, %v2644
      %v2647 = vrot.slane %v2439, 3
      %v2648 = vsel %vm2583, %v2647, %v2646
      %v2649 = vrot.slane %v2441, 2
      %v2650 = vrot.slane %v2443, 1
      %v2651 = vsel %vm2565, %v2650, %v2649
      %v2652 = vsel %vm2568, %v2445, %v2651
      %v2653 = vrot.slane %v2447, 7
      %v2654 = vsel %vm2571, %v2653, %v2652
      %v2655 = vrot.slane %v2449, 6
      %v2656 = vsel %vm2574, %v2655, %v2654
      %v2657 = vrot.slane %v2451, 5
      %v2658 = vsel %vm2577, %v2657, %v2656
      %v2659 = vrot.slane %v2453, 4
      %v2660 = vsel %vm2580, %v2659, %v2658
      %v2661 = vrot.slane %v2455, 3
      %v2662 = vsel %vm2583, %v2661, %v2660
      %2663 = vrot.lane.b32.xlu0 %v2648, 64
      %v2664 = vpop.permute.xlu0 %2663
      %2665 = vrot.lane.b32.xlu0 %v2662, 64
      %v2666 = vpop.permute.xlu0 %2665
      %v2669 = vrot.slane %v2425, 3
      %v2670 = vrot.slane %v2427, 2
      %v2671 = vsel %vm2565, %v2670, %v2669
      %v2672 = vrot.slane %v2429, 1
      %v2673 = vsel %vm2568, %v2672, %v2671
      %v2674 = vsel %vm2571, %v2431, %v2673
      %v2675 = vrot.slane %v2433, 7
      %v2676 = vsel %vm2574, %v2675, %v2674
      %v2677 = vrot.slane %v2435, 6
      %v2678 = vsel %vm2577, %v2677, %v2676
      %v2679 = vrot.slane %v2437, 5
      %v2680 = vsel %vm2580, %v2679, %v2678
      %v2681 = vrot.slane %v2439, 4
      %v2682 = vsel %vm2583, %v2681, %v2680
      %v2683 = vrot.slane %v2441, 3
      %v2684 = vrot.slane %v2443, 2
      %v2685 = vsel %vm2565, %v2684, %v2683
      %v2686 = vrot.slane %v2445, 1
      %v2687 = vsel %vm2568, %v2686, %v2685
      %v2688 = vsel %vm2571, %v2447, %v2687
      %v2689 = vrot.slane %v2449, 7
      %v2690 = vsel %vm2574, %v2689, %v2688
      %v2691 = vrot.slane %v2451, 6
      %v2692 = vsel %vm2577, %v2691, %v2690
      %v2693 = vrot.slane %v2453, 5
      %v2694 = vsel %vm2580, %v2693, %v2692
      %v2695 = vrot.slane %v2455, 4
      %v2696 = vsel %vm2583, %v2695, %v2694
      %2697 = vrot.lane.b32.xlu0 %v2682, 96
      %v2698 = vpop.permute.xlu0 %2697
      %2699 = vrot.lane.b32.xlu0 %v2696, 96
      %v2700 = vpop.permute.xlu0 %2699
      %v2703 = vrot.slane %v2425, 4
      %v2704 = vrot.slane %v2427, 3
      %v2705 = vsel %vm2565, %v2704, %v2703
      %v2706 = vrot.slane %v2429, 2
      %v2707 = vsel %vm2568, %v2706, %v2705
      %v2708 = vrot.slane %v2431, 1
      %v2709 = vsel %vm2571, %v2708, %v2707
      %v2710 = vsel %vm2574, %v2433, %v2709
      %v2711 = vrot.slane %v2435, 7
      %v2712 = vsel %vm2577, %v2711, %v2710
      %v2713 = vrot.slane %v2437, 6
      %v2714 = vsel %vm2580, %v2713, %v2712
      %v2715 = vrot.slane %v2439, 5
      %v2716 = vsel %vm2583, %v2715, %v2714
      %v2717 = vrot.slane %v2441, 4
      %v2718 = vrot.slane %v2443, 3
      %v2719 = vsel %vm2565, %v2718, %v2717
      %v2720 = vrot.slane %v2445, 2
      %v2721 = vsel %vm2568, %v2720, %v2719
      %v2722 = vrot.slane %v2447, 1
      %v2723 = vsel %vm2571, %v2722, %v2721
      %v2724 = vsel %vm2574, %v2449, %v2723
      %v2725 = vrot.slane %v2451, 7
      %v2726 = vsel %vm2577, %v2725, %v2724
      %v2727 = vrot.slane %v2453, 6
      %v2728 = vsel %vm2580, %v2727, %v2726
      %v2729 = vrot.slane %v2455, 5
      %v2730 = vsel %vm2583, %v2729, %v2728
      %v2733 = vrot.slane %v2425, 5
      %v2734 = vrot.slane %v2427, 4
      %v2735 = vsel %vm2565, %v2734, %v2733
      %v2736 = vrot.slane %v2429, 3
      %v2737 = vsel %vm2568, %v2736, %v2735
      %v2738 = vrot.slane %v2431, 2
      %v2739 = vsel %vm2571, %v2738, %v2737
      %v2740 = vrot.slane %v2433, 1
      %v2741 = vsel %vm2574, %v2740, %v2739
      %v2742 = vsel %vm2577, %v2435, %v2741
      %v2743 = vrot.slane %v2437, 7
      %v2744 = vsel %vm2580, %v2743, %v2742
      %v2745 = vrot.slane %v2439, 6
      %v2746 = vsel %vm2583, %v2745, %v2744
      %v2747 = vrot.slane %v2441, 5
      %v2748 = vrot.slane %v2443, 4
      %v2749 = vsel %vm2565, %v2748, %v2747
      %v2750 = vrot.slane %v2445, 3
      %v2751 = vsel %vm2568, %v2750, %v2749
      %v2752 = vrot.slane %v2447, 2
      %v2753 = vsel %vm2571, %v2752, %v2751
      %v2754 = vrot.slane %v2449, 1
      %v2755 = vsel %vm2574, %v2754, %v2753
      %v2756 = vsel %vm2577, %v2451, %v2755
      %v2757 = vrot.slane %v2453, 7
      %v2758 = vsel %vm2580, %v2757, %v2756
      %v2759 = vrot.slane %v2455, 6
      %v2760 = vsel %vm2583, %v2759, %v2758
      %2761 = vrot.lane.b32.xlu0 %v2746, 32
      %v2762 = vpop.permute.xlu0 %2761
      %2763 = vrot.lane.b32.xlu0 %v2760, 32
      %v2764 = vpop.permute.xlu0 %2763
      %v2767 = vrot.slane %v2425, 6
      %v2768 = vrot.slane %v2427, 5
      %v2769 = vsel %vm2565, %v2768, %v2767
      %v2770 = vrot.slane %v2429, 4
      %v2771 = vsel %vm2568, %v2770, %v2769
      %v2772 = vrot.slane %v2431, 3
      %v2773 = vsel %vm2571, %v2772, %v2771
      %v2774 = vrot.slane %v2433, 2
      %v2775 = vsel %vm2574, %v2774, %v2773
      %v2776 = vrot.slane %v2435, 1
      %v2777 = vsel %vm2577, %v2776, %v2775
      %v2778 = vsel %vm2580, %v2437, %v2777
      %v2779 = vrot.slane %v2439, 7
      %v2780 = vsel %vm2583, %v2779, %v2778
      %v2781 = vrot.slane %v2441, 6
      %v2782 = vrot.slane %v2443, 5
      %v2783 = vsel %vm2565, %v2782, %v2781
      %v2784 = vrot.slane %v2445, 4
      %v2785 = vsel %vm2568, %v2784, %v2783
      %v2786 = vrot.slane %v2447, 3
      %v2787 = vsel %vm2571, %v2786, %v2785
      %v2788 = vrot.slane %v2449, 2
      %v2789 = vsel %vm2574, %v2788, %v2787
      %v2790 = vrot.slane %v2451, 1
      %v2791 = vsel %vm2577, %v2790, %v2789
      %v2792 = vsel %vm2580, %v2453, %v2791
      %v2793 = vrot.slane %v2455, 7
      %v2794 = vsel %vm2583, %v2793, %v2792
      %2795 = vrot.lane.b32.xlu0 %v2780, 64
      %v2796 = vpop.permute.xlu0 %2795
      %2797 = vrot.lane.b32.xlu0 %v2794, 64
      %v2798 = vpop.permute.xlu0 %2797
      %v2801 = vrot.slane %v2425, 7
      %v2802 = vrot.slane %v2427, 6
      %v2803 = vsel %vm2565, %v2802, %v2801
      %v2804 = vrot.slane %v2429, 5
      %v2805 = vsel %vm2568, %v2804, %v2803
      %v2806 = vrot.slane %v2431, 4
      %v2807 = vsel %vm2571, %v2806, %v2805
      %v2808 = vrot.slane %v2433, 3
      %v2809 = vsel %vm2574, %v2808, %v2807
      %v2810 = vrot.slane %v2435, 2
      %v2811 = vsel %vm2577, %v2810, %v2809
      %v2812 = vrot.slane %v2437, 1
      %v2813 = vsel %vm2580, %v2812, %v2811
      %v2814 = vsel %vm2583, %v2439, %v2813
      %v2815 = vrot.slane %v2441, 7
      %v2816 = vrot.slane %v2443, 6
      %v2817 = vsel %vm2565, %v2816, %v2815
      %v2818 = vrot.slane %v2445, 5
      %v2819 = vsel %vm2568, %v2818, %v2817
      %v2820 = vrot.slane %v2447, 4
      %v2821 = vsel %vm2571, %v2820, %v2819
      %v2822 = vrot.slane %v2449, 3
      %v2823 = vsel %vm2574, %v2822, %v2821
      %v2824 = vrot.slane %v2451, 2
      %v2825 = vsel %vm2577, %v2824, %v2823
      %v2826 = vrot.slane %v2453, 1
      %v2827 = vsel %vm2580, %v2826, %v2825
      %v2828 = vsel %vm2583, %v2455, %v2827
      %2829 = vrot.lane.b32.xlu0 %v2814, 96
      %v2830 = vpop.permute.xlu0 %2829
      %2831 = vrot.lane.b32.xlu0 %v2828, 96
      %v2832 = vpop.permute.xlu0 %2831
      %v2851 = vrot.slane %v2428, 7
      %v2852 = vsel %vm2565, %v2851, %v2426
      %v2853 = vrot.slane %v2430, 6
      %v2854 = vsel %vm2568, %v2853, %v2852
      %v2855 = vrot.slane %v2432, 5
      %v2856 = vsel %vm2571, %v2855, %v2854
      %v2857 = vrot.slane %v2434, 4
      %v2858 = vsel %vm2574, %v2857, %v2856
      %v2859 = vrot.slane %v2436, 3
      %v2860 = vsel %vm2577, %v2859, %v2858
      %v2861 = vrot.slane %v2438, 2
      %v2862 = vsel %vm2580, %v2861, %v2860
      %v2863 = vrot.slane %v2440, 1
      %v2864 = vsel %vm2583, %v2863, %v2862
      %v2865 = vrot.slane %v2444, 7
      %v2866 = vsel %vm2565, %v2865, %v2442
      %v2867 = vrot.slane %v2446, 6
      %v2868 = vsel %vm2568, %v2867, %v2866
      %v2869 = vrot.slane %v2448, 5
      %v2870 = vsel %vm2571, %v2869, %v2868
      %v2871 = vrot.slane %v2450, 4
      %v2872 = vsel %vm2574, %v2871, %v2870
      %v2873 = vrot.slane %v2452, 3
      %v2874 = vsel %vm2577, %v2873, %v2872
      %v2875 = vrot.slane %v2454, 2
      %v2876 = vsel %vm2580, %v2875, %v2874
      %v2877 = vrot.slane %v2456, 1
      %v2878 = vsel %vm2583, %v2877, %v2876
      %v2881 = vrot.slane %v2426, 1
      %v2882 = vsel %vm2565, %v2428, %v2881
      %v2883 = vrot.slane %v2430, 7
      %v2884 = vsel %vm2568, %v2883, %v2882
      %v2885 = vrot.slane %v2432, 6
      %v2886 = vsel %vm2571, %v2885, %v2884
      %v2887 = vrot.slane %v2434, 5
      %v2888 = vsel %vm2574, %v2887, %v2886
      %v2889 = vrot.slane %v2436, 4
      %v2890 = vsel %vm2577, %v2889, %v2888
      %v2891 = vrot.slane %v2438, 3
      %v2892 = vsel %vm2580, %v2891, %v2890
      %v2893 = vrot.slane %v2440, 2
      %v2894 = vsel %vm2583, %v2893, %v2892
      %v2895 = vrot.slane %v2442, 1
      %v2896 = vsel %vm2565, %v2444, %v2895
      %v2897 = vrot.slane %v2446, 7
      %v2898 = vsel %vm2568, %v2897, %v2896
      %v2899 = vrot.slane %v2448, 6
      %v2900 = vsel %vm2571, %v2899, %v2898
      %v2901 = vrot.slane %v2450, 5
      %v2902 = vsel %vm2574, %v2901, %v2900
      %v2903 = vrot.slane %v2452, 4
      %v2904 = vsel %vm2577, %v2903, %v2902
      %v2905 = vrot.slane %v2454, 3
      %v2906 = vsel %vm2580, %v2905, %v2904
      %v2907 = vrot.slane %v2456, 2
      %v2908 = vsel %vm2583, %v2907, %v2906
      %2909 = vrot.lane.b32.xlu0 %v2894, 32
      %v2910 = vpop.permute.xlu0 %2909
      %2911 = vrot.lane.b32.xlu0 %v2908, 32
      %v2912 = vpop.permute.xlu0 %2911
      %v2915 = vrot.slane %v2426, 2
      %v2916 = vrot.slane %v2428, 1
      %v2917 = vsel %vm2565, %v2916, %v2915
      %v2918 = vsel %vm2568, %v2430, %v2917
      %v2919 = vrot.slane %v2432, 7
      %v2920 = vsel %vm2571, %v2919, %v2918
      %v2921 = vrot.slane %v2434, 6
      %v2922 = vsel %vm2574, %v2921, %v2920
      %v2923 = vrot.slane %v2436, 5
      %v2924 = vsel %vm2577, %v2923, %v2922
      %v2925 = vrot.slane %v2438, 4
      %v2926 = vsel %vm2580, %v2925, %v2924
      %v2927 = vrot.slane %v2440, 3
      %v2928 = vsel %vm2583, %v2927, %v2926
      %v2929 = vrot.slane %v2442, 2
      %v2930 = vrot.slane %v2444, 1
      %v2931 = vsel %vm2565, %v2930, %v2929
      %v2932 = vsel %vm2568, %v2446, %v2931
      %v2933 = vrot.slane %v2448, 7
      %v2934 = vsel %vm2571, %v2933, %v2932
      %v2935 = vrot.slane %v2450, 6
      %v2936 = vsel %vm2574, %v2935, %v2934
      %v2937 = vrot.slane %v2452, 5
      %v2938 = vsel %vm2577, %v2937, %v2936
      %v2939 = vrot.slane %v2454, 4
      %v2940 = vsel %vm2580, %v2939, %v2938
      %v2941 = vrot.slane %v2456, 3
      %v2942 = vsel %vm2583, %v2941, %v2940
      %2943 = vrot.lane.b32.xlu0 %v2928, 64
      %v2944 = vpop.permute.xlu0 %2943
      %2945 = vrot.lane.b32.xlu0 %v2942, 64
      %v2946 = vpop.permute.xlu0 %2945
      %v2949 = vrot.slane %v2426, 3
      %v2950 = vrot.slane %v2428, 2
      %v2951 = vsel %vm2565, %v2950, %v2949
      %v2952 = vrot.slane %v2430, 1
      %v2953 = vsel %vm2568, %v2952, %v2951
      %v2954 = vsel %vm2571, %v2432, %v2953
      %v2955 = vrot.slane %v2434, 7
      %v2956 = vsel %vm2574, %v2955, %v2954
      %v2957 = vrot.slane %v2436, 6
      %v2958 = vsel %vm2577, %v2957, %v2956
      %v2959 = vrot.slane %v2438, 5
      %v2960 = vsel %vm2580, %v2959, %v2958
      %v2961 = vrot.slane %v2440, 4
      %v2962 = vsel %vm2583, %v2961, %v2960
      %v2963 = vrot.slane %v2442, 3
      %v2964 = vrot.slane %v2444, 2
      %v2965 = vsel %vm2565, %v2964, %v2963
      %v2966 = vrot.slane %v2446, 1
      %v2967 = vsel %vm2568, %v2966, %v2965
      %v2968 = vsel %vm2571, %v2448, %v2967
      %v2969 = vrot.slane %v2450, 7
      %v2970 = vsel %vm2574, %v2969, %v2968
      %v2971 = vrot.slane %v2452, 6
      %v2972 = vsel %vm2577, %v2971, %v2970
      %v2973 = vrot.slane %v2454, 5
      %v2974 = vsel %vm2580, %v2973, %v2972
      %v2975 = vrot.slane %v2456, 4
      %v2976 = vsel %vm2583, %v2975, %v2974
      %2977 = vrot.lane.b32.xlu0 %v2962, 96
      %v2978 = vpop.permute.xlu0 %2977
      %2979 = vrot.lane.b32.xlu0 %v2976, 96
      %v2980 = vpop.permute.xlu0 %2979
      %v2983 = vrot.slane %v2426, 4
      %v2984 = vrot.slane %v2428, 3
      %v2985 = vsel %vm2565, %v2984, %v2983
      %v2986 = vrot.slane %v2430, 2
      %v2987 = vsel %vm2568, %v2986, %v2985
      %v2988 = vrot.slane %v2432, 1
      %v2989 = vsel %vm2571, %v2988, %v2987
      %v2990 = vsel %vm2574, %v2434, %v2989
      %v2991 = vrot.slane %v2436, 7
      %v2992 = vsel %vm2577, %v2991, %v2990
      %v2993 = vrot.slane %v2438, 6
      %v2994 = vsel %vm2580, %v2993, %v2992
      %v2995 = vrot.slane %v2440, 5
      %v2996 = vsel %vm2583, %v2995, %v2994
      %v2997 = vrot.slane %v2442, 4
      %v2998 = vrot.slane %v2444, 3
      %v2999 = vsel %vm2565, %v2998, %v2997
      %v3000 = vrot.slane %v2446, 2
      %v3001 = vsel %vm2568, %v3000, %v2999
      %v3002 = vrot.slane %v2448, 1
      %v3003 = vsel %vm2571, %v3002, %v3001
      %v3004 = vsel %vm2574, %v2450, %v3003
      %v3005 = vrot.slane %v2452, 7
      %v3006 = vsel %vm2577, %v3005, %v3004
      %v3007 = vrot.slane %v2454, 6
      %v3008 = vsel %vm2580, %v3007, %v3006
      %v3009 = vrot.slane %v2456, 5
      %v3010 = vsel %vm2583, %v3009, %v3008
      %v3013 = vrot.slane %v2426, 5
      %v3014 = vrot.slane %v2428, 4
      %v3015 = vsel %vm2565, %v3014, %v3013
      %v3016 = vrot.slane %v2430, 3
      %v3017 = vsel %vm2568, %v3016, %v3015
      %v3018 = vrot.slane %v2432, 2
      %v3019 = vsel %vm2571, %v3018, %v3017
      %v3020 = vrot.slane %v2434, 1
      %v3021 = vsel %vm2574, %v3020, %v3019
      %v3022 = vsel %vm2577, %v2436, %v3021
      %v3023 = vrot.slane %v2438, 7
      %v3024 = vsel %vm2580, %v3023, %v3022
      %v3025 = vrot.slane %v2440, 6
      %v3026 = vsel %vm2583, %v3025, %v3024
      %v3027 = vrot.slane %v2442, 5
      %v3028 = vrot.slane %v2444, 4
      %v3029 = vsel %vm2565, %v3028, %v3027
      %v3030 = vrot.slane %v2446, 3
      %v3031 = vsel %vm2568, %v3030, %v3029
      %v3032 = vrot.slane %v2448, 2
      %v3033 = vsel %vm2571, %v3032, %v3031
      %v3034 = vrot.slane %v2450, 1
      %v3035 = vsel %vm2574, %v3034, %v3033
      %v3036 = vsel %vm2577, %v2452, %v3035
      %v3037 = vrot.slane %v2454, 7
      %v3038 = vsel %vm2580, %v3037, %v3036
      %v3039 = vrot.slane %v2456, 6
      %v3040 = vsel %vm2583, %v3039, %v3038
      %3041 = vrot.lane.b32.xlu0 %v3026, 32
      %v3042 = vpop.permute.xlu0 %3041
      %3043 = vrot.lane.b32.xlu0 %v3040, 32
      %v3044 = vpop.permute.xlu0 %3043
      %v3047 = vrot.slane %v2426, 6
      %v3048 = vrot.slane %v2428, 5
      %v3049 = vsel %vm2565, %v3048, %v3047
      %v3050 = vrot.slane %v2430, 4
      %v3051 = vsel %vm2568, %v3050, %v3049
      %v3052 = vrot.slane %v2432, 3
      %v3053 = vsel %vm2571, %v3052, %v3051
      %v3054 = vrot.slane %v2434, 2
      %v3055 = vsel %vm2574, %v3054, %v3053
      %v3056 = vrot.slane %v2436, 1
      %v3057 = vsel %vm2577, %v3056, %v3055
      %v3058 = vsel %vm2580, %v2438, %v3057
      %v3059 = vrot.slane %v2440, 7
      %v3060 = vsel %vm2583, %v3059, %v3058
      %v3061 = vrot.slane %v2442, 6
      %v3062 = vrot.slane %v2444, 5
      %v3063 = vsel %vm2565, %v3062, %v3061
      %v3064 = vrot.slane %v2446, 4
      %v3065 = vsel %vm2568, %v3064, %v3063
      %v3066 = vrot.slane %v2448, 3
      %v3067 = vsel %vm2571, %v3066, %v3065
      %v3068 = vrot.slane %v2450, 2
      %v3069 = vsel %vm2574, %v3068, %v3067
      %v3070 = vrot.slane %v2452, 1
      %v3071 = vsel %vm2577, %v3070, %v3069
      %v3072 = vsel %vm2580, %v2454, %v3071
      %v3073 = vrot.slane %v2456, 7
      %v3074 = vsel %vm2583, %v3073, %v3072
      %3075 = vrot.lane.b32.xlu0 %v3060, 64
      %v3076 = vpop.permute.xlu0 %3075
      %3077 = vrot.lane.b32.xlu0 %v3074, 64
      %v3078 = vpop.permute.xlu0 %3077
      %v3081 = vrot.slane %v2426, 7
      %v3082 = vrot.slane %v2428, 6
      %v3083 = vsel %vm2565, %v3082, %v3081
      %v3084 = vrot.slane %v2430, 5
      %v3085 = vsel %vm2568, %v3084, %v3083
      %v3086 = vrot.slane %v2432, 4
      %v3087 = vsel %vm2571, %v3086, %v3085
      %v3088 = vrot.slane %v2434, 3
      %v3089 = vsel %vm2574, %v3088, %v3087
      %v3090 = vrot.slane %v2436, 2
      %v3091 = vsel %vm2577, %v3090, %v3089
      %v3092 = vrot.slane %v2438, 1
      %v3093 = vsel %vm2580, %v3092, %v3091
      %v3094 = vsel %vm2583, %v2440, %v3093
      %v3095 = vrot.slane %v2442, 7
      %v3096 = vrot.slane %v2444, 6
      %v3097 = vsel %vm2565, %v3096, %v3095
      %v3098 = vrot.slane %v2446, 5
      %v3099 = vsel %vm2568, %v3098, %v3097
      %v3100 = vrot.slane %v2448, 4
      %v3101 = vsel %vm2571, %v3100, %v3099
      %v3102 = vrot.slane %v2450, 3
      %v3103 = vsel %vm2574, %v3102, %v3101
      %v3104 = vrot.slane %v2452, 2
      %v3105 = vsel %vm2577, %v3104, %v3103
      %v3106 = vrot.slane %v2454, 1
      %v3107 = vsel %vm2580, %v3106, %v3105
      %v3108 = vsel %vm2583, %v2456, %v3107
      %3109 = vrot.lane.b32.xlu0 %v3094, 96
      %v3110 = vpop.permute.xlu0 %3109
      %3111 = vrot.lane.b32.xlu0 %v3108, 96
      %v3112 = vpop.permute.xlu0 %3111
      %v3115 = vsel %vm1242, %v2584, %v2630
      %v3116 = vsel %vm1242, %v2598, %v2632
      %v3117 = vsel %vm1275, %v3115, %v2664
      %v3118 = vsel %vm1275, %v3116, %v2666
      %v3119 = vsel %vm1372, %v3117, %v2698
      %v3120 = vsel %vm1372, %v3118, %v2700
      %v3121 = vsel %vm1242, %v2716, %v2762
      %v3122 = vsel %vm1242, %v2730, %v2764
      %v3123 = vsel %vm1275, %v3121, %v2796
      %v3124 = vsel %vm1275, %v3122, %v2798
      %v3125 = vsel %vm1372, %v3123, %v2830
      %v3126 = vsel %vm1372, %v3124, %v2832
      %v3127 = vsel %vm1242, %v2864, %v2910
      %v3128 = vsel %vm1242, %v2878, %v2912
      %v3129 = vsel %vm1275, %v3127, %v2944
      %v3130 = vsel %vm1275, %v3128, %v2946
      %v3131 = vsel %vm1372, %v3129, %v2978
      %v3132 = vsel %vm1372, %v3130, %v2980
      %v3133 = vsel %vm1242, %v2996, %v3042
      %v3134 = vsel %vm1242, %v3010, %v3044
      %v3135 = vsel %vm1275, %v3133, %v3076
      %v3136 = vsel %vm1275, %v3134, %v3078
      %v3137 = vsel %vm1372, %v3135, %v3110
      %v3138 = vsel %vm1372, %v3136, %v3112
      %v3139 = vpack.c.bf16 %v3120, %v3119
      %v3140 = vpack.c.bf16 %v3126, %v3125
      %v3141 = vpack.c.bf16 %v3132, %v3131
      %v3142 = vpack.c.bf16 %v3138, %v3137
      %v3143 = vpack.c.bf16 %v2546, %v2544
      %v3144 = vld [vmem:[%s6] sm:$0xf]
      %v3145 = vld [vmem:[%s6 + $0x4] sm:$0xf]
      %v3146 = vld [vmem:[%s6 + $0x8] sm:$0xf]
      %v3147 = vld [vmem:[%s6 + $0xc] sm:$0xf]
      %v3148 = vld [vmem:[%s6 + $0x10] sm:$0xf]
      %v3149 = vld [vmem:[%s6 + $0x14] sm:$0xf]
      %v3150 = vld [vmem:[%s6 + $0x18] sm:$0xf]
      %v3151 = vld [vmem:[%s6 + $0x1c] sm:$0xf]
      %v3152 = vld [vmem:[%s6 + $0x20] sm:$0xf]
      %v3153 = vld [vmem:[%s6 + $0x24] sm:$0xf]
      %v3154 = vld [vmem:[%s6 + $0x28] sm:$0xf]
      %v3155 = vld [vmem:[%s6 + $0x2c] sm:$0xf]
      %v3156 = vld [vmem:[%s6 + $0x30] sm:$0xf]
      %v3157 = vld [vmem:[%s6 + $0x34] sm:$0xf]
      %v3158 = vld [vmem:[%s6 + $0x38] sm:$0xf]
      %v3159 = vld [vmem:[%s6 + $0x3c] sm:$0xf]
      %v3160 = vld [vmem:[%s6 + $0x40] sm:$0xf]
      %v3161 = vld [vmem:[%s6 + $0x44] sm:$0xf]
      %v3162 = vld [vmem:[%s6 + $0x48] sm:$0xf]
      %v3163 = vld [vmem:[%s6 + $0x4c] sm:$0xf]
      %v3164 = vld [vmem:[%s6 + $0x50] sm:$0xf]
      %v3165 = vld [vmem:[%s6 + $0x54] sm:$0xf]
      %v3166 = vld [vmem:[%s6 + $0x58] sm:$0xf]
      %v3167 = vld [vmem:[%s6 + $0x5c] sm:$0xf]
      %v3168 = vld [vmem:[%s6 + $0x60] sm:$0xf]
      %v3169 = vld [vmem:[%s6 + $0x64] sm:$0xf]
      %v3170 = vld [vmem:[%s6 + $0x68] sm:$0xf]
      %v3171 = vld [vmem:[%s6 + $0x6c] sm:$0xf]
      %v3172 = vld [vmem:[%s6 + $0x70] sm:$0xf]
      %v3173 = vld [vmem:[%s6 + $0x74] sm:$0xf]
      %v3174 = vld [vmem:[%s6 + $0x78] sm:$0xf]
      %v3175 = vld [vmem:[%s6 + $0x7c] sm:$0xf]
      %v3176 = vld [vmem:[%s6 + $0x80] sm:$0xf]
      %v3177 = vld [vmem:[%s6 + $0x84] sm:$0xf]
      %v3178 = vld [vmem:[%s6 + $0x88] sm:$0xf]
      %v3179 = vld [vmem:[%s6 + $0x8c] sm:$0xf]
      %v3180 = vld [vmem:[%s6 + $0x90] sm:$0xf]
      %v3181 = vld [vmem:[%s6 + $0x94] sm:$0xf]
      %v3182 = vld [vmem:[%s6 + $0x98] sm:$0xf]
      %v3183 = vld [vmem:[%s6 + $0x9c] sm:$0xf]
      %v3184 = vld [vmem:[%s6 + $0xa0] sm:$0xf]
      %v3185 = vld [vmem:[%s6 + $0xa4] sm:$0xf]
      %v3186 = vld [vmem:[%s6 + $0xa8] sm:$0xf]
      %v3187 = vld [vmem:[%s6 + $0xac] sm:$0xf]
      %v3188 = vld [vmem:[%s6 + $0xb0] sm:$0xf]
      %v3189 = vld [vmem:[%s6 + $0xb4] sm:$0xf]
      %v3190 = vld [vmem:[%s6 + $0xb8] sm:$0xf]
      %v3191 = vld [vmem:[%s6 + $0xbc] sm:$0xf]
      %v3192 = vld [vmem:[%s6 + $0xc0] sm:$0xf]
      %v3193 = vld [vmem:[%s6 + $0xc4] sm:$0xf]
      %v3194 = vld [vmem:[%s6 + $0xc8] sm:$0xf]
      %v3195 = vld [vmem:[%s6 + $0xcc] sm:$0xf]
      %v3196 = vld [vmem:[%s6 + $0xd0] sm:$0xf]
      %v3197 = vld [vmem:[%s6 + $0xd4] sm:$0xf]
      %v3198 = vld [vmem:[%s6 + $0xd8] sm:$0xf]
      %v3199 = vld [vmem:[%s6 + $0xdc] sm:$0xf]
      %v3200 = vld [vmem:[%s6 + $0xe0] sm:$0xf]
      %v3201 = vld [vmem:[%s6 + $0xe4] sm:$0xf]
      %v3202 = vld [vmem:[%s6 + $0xe8] sm:$0xf]
      %v3203 = vld [vmem:[%s6 + $0xec] sm:$0xf]
      %v3204 = vld [vmem:[%s6 + $0xf0] sm:$0xf]
      %v3205 = vld [vmem:[%s6 + $0xf4] sm:$0xf]
      %v3206 = vld [vmem:[%s6 + $0xf8] sm:$0xf]
      %v3207 = vld [vmem:[%s6 + $0xfc] sm:$0xf]
      %v3208 = vld [vmem:[%s6 + $0x100] sm:$0xf]
      %v3209 = vld [vmem:[%s6 + $0x104] sm:$0xf]
      %v3210 = vld [vmem:[%s6 + $0x108] sm:$0xf]
      %v3211 = vld [vmem:[%s6 + $0x10c] sm:$0xf]
      %v3212 = vld [vmem:[%s7] sm:$0x1]
      %v3214 = vperm.slane %v3212, 0
      %v3284 = vunpack.c.l.b16 %v3144
      %v3285 = vunpack.c.l.b16 %v3145
      %v3286 = vunpack.c.l.b16 %v3146
      %v3287 = vunpack.c.l.b16 %v3147
      %v3288 = vunpack.c.l.b16 %v3148
      %v3289 = vunpack.c.l.b16 %v3149
      %v3290 = vunpack.c.l.b16 %v3150
      %v3291 = vunpack.c.l.b16 %v3151
      %v3292 = vunpack.c.l.b16 %v3152
      %v3293 = vunpack.c.l.b16 %v3153
      %v3294 = vunpack.c.l.b16 %v3154
      %v3295 = vunpack.c.l.b16 %v3155
      %v3296 = vunpack.c.l.b16 %v3156
      %v3297 = vunpack.c.l.b16 %v3157
      %v3298 = vunpack.c.l.b16 %v3158
      %v3299 = vunpack.c.l.b16 %v3159
      %v3300 = vunpack.c.l.b16 %v3160
      %v3301 = vunpack.c.l.b16 %v3161
      %v3302 = vunpack.c.l.b16 %v3162
      %v3303 = vunpack.c.l.b16 %v3163
      %v3304 = vunpack.c.l.b16 %v3164
      %v3305 = vunpack.c.l.b16 %v3165
      %v3306 = vunpack.c.l.b16 %v3166
      %v3307 = vunpack.c.l.b16 %v3167
      %v3308 = vunpack.c.l.b16 %v3168
      %v3309 = vunpack.c.l.b16 %v3169
      %v3310 = vunpack.c.l.b16 %v3170
      %v3311 = vunpack.c.l.b16 %v3171
      %v3312 = vunpack.c.l.b16 %v3172
      %v3313 = vunpack.c.l.b16 %v3173
      %v3314 = vunpack.c.l.b16 %v3174
      %v3315 = vunpack.c.l.b16 %v3175
      %v3316 = vunpack.c.l.b16 %v3176
      %v3317 = vunpack.c.l.b16 %v3177
      %v3318 = vunpack.c.l.b16 %v3178
      %v3319 = vunpack.c.l.b16 %v3179
      %v3320 = vunpack.c.l.b16 %v3180
      %v3321 = vunpack.c.l.b16 %v3181
      %v3322 = vunpack.c.l.b16 %v3182
      %v3323 = vunpack.c.l.b16 %v3183
      %v3324 = vunpack.c.l.b16 %v3184
      %v3325 = vunpack.c.l.b16 %v3185
      %v3326 = vunpack.c.l.b16 %v3186
      %v3327 = vunpack.c.l.b16 %v3187
      %v3328 = vunpack.c.l.b16 %v3188
      %v3329 = vunpack.c.l.b16 %v3189
      %v3330 = vunpack.c.l.b16 %v3190
      %v3331 = vunpack.c.l.b16 %v3191
      %v3332 = vunpack.c.l.b16 %v3192
      %v3333 = vunpack.c.l.b16 %v3193
      %v3334 = vunpack.c.l.b16 %v3194
      %v3335 = vunpack.c.l.b16 %v3195
      %v3336 = vunpack.c.l.b16 %v3196
      %v3337 = vunpack.c.l.b16 %v3197
      %v3338 = vunpack.c.l.b16 %v3198
      %v3339 = vunpack.c.l.b16 %v3199
      %v3340 = vunpack.c.l.b16 %v3200
      %v3341 = vunpack.c.l.b16 %v3201
      %v3342 = vunpack.c.l.b16 %v3202
      %v3343 = vunpack.c.l.b16 %v3203
      %v3344 = vunpack.c.l.b16 %v3204
      %v3345 = vunpack.c.l.b16 %v3205
      %v3346 = vunpack.c.l.b16 %v3206
      %v3347 = vunpack.c.l.b16 %v3207
      %v3348 = vunpack.c.l.b16 %v3208
      %v3349 = vunpack.c.l.b16 %v3209
      %v3350 = vunpack.c.l.b16 %v3210
      %v3351 = vunpack.c.l.b16 %v3211
      %v3352 = vpack.c.b16 %v3285, %v3284
      %v3353 = vpack.c.b16 %v3287, %v3286
      %v3354 = vpack.c.b16 %v3289, %v3288
      %v3355 = vpack.c.b16 %v3291, %v3290
      %v3356 = vpack.c.b16 %v3293, %v3292
      %v3357 = vpack.c.b16 %v3295, %v3294
      %v3358 = vpack.c.b16 %v3297, %v3296
      %v3359 = vpack.c.b16 %v3299, %v3298
      %v3360 = vpack.c.b16 %v3301, %v3300
      %v3361 = vpack.c.b16 %v3303, %v3302
      %v3362 = vpack.c.b16 %v3305, %v3304
      %v3363 = vpack.c.b16 %v3307, %v3306
      %v3364 = vpack.c.b16 %v3309, %v3308
      %v3365 = vpack.c.b16 %v3311, %v3310
      %v3366 = vpack.c.b16 %v3313, %v3312
      %v3367 = vpack.c.b16 %v3315, %v3314
      %v3368 = vpack.c.b16 %v3317, %v3316
      %v3369 = vpack.c.b16 %v3319, %v3318
      %v3370 = vpack.c.b16 %v3321, %v3320
      %v3371 = vpack.c.b16 %v3323, %v3322
      %v3372 = vpack.c.b16 %v3325, %v3324
      %v3373 = vpack.c.b16 %v3327, %v3326
      %v3374 = vpack.c.b16 %v3329, %v3328
      %v3375 = vpack.c.b16 %v3331, %v3330
      %v3376 = vpack.c.b16 %v3333, %v3332
      %v3377 = vpack.c.b16 %v3335, %v3334
      %v3378 = vpack.c.b16 %v3337, %v3336
      %v3379 = vpack.c.b16 %v3339, %v3338
      %v3380 = vpack.c.b16 %v3341, %v3340
      %v3381 = vpack.c.b16 %v3343, %v3342
      %v3382 = vpack.c.b16 %v3345, %v3344
      %v3383 = vpack.c.b16 %v3347, %v3346
      %v3384 = vpack.c.b16 %v3349, %v3348
      %v3385 = vpack.c.b16 %v3351, %v3350
      %v3421 = vsel %vm1242, %v3143, 0
      %3423 = vmatpush.bf16.msra.mxu0 %v3359
      %3424 = vmatpush.bf16.msra.mxu0 %v3358
      %3425 = vmatpush.bf16.msra.mxu0 %v3357
      %3426 = vmatpush.bf16.msra.mxu0 %v3356
      %3427 = vmatpush.bf16.msra.mxu0 %v3355
      %3428 = vmatpush.bf16.msra.mxu0 %v3354
      %3429 = vmatpush.bf16.msra.mxu0 %v3353
      %3430 = vmatpush.bf16.msra.mxu0 %v3352
      %3431 = vmatmul.bf16.gmra.mxu0 %v3139
      %v3432 = vpop.f32.mrf.mxu0
      %v3433 = vadd.f32 %v3214, %v3432
      %v3434 = vpop.f32.mrf.mxu0
      %v3435 = vadd.f32 %v3214, %v3434
      %3436 = vdwg.mxu0
      %3437 = vmatpush.bf16.msra.mxu0 %v3367
      %3438 = vmatpush.bf16.msra.mxu0 %v3366
      %3439 = vmatpush.bf16.msra.mxu0 %v3365
      %3440 = vmatpush.bf16.msra.mxu0 %v3364
      %3441 = vmatpush.bf16.msra.mxu0 %v3363
      %3442 = vmatpush.bf16.msra.mxu0 %v3362
      %3443 = vmatpush.bf16.msra.mxu0 %v3361
      %3444 = vmatpush.bf16.msra.mxu0 %v3360
      %3445 = vmatmul.bf16.gmra.mxu0 %v3140
      %v3446 = vpop.f32.mrf.mxu0
      %v3447 = vadd.f32 %v3433, %v3446
      %v3448 = vpop.f32.mrf.mxu0
      %v3449 = vadd.f32 %v3435, %v3448
      %3450 = vdwg.mxu0
      %3451 = vmatpush.bf16.msra.mxu0 %v3375
      %3452 = vmatpush.bf16.msra.mxu0 %v3374
      %3453 = vmatpush.bf16.msra.mxu0 %v3373
      %3454 = vmatpush.bf16.msra.mxu0 %v3372
      %3455 = vmatpush.bf16.msra.mxu0 %v3371
      %3456 = vmatpush.bf16.msra.mxu0 %v3370
      %3457 = vmatpush.bf16.msra.mxu0 %v3369
      %3458 = vmatpush.bf16.msra.mxu0 %v3368
      %3459 = vmatmul.bf16.gmra.mxu0 %v3141
      %v3460 = vpop.f32.mrf.mxu0
      %v3461 = vadd.f32 %v3447, %v3460
      %v3462 = vpop.f32.mrf.mxu0
      %v3463 = vadd.f32 %v3449, %v3462
      %3464 = vdwg.mxu0
      %3465 = vmatpush.bf16.msra.mxu0 %v3383
      %3466 = vmatpush.bf16.msra.mxu0 %v3382
      %3467 = vmatpush.bf16.msra.mxu0 %v3381
      %3468 = vmatpush.bf16.msra.mxu0 %v3380
      %3469 = vmatpush.bf16.msra.mxu0 %v3379
      %3470 = vmatpush.bf16.msra.mxu0 %v3378
      %3471 = vmatpush.bf16.msra.mxu0 %v3377
      %3472 = vmatpush.bf16.msra.mxu0 %v3376
      %3473 = vmatmul.bf16.gmra.mxu0 %v3142
      %v3474 = vpop.f32.mrf.mxu0
      %v3475 = vadd.f32 %v3461, %v3474
      %v3476 = vpop.f32.mrf.mxu0
      %v3477 = vadd.f32 %v3463, %v3476
      %3478 = vdwg.mxu0
      %3479 = vmatpush.bf16.msra.mxu0 0
      %3480 = vmatpush.bf16.msra.mxu0 0
      %3481 = vmatpush.bf16.msra.mxu0 0
      %3482 = vmatpush.bf16.msra.mxu0 0
      %3483 = vmatpush.bf16.msra.mxu0 0
      %3484 = vmatpush.bf16.msra.mxu0 0
      %3485 = vmatpush.bf16.msra.mxu0 %v3385
      %3486 = vmatpush.bf16.msra.mxu0 %v3384
      %3487 = vmatmul.bf16.gmra.mxu0 %v3421
      %v3488 = vpop.f32.mrf.mxu0
      %v3489 = vadd.f32 %v3475, %v3488
      %v3490 = vpop.f32.mrf.mxu0
      %v3491 = vadd.f32 %v3477, %v3490
      %3492 = vdwg.mxu0
      %3493 = vst [vmem:[%s329] sm:$0xff] %v3489
      %3494 = vst [vmem:[%s329 + $0x8] sm:$0xff] %v3491
      %s3495 = smul.u32 2, %s19
      %p3496 = scmp.lt.s32.totalorder %s3495, 3
      %s3497 = scalar_select %p3496, %s3495, 3
      %s3498 = smul.addr %s3497, 8
      %s3499 = scalar_lea.vmem %s8, %s3498
      // Predicated region
      $region53: #{forward.1} parent=51 // pred_check
        %p3500 = pneg %p215
      $region54: #{forward.1} parent=51 // pred_check_branch
        %3502 = sbr.rel (%p3500) target = $region56
      $region55: #{forward.1} parent=51 // pred_region
        %s3503 = smul.u32 2, %s19
      $region56: #{forward.1} parent=51 // pred_fallthru
        _
    $region52: #{forward.1} parent=5 // pred_fallthru
      _
    %p3504 = scmp.le.s32.totalorder 2, %s14
    // Predicated region
    $region57: #{forward.1} parent=5 // pred_check
      %p3505 = pneg %p3504
    $region58: #{forward.1} parent=5 // pred_check_branch
      %3507 = sbr.rel (%p3505) target = $region60
    $region59: #{forward.1} parent=5 // pred_region
      %s3508 = ssub.s32 %s14, 2
      // Predicated region
      $region61: #{forward.1} parent=59 // pred_check
        %p3509 = pneg %p221
      $region62: #{forward.1} parent=59 // pred_check_branch
        %3511 = sbr.rel (%p3509) target = $region64
      $region63: #{forward.1} parent=59 // pred_region
        %s3512 = smul.u32 2, %s20
        %p3513 = scmp.lt.s32.totalorder %s3512, 3
        %s3514 = scalar_select %p3513, %s3512, 3
        %s3515 = smul.addr %s3514, 8
        %s3516 = scalar_lea.vmem %s8, %s3515
      $region64: #{forward.1} parent=59 // pred_fallthru
        _
    $region60: #{forward.1} parent=5 // pred_fallthru
      _
  $region6: #{forward.1} parent=0 // loop_footer
    %s18 = sadd.s32 1, %s14
  $region7: #{forward.1} parent=0 // loop_footer_branch
    %13 = sbr.rel target = $region3
  $region8: #{forward.1} parent=0 // loop_exit
    _

</llo_original>
